<compile_context>
chip_gen: v6e
topology: v6e:2x2x1
jax: 0.10.0
libtpu: 0.0.40
codegen_flags: <defaults>
</compile_context>

<pallas_src>
import functools

import jax
import jax.numpy as jnp
import numpy as np
from jax import lax
from jax.experimental import pallas as pl
from jax.experimental.pallas import tpu as pltpu

LANE = 128  # TPU vreg lane width


# ---------------------------------------------------------------------------
# Kernel 1: binary conv as a lane-dense bf16 MXU matmul over im2col rows
# ---------------------------------------------------------------------------
def _binary_conv_kernel(p_ref, w_ref, b_ref, o_ref):
    # p_ref: (TM, KKC)   bf16 im2col rows (M tile of the flattened batch*spatial axis)
    # w_ref: (KKC, 128)  bf16 pre-binarized weights (+/-1, 0), Cout zero-padded to 128
    # b_ref: (1, 128)    f32 bias (zero-padded)
    # o_ref: (TM, 128)   f32 lane-dense output tile
    acc = jnp.dot(p_ref[...], w_ref[...], preferred_element_type=jnp.float32)
    o_ref[...] = acc + b_ref[...]


# ---------------------------------------------------------------------------
# Kernel 2: BatchNorm (batch stats) + channel attention + spatial attention + PReLU
# ---------------------------------------------------------------------------
def _bn_dualattn_prelu_kernel(
    y_ref, gamma_ref, beta_ref, w1_ref, w2_ref, sa_ref,   # VMEM inputs
    fc_a_ref, pr_a_ref,                                   # SMEM scalar inputs
    o_ref,                                                # VMEM output (NP, 128)
    *, n_batch, p_spatial, c_real,
):
    NP, C = y_ref.shape
    x = y_ref[...]

    # ---- BatchNorm2d (training-mode batch stats), single-pass sum / sum-of-squares ----
    inv_np = 1.0 / NP
    s1 = jnp.sum(x, axis=0, keepdims=True)                 # (1, C)
    s2 = jnp.sum(x * x, axis=0, keepdims=True)             # (1, C)
    mean = s1 * inv_np
    var = s2 * inv_np - mean * mean
    scale = gamma_ref[...] * lax.rsqrt(var + 1e-5)         # padded lanes: gamma=0 -> 0
    shift = beta_ref[...] - mean * scale
    xb = x * scale + shift                                 # (NP, C); padded lanes stay 0

    # ---- Channel attention: avg/max pool -> ONE fused MLP pass -> sigmoid scale ----
    x3 = xb.reshape(n_batch, p_spatial, C)
    avg_p = jnp.sum(x3, axis=1) * (1.0 / p_spatial)        # (N, C)
    max_p = jnp.max(x3, axis=1)                            # (N, C)
    pooled = jnp.concatenate([avg_p, max_p], axis=0)       # (2N, C) -> single MLP pass
    h = jnp.dot(pooled, w1_ref[...], preferred_element_type=jnp.float32)   # (2N, C)
    fa = fc_a_ref[0]
    h = jnp.where(h >= 0.0, h, fa * h)                     # PReLU (shared scalar)
    fc_out = jnp.dot(h, w2_ref[...], preferred_element_type=jnp.float32)   # (2N, C)
    attn = jax.nn.sigmoid(fc_out[:n_batch] + fc_out[n_batch:])             # (N, C)
    x_ca = x3 * attn[:, None, :]                           # (N, P, C); padded lanes stay 0

    # ---- Spatial attention: channel mean/max -> 7x7 conv as ONE MXU matmul -> sigmoid ----
    lane = lax.broadcasted_iota(jnp.int32, (1, 1, C), 2)
    s_avg = jnp.sum(x_ca, axis=2) * (1.0 / c_real)         # (N, P)  (padded lanes are 0)
    s_max = jnp.max(jnp.where(lane < c_real, x_ca, jnp.float32(-1e30)), axis=2)  # (N, P)
    s_cat = jnp.concatenate([s_avg, s_max], axis=1)        # (N, 2P)
    conv = jnp.dot(s_cat, sa_ref[...], preferred_element_type=jnp.float32)  # (N, P)
    sig = jax.nn.sigmoid(conv)[:, :, None]                 # (N, P, 1)
    x_sa = x_ca * sig

    # ---- Outer PReLU (single shared parameter) ----
    pa = pr_a_ref[0]
    out = jnp.where(x_sa >= 0.0, x_sa, pa * x_sa)
    o_ref[...] = out.reshape(NP, C)


# ---------------------------------------------------------------------------
# Precompute the 7x7 "conv as matmul" operand: (2*H*W, H*W) dense matrix
# ---------------------------------------------------------------------------
def _spatial_conv_matrix(sa_w, H, W):
    # sa_w: (1, 2, 7, 7). Returns M such that, for a flattened 2-channel spatial map
    # s_cat = [avg_flat | max_flat] of shape (N, 2*H*W), s_cat @ M reproduces the
    # zero-padded 7x7 cross-correlation of the reference conv (output flattened h*W+w).
    HW = H * W
    K = sa_w.shape[-1]
    r = K // 2
    hh, ww = np.meshgrid(np.arange(H), np.arange(W), indexing="ij")  # output coords
    rows, cols, taps = [], [], []
    for i in range(K):
        for j in range(K):
            hi = hh + (i - r)
            wi = ww + (j - r)
            valid = (hi >= 0) & (hi < H) & (wi >= 0) & (wi < W)
            rows.append((hi * W + wi)[valid])          # input flat index
            cols.append((hh * W + ww)[valid])          # output flat index
            taps.append(np.full(int(valid.sum()), i * K + j, np.int32))
    rows = np.concatenate(rows)
    cols = np.concatenate(cols)
    taps = np.concatenate(taps)
    k = sa_w[0].reshape(2, K * K)                      # channel 0 = avg, channel 1 = max
    M = jnp.zeros((2, HW, HW), jnp.float32).at[:, rows, cols].set(k[:, taps])
    return M.reshape(2 * HW, HW)


# ---------------------------------------------------------------------------
# Wrapper (glue: layout conversion, padding, im2col, parameter packing)
# ---------------------------------------------------------------------------
def dabconv_forward(x_nchw, params, *, stride=1, padding=0):
    w = params["conv_w"]                  # (Cout, Cin, K, K)
    b = params["conv_b"]                  # (Cout,)
    Cout, Cin, K, _ = w.shape
    assert Cout <= LANE, "this kernel assumes Cout <= 128"
    N, _, H, W = x_nchw.shape
    Ho = (H + 2 * padding - K) // stride + 1
    Wo = (W + 2 * padding - K) // stride + 1
    P = Ho * Wo
    NP = N * P
    KKC = K * K * Cin

    # --- im2col rows, flattened to one large-M matmul problem (bf16 for the MXU) ---
    # TODO(synk): build patches in-kernel from a BlockSpec'd padded NHWC input to avoid
    #             this K*K-fold HBM expansion once shapes grow.
    x = jnp.transpose(x_nchw, (0, 2, 3, 1)).astype(jnp.float32)
    xp = jnp.pad(x, ((0, 0), (padding, padding), (padding, padding), (0, 0)))
    cols = []
    for kh in range(K):
        for kw in range(K):
            cols.append(xp[:, kh:kh + (Ho - 1) * stride + 1:stride,
                              kw:kw + (Wo - 1) * stride + 1:stride, :])
    patches = jnp.stack(cols, axis=3).reshape(NP, KKC)          # (N*P, K*K*Cin)

    TM = 256                                                    # M tile (rows per grid step)
    NP_pad = -(-NP // TM) * TM
    patches = jnp.pad(patches, ((0, NP_pad - NP), (0, 0))).astype(jnp.bfloat16)

    # Binarization hoisted out of the kernel; weights are exactly +/-1/0 so bf16 is lossless.
    w_mat = jnp.sign(w).transpose(2, 3, 1, 0).reshape(KKC, Cout)
    w_mat = jnp.pad(w_mat, ((0, 0), (0, LANE - Cout))).astype(jnp.bfloat16)   # (KKC, 128)
    bias = jnp.pad(b.reshape(1, Cout), ((0, 0), (0, LANE - Cout))).astype(jnp.float32)

    y_pad = pl.pallas_call(
        _binary_conv_kernel,
        out_shape=jax.ShapeDtypeStruct((NP_pad, LANE), jnp.float32),
        grid=(NP_pad // TM,),
        in_specs=[
            pl.BlockSpec((TM, KKC), lambda m: (m, 0)),
            pl.BlockSpec((KKC, LANE), lambda m: (0, 0)),
            pl.BlockSpec((1, LANE), lambda m: (0, 0)),
        ],
        out_specs=pl.BlockSpec((TM, LANE), lambda m: (m, 0)),
        compiler_params=pltpu.CompilerParams(dimension_semantics=("parallel",)),
    )(patches, w_mat, bias)
    y = y_pad[:NP]                                              # (N*P, 128), lanes >= Cout are 0

    # --- parameter packing for kernel 2 (all lane-padded to 128) ---
    hidden = params["fc1_w"].shape[0]
    assert hidden <= LANE
    gamma = jnp.pad(params["bn_gamma"].reshape(1, Cout), ((0, 0), (0, LANE - Cout)))
    beta = jnp.pad(params["bn_beta"].reshape(1, Cout), ((0, 0), (0, LANE - Cout)))
    w1t = jnp.zeros((LANE, LANE), jnp.float32).at[:Cout, :hidden].set(params["fc1_w"].T)
    w2t = jnp.zeros((LANE, LANE), jnp.float32).at[:hidden, :Cout].set(params["fc2_w"].T)
    sa_mat = _spatial_conv_matrix(params["sa_w"], Ho, Wo)       # (2*P, P)
    fc_alpha = params["fc_prelu"].reshape(1).astype(jnp.float32)
    pr_alpha = params["prelu"].reshape(1).astype(jnp.float32)

    vmem = pl.BlockSpec(memory_space=pltpu.MemorySpace.VMEM)
    smem = pl.BlockSpec(memory_space=pltpu.MemorySpace.SMEM)

    # TODO(synk): for large N*H*W, split into a gridded reduce-then-apply pair so the
    #             activation streams through VMEM (mandatory on v7x's 64 MiB VMEM).
    kernel2 = functools.partial(
        _bn_dualattn_prelu_kernel, n_batch=N, p_spatial=P, c_real=Cout)
    out_pad = pl.pallas_call(
        kernel2,
        out_shape=jax.ShapeDtypeStruct((NP, LANE), jnp.float32),
        in_specs=[vmem, vmem, vmem, vmem, vmem, vmem, smem, smem],
        out_specs=vmem,
    )(y, gamma, beta, w1t, w2t, sa_mat, fc_alpha, pr_alpha)

    out_nhwc = out_pad[:, :Cout].reshape(N, Ho, Wo, Cout)
    return jnp.transpose(out_nhwc, (0, 3, 1, 2))                # back to NCHW


# ---------------------------------------------------------------------------
# Pure-JAX reference (for correctness check only)
# ---------------------------------------------------------------------------
def dabconv_reference(x_nchw, params, *, stride=1, padding=0):
    wbin = jnp.sign(params["conv_w"])
    y = lax.conv_general_dilated(
        x_nchw, wbin, (stride, stride), [(padding, padding)] * 2,
        dimension_numbers=("NCHW", "OIHW", "NCHW"))
    y = y + params["conv_b"][None, :, None, None]
    mean = jnp.mean(y, axis=(0, 2, 3), keepdims=True)
    var = jnp.mean((y - mean) ** 2, axis=(0, 2, 3), keepdims=True)
    yb = (y - mean) / jnp.sqrt(var + 1e-5)
    yb = yb * params["bn_gamma"][None, :, None, None] + params["bn_beta"][None, :, None, None]
    avg = jnp.mean(yb, axis=(2, 3))
    mx = jnp.max(yb, axis=(2, 3))

    def fc(v):
        h = v @ params["fc1_w"].T
        h = jnp.where(h >= 0, h, params["fc_prelu"] * h)
        return h @ params["fc2_w"].T

    attn = jax.nn.sigmoid(fc(avg) + fc(mx))[:, :, None, None]
    xca = yb * attn
    s_avg = jnp.mean(xca, axis=1, keepdims=True)
    s_max = jnp.max(xca, axis=1, keepdims=True)
    scat = jnp.concatenate([s_avg, s_max], axis=1)
    sc = lax.conv_general_dilated(
        scat, params["sa_w"], (1, 1), [(3, 3), (3, 3)],
        dimension_numbers=("NCHW", "OIHW", "NCHW"))
    xsa = xca * jax.nn.sigmoid(sc)
    return jnp.where(xsa >= 0, xsa, params["prelu"] * xsa)


if __name__ == "__main__":
    in_channels, out_channels, Ksz = 4, 32, 3
    stride, padding = 1, 1
    N, H, W = 2, 16, 16
    reduction = 16
    hidden = out_channels // reduction   # = 2

    key = jax.random.PRNGKey(0)
    ks = jax.random.split(key, 6)
    params = {
        "conv_w": jax.random.normal(ks[0], (out_channels, in_channels, Ksz, Ksz), jnp.float32) * 0.1,
        "conv_b": jnp.zeros((out_channels,), jnp.float32),
        "bn_gamma": jnp.ones((out_channels,), jnp.float32),
        "bn_beta": jnp.zeros((out_channels,), jnp.float32),
        "fc1_w": jax.random.normal(ks[1], (hidden, out_channels), jnp.float32) * 0.1,
        "fc2_w": jax.random.normal(ks[2], (out_channels, hidden), jnp.float32) * 0.1,
        "fc_prelu": jnp.full((1,), 0.25, jnp.float32),
        "sa_w": jax.random.normal(ks[3], (1, 2, 7, 7), jnp.float32) * 0.1,
        "prelu": jnp.full((1,), 0.25, jnp.float32),
    }
    x = jax.random.normal(ks[4], (N, in_channels, H, W), jnp.float32)

    fwd = jax.jit(lambda xx: dabconv_forward(xx, params, stride=stride, padding=padding))
    out = jax.block_until_ready(fwd(x))

    ref = dabconv_reference(x, params, stride=stride, padding=padding)
    # bf16 MXU inputs on the conv path -> slightly looser tolerance than pure f32.
    np.testing.assert_allclose(np.asarray(out), np.asarray(ref), rtol=2e-2, atol=5e-3)
    print("KERNEL_OK")
</pallas_src>

<mosaic_0001>
module attributes {stable_mosaic.version = 11 : i64} {
  func.func @_binary_conv_kernel(%arg0: i32, %arg1: memref<256x36xbf16, #tpu.memory_space<vmem>>, %arg2: memref<36x128xbf16, #tpu.memory_space<vmem>>, %arg3: memref<1x128xf32, #tpu.memory_space<vmem>>, %arg4: memref<256x128xf32, #tpu.memory_space<vmem>>) attributes {dimension_semantics = [#tpu.dimension_semantics<parallel>], iteration_bounds = array<i64: 2>, scalar_prefetch = 0 : i64, scratch_operands = 0 : i64, tpu.core_type = #tpu.core_type<tc>, window_params = [{transform_indices = @transform_0, window_bounds = array<i64: 256, 36>}, {pipeline_mode = #tpu.pipeline_mode<synchronous>, transform_indices = @transform_1, window_bounds = array<i64: 36, 128>}, {pipeline_mode = #tpu.pipeline_mode<synchronous>, transform_indices = @transform_2, window_bounds = array<i64: 1, 128>}, {transform_indices = @transform_3, window_bounds = array<i64: 256, 128>}]} {
    %c0 = arith.constant 0 : index
    %c0_0 = arith.constant 0 : index
    %0 = vector.load %arg1[%c0, %c0_0] : memref<256x36xbf16, #tpu.memory_space<vmem>>, vector<256x36xbf16>
    %c0_1 = arith.constant 0 : index
    %c0_2 = arith.constant 0 : index
    %1 = vector.load %arg2[%c0_1, %c0_2] : memref<36x128xbf16, #tpu.memory_space<vmem>>, vector<36x128xbf16>
    %cst = arith.constant dense<0.000000e+00> : vector<256x128xf32>
    %2 = tpu.matmul %0, %1, %cst {dimension_numbers = #tpu.dot_dimension_numbers<[1], [0], [0], [1], [0, 0, 1, 1], [], []>} : vector<256x36xbf16>, vector<36x128xbf16>, vector<256x128xf32> -> vector<256x128xf32>
    %c0_3 = arith.constant 0 : index
    %c0_4 = arith.constant 0 : index
    %3 = vector.load %arg3[%c0_3, %c0_4] : memref<1x128xf32, #tpu.memory_space<vmem>>, vector<1x128xf32>
    %4 = vector.broadcast %3 : vector<1x128xf32> to vector<256x128xf32>
    %5 = arith.addf %2, %4 : vector<256x128xf32>
    %c0_5 = arith.constant 0 : index
    %c0_6 = arith.constant 0 : index
    %6 = vector.load %arg4[%c0_5, %c0_6] : memref<256x128xf32, #tpu.memory_space<vmem>>, vector<256x128xf32>
    tpu.vector_store %arg4[%c0_5, %c0_6], %5 {strides = array<i32>} : memref<256x128xf32, #tpu.memory_space<vmem>>, vector<256x128xf32>,
    return
  }
  func.func @transform_0(%arg0: i32) -> (i32, i32) {
    %c0_i32 = arith.constant 0 : i32
    %c0_i32_0 = arith.constant 0 : i32
    return %arg0, %c0_i32 : i32, i32
  }
  func.func @transform_1(%arg0: i32) -> (i32, i32) {
    %c0_i32 = arith.constant 0 : i32
    %c0_i32_0 = arith.constant 0 : i32
    %c0_i32_1 = arith.constant 0 : i32
    return %c0_i32, %c0_i32_0 : i32, i32
  }
  func.func @transform_2(%arg0: i32) -> (i32, i32) {
    %c0_i32 = arith.constant 0 : i32
    %c0_i32_0 = arith.constant 0 : i32
    %c0_i32_1 = arith.constant 0 : i32
    return %c0_i32, %c0_i32_0 : i32, i32
  }
  func.func @transform_3(%arg0: i32) -> (i32, i32) {
    %c0_i32 = arith.constant 0 : i32
    %c0_i32_0 = arith.constant 0 : i32
    return %arg0, %c0_i32 : i32, i32
  }
}

module attributes {stable_mosaic.version = 11 : i64} {
  func.func @_bn_dualattn_prelu_kernel(%arg0: memref<512x128xf32, #tpu.memory_space<vmem>>, %arg1: memref<1x128xf32, #tpu.memory_space<vmem>>, %arg2: memref<1x128xf32, #tpu.memory_space<vmem>>, %arg3: memref<128x128xf32, #tpu.memory_space<vmem>>, %arg4: memref<128x128xf32, #tpu.memory_space<vmem>>, %arg5: memref<512x256xf32, #tpu.memory_space<vmem>>, %arg6: memref<1xf32, #tpu.memory_space<smem>>, %arg7: memref<1xf32, #tpu.memory_space<smem>>, %arg8: memref<512x128xf32, #tpu.memory_space<vmem>>) attributes {dimension_semantics = [], scalar_prefetch = 0 : i64, scratch_operands = 0 : i64, tpu.core_type = #tpu.core_type<tc>} {
    %c0 = arith.constant 0 : index
    %c0_0 = arith.constant 0 : index
    %0 = vector.load %arg0[%c0, %c0_0] : memref<512x128xf32, #tpu.memory_space<vmem>>, vector<512x128xf32>
    %cst = arith.constant dense<0.000000e+00> : vector<128xf32>
    %1 = vector.multi_reduction <add>, %0, %cst [0] : vector<512x128xf32> to vector<128xf32>
    %2 = vector.shape_cast %1 : vector<128xf32> to vector<1x128xf32>
    %3 = arith.mulf %0, %0 : vector<512x128xf32>
    %cst_1 = arith.constant dense<0.000000e+00> : vector<128xf32>
    %4 = vector.multi_reduction <add>, %3, %cst_1 [0] : vector<512x128xf32> to vector<128xf32>
    %5 = vector.shape_cast %4 : vector<128xf32> to vector<1x128xf32>
    %cst_2 = arith.constant 0.001953125 : f32
    %6 = vector.broadcast %cst_2 : f32 to vector<1x128xf32>
    %7 = arith.mulf %2, %6 : vector<1x128xf32>
    %cst_3 = arith.constant 0.001953125 : f32
    %8 = vector.broadcast %cst_3 : f32 to vector<1x128xf32>
    %9 = arith.mulf %5, %8 : vector<1x128xf32>
    %10 = arith.mulf %7, %7 : vector<1x128xf32>
    %11 = arith.subf %9, %10 : vector<1x128xf32>
    %c0_4 = arith.constant 0 : index
    %c0_5 = arith.constant 0 : index
    %12 = vector.load %arg1[%c0_4, %c0_5] : memref<1x128xf32, #tpu.memory_space<vmem>>, vector<1x128xf32>
    %cst_6 = arith.constant 9.99999974E-6 : f32
    %13 = vector.broadcast %cst_6 : f32 to vector<1x128xf32>
    %14 = arith.addf %11, %13 : vector<1x128xf32>
    %15 = math.rsqrt %14 : vector<1x128xf32>
    %16 = arith.mulf %12, %15 : vector<1x128xf32>
    %c0_7 = arith.constant 0 : index
    %c0_8 = arith.constant 0 : index
    %17 = vector.load %arg2[%c0_7, %c0_8] : memref<1x128xf32, #tpu.memory_space<vmem>>, vector<1x128xf32>
    %18 = arith.mulf %7, %16 : vector<1x128xf32>
    %19 = arith.subf %17, %18 : vector<1x128xf32>
    %20 = vector.broadcast %16 : vector<1x128xf32> to vector<512x128xf32>
    %21 = arith.mulf %0, %20 : vector<512x128xf32>
    %22 = vector.broadcast %19 : vector<1x128xf32> to vector<512x128xf32>
    %23 = arith.addf %21, %22 : vector<512x128xf32>
    %24 = vector.shape_cast %23 : vector<512x128xf32> to vector<2x256x128xf32>
    %cst_9 = arith.constant dense<0.000000e+00> : vector<2x128xf32>
    %25 = vector.multi_reduction <add>, %24, %cst_9 [1] : vector<2x256x128xf32> to vector<2x128xf32>
    %cst_10 = arith.constant 3.906250e-03 : f32
    %26 = vector.broadcast %cst_10 : f32 to vector<2x128xf32>
    %27 = arith.mulf %25, %26 : vector<2x128xf32>
    %cst_11 = arith.constant dense<0xFF800000> : vector<2x128xf32>
    %28 = vector.multi_reduction <maximumf>, %24, %cst_11 [1] : vector<2x256x128xf32> to vector<2x128xf32>
    %29 = tpu.concatenate %27, %28 in 0 : vector<2x128xf32>, vector<2x128xf32> -> vector<4x128xf32>
    %c0_12 = arith.constant 0 : index
    %c0_13 = arith.constant 0 : index
    %30 = vector.load %arg3[%c0_12, %c0_13] : memref<128x128xf32, #tpu.memory_space<vmem>>, vector<128x128xf32>
    %cst_14 = arith.constant dense<0.000000e+00> : vector<4x128xf32>
    %31 = tpu.matmul %29, %30, %cst_14 {dimension_numbers = #tpu.dot_dimension_numbers<[1], [0], [0], [1], [0, 0, 1, 1], [], []>} : vector<4x128xf32>, vector<128x128xf32>, vector<4x128xf32> -> vector<4x128xf32>
    %c0_15 = arith.constant 0 : index
    %32 = memref.load %arg6[%c0_15] : memref<1xf32, #tpu.memory_space<smem>>
    %cst_16 = arith.constant 0.000000e+00 : f32
    %33 = vector.broadcast %cst_16 : f32 to vector<4x128xf32>
    %34 = arith.cmpf oge, %31, %33 : vector<4x128xf32>
    %35 = vector.broadcast %32 : f32 to vector<4x128xf32>
    %36 = arith.mulf %35, %31 : vector<4x128xf32>
    %37 = arith.select %34, %31, %36 : vector<4x128xi1>, vector<4x128xf32>
    %c0_17 = arith.constant 0 : index
    %c0_18 = arith.constant 0 : index
    %38 = vector.load %arg4[%c0_17, %c0_18] : memref<128x128xf32, #tpu.memory_space<vmem>>, vector<128x128xf32>
    %cst_19 = arith.constant dense<0.000000e+00> : vector<4x128xf32>
    %39 = tpu.matmul %37, %38, %cst_19 {dimension_numbers = #tpu.dot_dimension_numbers<[1], [0], [0], [1], [0, 0, 1, 1], [], []>} : vector<4x128xf32>, vector<128x128xf32>, vector<4x128xf32> -> vector<4x128xf32>
    %40 = vector.extract_strided_slice %39 {offsets = [0, 0], sizes = [2, 128], strides = [1, 1]} : vector<4x128xf32> to vector<2x128xf32>
    %41 = vector.extract_strided_slice %39 {offsets = [2, 0], sizes = [2, 128], strides = [1, 1]} : vector<4x128xf32> to vector<2x128xf32>
    %42 = arith.addf %40, %41 : vector<2x128xf32>
    %43 = arith.negf %42 : vector<2x128xf32>
    %44 = math.exp %43 : vector<2x128xf32>
    %cst_20 = arith.constant 1.000000e+00 : f32
    %45 = vector.broadcast %cst_20 : f32 to vector<2x128xf32>
    %46 = arith.addf %45, %44 : vector<2x128xf32>
    %47 = arith.divf %45, %46 : vector<2x128xf32>
    %48 = vector.shape_cast %47 : vector<2x128xf32> to vector<2x1x128xf32>
    %49 = vector.broadcast %48 : vector<2x1x128xf32> to vector<2x256x128xf32>
    %50 = arith.mulf %24, %49 : vector<2x256x128xf32>
    %51 = tpu.iota {dimensions = array<i32: 2>} : vector<1x1x128xi32>
    %cst_21 = arith.constant dense<0.000000e+00> : vector<2x256xf32>
    %52 = vector.multi_reduction <add>, %50, %cst_21 [2] : vector<2x256x128xf32> to vector<2x256xf32>
    %cst_22 = arith.constant 3.125000e-02 : f32
    %53 = vector.broadcast %cst_22 : f32 to vector<2x256xf32>
    %54 = arith.mulf %52, %53 : vector<2x256xf32>
    %c32_i32 = arith.constant 32 : i32
    %55 = vector.broadcast %c32_i32 : i32 to vector<1x1x128xi32>
    %56 = arith.cmpi slt, %51, %55 : vector<1x1x128xi32>
    %cst_23 = arith.constant -1.000000e+30 : f32
    %57 = vector.shape_cast %56 : vector<1x1x128xi1> to vector<1x1x128xi1>
    %58 = vector.broadcast %57 : vector<1x1x128xi1> to vector<2x256x128xi1>
    %59 = vector.broadcast %cst_23 : f32 to vector<2x256x128xf32>
    %60 = arith.select %58, %50, %59 : vector<2x256x128xi1>, vector<2x256x128xf32>
    %cst_24 = arith.constant dense<0xFF800000> : vector<2x256xf32>
    %61 = vector.multi_reduction <maximumf>, %60, %cst_24 [2] : vector<2x256x128xf32> to vector<2x256xf32>
    %62 = tpu.concatenate %54, %61 in 1 : vector<2x256xf32>, vector<2x256xf32> -> vector<2x512xf32>
    %c0_25 = arith.constant 0 : index
    %c0_26 = arith.constant 0 : index
    %63 = vector.load %arg5[%c0_25, %c0_26] : memref<512x256xf32, #tpu.memory_space<vmem>>, vector<512x256xf32>
    %cst_27 = arith.constant dense<0.000000e+00> : vector<2x256xf32>
    %64 = tpu.matmul %62, %63, %cst_27 {dimension_numbers = #tpu.dot_dimension_numbers<[1], [0], [0], [1], [0, 0, 1, 1], [], []>} : vector<2x512xf32>, vector<512x256xf32>, vector<2x256xf32> -> vector<2x256xf32>
    %65 = arith.negf %64 : vector<2x256xf32>
    %66 = math.exp %65 : vector<2x256xf32>
    %cst_28 = arith.constant 1.000000e+00 : f32
    %67 = vector.broadcast %cst_28 : f32 to vector<2x256xf32>
    %68 = arith.addf %67, %66 : vector<2x256xf32>
    %69 = arith.divf %67, %68 : vector<2x256xf32>
    %70 = vector.shape_cast %69 : vector<2x256xf32> to vector<2x256x1xf32>
    %71 = vector.broadcast %70 : vector<2x256x1xf32> to vector<2x256x128xf32>
    %72 = arith.mulf %50, %71 : vector<2x256x128xf32>
    %c0_29 = arith.constant 0 : index
    %73 = memref.load %arg7[%c0_29] : memref<1xf32, #tpu.memory_space<smem>>
    %cst_30 = arith.constant 0.000000e+00 : f32
    %74 = vector.broadcast %cst_30 : f32 to vector<2x256x128xf32>
    %75 = arith.cmpf oge, %72, %74 : vector<2x256x128xf32>
    %76 = vector.broadcast %73 : f32 to vector<2x256x128xf32>
    %77 = arith.mulf %76, %72 : vector<2x256x128xf32>
    %78 = arith.select %75, %72, %77 : vector<2x256x128xi1>, vector<2x256x128xf32>
    %79 = vector.shape_cast %78 : vector<2x256x128xf32> to vector<512x128xf32>
    %c0_31 = arith.constant 0 : index
    %c0_32 = arith.constant 0 : index
    %80 = vector.load %arg8[%c0_31, %c0_32] : memref<512x128xf32, #tpu.memory_space<vmem>>, vector<512x128xf32>
    tpu.vector_store %arg8[%c0_31, %c0_32], %79 {strides = array<i32>} : memref<512x128xf32, #tpu.memory_space<vmem>>, vector<512x128xf32>,
    return
  }
}

</mosaic_0001>

<llo_original>
// kernel: _lambda_.2
$region0: #{_lambda_.2}
  #allocation0 [shape = 'u32[]', space=smem, size = 0x4, offset = 0x4, fixed_abs, tag = 'smem constant byte address 0x4 - core index']
  #allocation1 [shape = 'u32[144,128]{1,0:T(1,128)}', space=vmem, size = 0x12000, scoped, tag = 'internal scratch']
  %s0 = inlined_call_operand.vmem [shape: bf16[512,36], index: 0, kind: input, shape index: {}]
  %s1 = inlined_call_operand.vmem [shape: bf16[36,128], index: 1, kind: input, shape index: {}]
  %s2 = inlined_call_operand.vmem [shape: f32[1,128], index: 2, kind: input, shape index: {}]
  %s3 = inlined_call_operand.vmem [shape: f32[512,128], index: 3, kind: output, shape index: {}]
  %s4 = sld [smem:[#allocation0]]
  $region45: #{_lambda_.2} parent=0
    _
  %s6 = ssub.s32 1, %s4
  %s7 = scalar_select 0, %s6, %s4
  loop: start=0, step=1, limit=4
  $region2: #{_lambda_.2} parent=0 // loop_pre_header
    _
  $region3: #{_lambda_.2} parent=0 // loop_header
    %s9 = sphi 0, %s13
    %p10 = scmp.ge.s32.totalorder %s9, 4
    %s19 = sphi 0, %s21
    %s22 = sphi 0, %s19
    %s23 = sphi 0, %s22
    %s39 = sphi 0, %s23
    %s43 = sphi 0, %s43
    %s45 = sphi 0, %s43
    %s46 = sphi 0, %s45
    %s60 = sphi 0, %s46
    %s64 = sphi 0, %s64
    %s66 = sphi 0, %s64
    %s67 = sphi 0, %s66
    %s81 = sphi 0, %s67
    %s87 = sphi 0, %s89
    %s90 = sphi 0, %s87
    %s91 = sphi 0, %s90
    %s107 = sphi 0, %s91
  $region4: #{_lambda_.2} parent=0 // loop_header_branch
    %12 = sbr.rel (%p10) target = $region8
  $region5: #{_lambda_.2} parent=0 // loop_body
    %s14 = ssub.s32 %s9, 1
    %s15 = ssub.s32 %s9, 2
    %s16 = sadd.s32 %s9, 1
    %s17 = ssub.s32 %s9, %s16
    %p18 = scmp.eq.s32.totalorder %s17, 0
    %s20 = sadd.s32 %s19, 1
    %s21 = scalar_select %p18, %s19, %s20
    %p24 = pneg %p18
    %p25 = scmp.eq.s32.totalorder %s9, 1
    %p26 = por %p24, %p25
    %p27 = scmp.ne.s32.totalorder %s19, %s22
    %p28 = scmp.eq.s32.totalorder %s9, 0
    %p29 = por %p27, %p28
    %p30 = scmp.ne.s32.totalorder %s19, %s22
    %p31 = scmp.eq.s32.totalorder %s14, 1
    %p32 = por %p30, %p31
    %p33 = scmp.ne.s32.totalorder %s22, %s23
    %p34 = scmp.eq.s32.totalorder %s14, 0
    %p35 = por %p33, %p34
    %p36 = scmp.ne.s32.totalorder %s22, %s23
    %p37 = scmp.eq.s32.totalorder %s15, 1
    %p38 = por %p36, %p37
    %p40 = scmp.ne.s32.totalorder %s23, %s39
    %p41 = scmp.eq.s32.totalorder %s15, 0
    %p42 = por %p40, %p41
    %s44 = sadd.s32 %s43, 1
    %p47 = scmp.eq.s32.totalorder %s9, 1
    %p48 = scmp.ne.s32.totalorder %s43, %s45
    %p49 = scmp.eq.s32.totalorder %s9, 0
    %p50 = por %p48, %p49
    %p51 = scmp.ne.s32.totalorder %s43, %s45
    %p52 = scmp.eq.s32.totalorder %s14, 1
    %p53 = por %p51, %p52
    %p54 = scmp.ne.s32.totalorder %s45, %s46
    %p55 = scmp.eq.s32.totalorder %s14, 0
    %p56 = por %p54, %p55
    %p57 = scmp.ne.s32.totalorder %s45, %s46
    %p58 = scmp.eq.s32.totalorder %s15, 1
    %p59 = por %p57, %p58
    %p61 = scmp.ne.s32.totalorder %s46, %s60
    %p62 = scmp.eq.s32.totalorder %s15, 0
    %p63 = por %p61, %p62
    %s65 = sadd.s32 %s64, 1
    %p68 = scmp.eq.s32.totalorder %s9, 1
    %p69 = scmp.ne.s32.totalorder %s64, %s66
    %p70 = scmp.eq.s32.totalorder %s9, 0
    %p71 = por %p69, %p70
    %p72 = scmp.ne.s32.totalorder %s64, %s66
    %p73 = scmp.eq.s32.totalorder %s14, 1
    %p74 = por %p72, %p73
    %p75 = scmp.ne.s32.totalorder %s66, %s67
    %p76 = scmp.eq.s32.totalorder %s14, 0
    %p77 = por %p75, %p76
    %p78 = scmp.ne.s32.totalorder %s66, %s67
    %p79 = scmp.eq.s32.totalorder %s15, 1
    %p80 = por %p78, %p79
    %p82 = scmp.ne.s32.totalorder %s67, %s81
    %p83 = scmp.eq.s32.totalorder %s15, 0
    %p84 = por %p82, %p83
    %s85 = ssub.s32 %s9, %s16
    %p86 = scmp.eq.s32.totalorder %s85, 0
    %s88 = sadd.s32 %s87, 1
    %s89 = scalar_select %p86, %s87, %s88
    %p92 = pneg %p86
    %p93 = scmp.eq.s32.totalorder %s9, 1
    %p94 = por %p92, %p93
    %p95 = scmp.ne.s32.totalorder %s87, %s90
    %p96 = scmp.eq.s32.totalorder %s9, 0
    %p97 = por %p95, %p96
    %p98 = scmp.ne.s32.totalorder %s87, %s90
    %p99 = scmp.eq.s32.totalorder %s14, 1
    %p100 = por %p98, %p99
    %p101 = scmp.ne.s32.totalorder %s90, %s91
    %p102 = scmp.eq.s32.totalorder %s14, 0
    %p103 = por %p101, %p102
    %p104 = scmp.ne.s32.totalorder %s90, %s91
    %p105 = scmp.eq.s32.totalorder %s15, 1
    %p106 = por %p104, %p105
    %p108 = scmp.ne.s32.totalorder %s91, %s107
    %p109 = scmp.eq.s32.totalorder %s15, 0
    %p110 = por %p108, %p109
    %p111 = scmp.le.s32.totalorder 1, %s9
    %p112 = scmp.lt.s32.totalorder %s9, 3
    %p113 = pnand %p111, %p112
    %p114 = pneg %p113
    // Predicated region
    $region9: #{_lambda_.2} parent=5 // pred_check
      _
    $region10: #{_lambda_.2} parent=5 // pred_check_branch
      %116 = sbr.rel (%p113) target = $region12
    $region11: #{_lambda_.2} parent=5 // pred_region
      %s117 = ssub.s32 %s9, 1
      // Predicated region
      $region13: #{_lambda_.2} parent=11 // pred_check
        %p118 = pneg %p56
      $region14: #{_lambda_.2} parent=11 // pred_check_branch
        %120 = sbr.rel (%p118) target = $region16
      $region15: #{_lambda_.2} parent=11 // pred_region
        _
      $region16: #{_lambda_.2} parent=11 // pred_fallthru
        _
      // Predicated region
      $region17: #{_lambda_.2} parent=11 // pred_check
        %p121 = pneg %p77
      $region18: #{_lambda_.2} parent=11 // pred_check_branch
        %123 = sbr.rel (%p121) target = $region20
      $region19: #{_lambda_.2} parent=11 // pred_region
        _
      $region20: #{_lambda_.2} parent=11 // pred_fallthru
        _
    $region12: #{_lambda_.2} parent=5 // pred_fallthru
      _
    %p124 = scmp.lt.s32.totalorder %s9, 2
    // Predicated region
    $region21: #{_lambda_.2} parent=5 // pred_check
      %p125 = pneg %p124
    $region22: #{_lambda_.2} parent=5 // pred_check_branch
      %127 = sbr.rel (%p125) target = $region24
    $region23: #{_lambda_.2} parent=5 // pred_region
      // Predicated region
      $region25: #{_lambda_.2} parent=23 // pred_check
        %p128 = pneg %p29
      $region26: #{_lambda_.2} parent=23 // pred_check_branch
        %130 = sbr.rel (%p128) target = $region28
      $region27: #{_lambda_.2} parent=23 // pred_region
        %s131 = smul.u32 32, %s9
        %p132 = scmp.lt.s32.totalorder %s131, 63
        %s133 = scalar_select %p132, %s131, 63
        %s134 = smul.addr %s133, 4
        %s135 = scalar_lea.vmem %s0, %s134
        %s136 = smul.u32 32, %s9
      $region28: #{_lambda_.2} parent=23 // pred_fallthru
        _
    $region24: #{_lambda_.2} parent=5 // pred_fallthru
      _
    %p137 = scmp.le.s32.totalorder 1, %s9
    %p138 = scmp.lt.s32.totalorder %s9, 3
    %p139 = pnand %p137, %p138
    %p140 = pneg %p139
    // Predicated region
    $region29: #{_lambda_.2} parent=5 // pred_check
      _
    $region30: #{_lambda_.2} parent=5 // pred_check_branch
      %142 = sbr.rel (%p139) target = $region32
    $region31: #{_lambda_.2} parent=5 // pred_region
      %s143 = ssub.s32 %s9, 1
      %s144 = smul.u32 32, %s14
      %p145 = scmp.lt.s32.totalorder %s144, 63
      %s146 = scalar_select %p145, %s144, 63
      %s147 = smul.addr %s146, 4
      %s148 = scalar_lea.vmem %s0, %s147
      %p149 = pneg %p35
      %p150 = pneg %p32
      %p151 = pneg %p56
      %p152 = pneg %p53
      %p153 = pneg %p77
      %p154 = pneg %p74
      %p155 = pneg %p103
      %p156 = pneg %p100
      %s157 = smul.u32 32, %s14
      %p158 = scmp.lt.s32.totalorder %s157, 63
      %s159 = scalar_select %p158, %s157, 63
      %s160 = smul.addr %s159, 8
      %s161 = scalar_lea.vmem %s3, %s160
      %s162 = smul.u32 32, %s14
      %p163 = scmp.lt.s32.totalorder %s162, 63
      %s164 = scalar_select %p163, %s162, 63
      %s165 = smul.addr %s164, 4
      %s166 = scalar_lea.vmem %s0, %s165
      %s167 = smul.u32 32, %s14
      %s168 = smul.u32 32, %s14
      %p169 = scmp.lt.s32.totalorder %s168, 63
      %s170 = scalar_select %p169, %s168, 63
      %s171 = smul.addr %s170, 8
      %s172 = scalar_lea.vmem %s3, %s171
      %s173 = smul.u32 32, %s14
      %v175 = vld [vmem:[%s166] sm:$0xf]
      %v176 = vld [vmem:[%s166 + $0x4] sm:$0xf]
      %v177 = vld [vmem:[%s166 + $0x8] sm:$0xf]
      %v178 = vld [vmem:[%s166 + $0xc] sm:$0xf]
      %v179 = vld [vmem:[%s166 + $0x10] sm:$0xf]
      %v180 = vld [vmem:[%s166 + $0x14] sm:$0xf]
      %v181 = vld [vmem:[%s166 + $0x18] sm:$0xf]
      %v182 = vld [vmem:[%s166 + $0x1c] sm:$0xf]
      %v183 = vld [vmem:[%s166 + $0x20] sm:$0xf]
      %v184 = vld [vmem:[%s166 + $0x24] sm:$0xf]
      %v185 = vld [vmem:[%s166 + $0x28] sm:$0xf]
      %v186 = vld [vmem:[%s166 + $0x2c] sm:$0xf]
      %v187 = vld [vmem:[%s166 + $0x30] sm:$0xf]
      %v188 = vld [vmem:[%s166 + $0x34] sm:$0xf]
      %v189 = vld [vmem:[%s166 + $0x38] sm:$0xf]
      %v190 = vld [vmem:[%s166 + $0x3c] sm:$0xf]
      %v191 = vld [vmem:[%s166 + $0x40] sm:$0xf]
      %v192 = vld [vmem:[%s166 + $0x44] sm:$0xf]
      %v193 = vld [vmem:[%s166 + $0x48] sm:$0xf]
      %v194 = vld [vmem:[%s166 + $0x4c] sm:$0xf]
      %v195 = vld [vmem:[%s166 + $0x50] sm:$0xf]
      %v196 = vld [vmem:[%s166 + $0x54] sm:$0xf]
      %v197 = vld [vmem:[%s166 + $0x58] sm:$0xf]
      %v198 = vld [vmem:[%s166 + $0x5c] sm:$0xf]
      %v199 = vld [vmem:[%s166 + $0x60] sm:$0xf]
      %v200 = vld [vmem:[%s166 + $0x64] sm:$0xf]
      %v201 = vld [vmem:[%s166 + $0x68] sm:$0xf]
      %v202 = vld [vmem:[%s166 + $0x6c] sm:$0xf]
      %v203 = vld [vmem:[%s166 + $0x70] sm:$0xf]
      %v204 = vld [vmem:[%s166 + $0x74] sm:$0xf]
      %v205 = vld [vmem:[%s166 + $0x78] sm:$0xf]
      %v206 = vld [vmem:[%s166 + $0x7c] sm:$0xf]
      %v207 = vld [vmem:[%s1] sm:$0xf]
      %v208 = vld [vmem:[%s1 + $0x4] sm:$0xf]
      %v209 = vld [vmem:[%s1 + $0x8] sm:$0xf]
      %v210 = vld [vmem:[%s1 + $0xc] sm:$0xf]
      %v211 = vld [vmem:[%s1 + $0x10] sm:$0x3]
      %v212 = vld [vmem:[%s2] sm:$0x1]
      %v214 = vlaneseq
      %v215 = vshrl.u32 %v214, 7
      %v216 = vsub.s32 0, %v215
      %v217 = vrot.slane %v212, %v216
      %v251 = vunpack.c.l.b16 %v175
      %v252 = vunpack.c.l.b16 %v176
      %v253 = vunpack.c.l.b16 %v177
      %v254 = vunpack.c.l.b16 %v178
      %v255 = vunpack.c.l.b16 %v179
      %v256 = vunpack.c.l.b16 %v180
      %v257 = vunpack.c.l.b16 %v181
      %v258 = vunpack.c.l.b16 %v182
      %v259 = vunpack.c.l.b16 %v183
      %v260 = vunpack.c.l.b16 %v184
      %v261 = vunpack.c.l.b16 %v185
      %v262 = vunpack.c.l.b16 %v186
      %v263 = vunpack.c.l.b16 %v187
      %v264 = vunpack.c.l.b16 %v188
      %v265 = vunpack.c.l.b16 %v189
      %v266 = vunpack.c.l.b16 %v190
      %v267 = vunpack.c.l.b16 %v191
      %v268 = vunpack.c.l.b16 %v192
      %v269 = vunpack.c.l.b16 %v193
      %v270 = vunpack.c.l.b16 %v194
      %v271 = vunpack.c.l.b16 %v195
      %v272 = vunpack.c.l.b16 %v196
      %v273 = vunpack.c.l.b16 %v197
      %v274 = vunpack.c.l.b16 %v198
      %v275 = vunpack.c.l.b16 %v199
      %v276 = vunpack.c.l.b16 %v200
      %v277 = vunpack.c.l.b16 %v201
      %v278 = vunpack.c.l.b16 %v202
      %v279 = vunpack.c.l.b16 %v203
      %v280 = vunpack.c.l.b16 %v204
      %v281 = vunpack.c.l.b16 %v205
      %v282 = vunpack.c.l.b16 %v206
      %v283 = vpack.c.b16 %v252, %v251
      %v284 = vpack.c.b16 %v254, %v253
      %v285 = vpack.c.b16 %v256, %v255
      %v286 = vpack.c.b16 %v258, %v257
      %v287 = vpack.c.b16 %v260, %v259
      %v288 = vpack.c.b16 %v262, %v261
      %v289 = vpack.c.b16 %v264, %v263
      %v290 = vpack.c.b16 %v266, %v265
      %v291 = vpack.c.b16 %v268, %v267
      %v292 = vpack.c.b16 %v270, %v269
      %v293 = vpack.c.b16 %v272, %v271
      %v294 = vpack.c.b16 %v274, %v273
      %v295 = vpack.c.b16 %v276, %v275
      %v296 = vpack.c.b16 %v278, %v277
      %v297 = vpack.c.b16 %v280, %v279
      %v298 = vpack.c.b16 %v282, %v281
      %v304 = vunpack.c.l.b16 %v207
      %v305 = vunpack.c.l.b16 %v208
      %v306 = vunpack.c.l.b16 %v209
      %v307 = vunpack.c.l.b16 %v210
      %v308 = vunpack.c.l.b16 %v211
      %v309 = vpack.c.b16 %v305, %v304
      %v310 = vpack.c.b16 %v307, %v306
      %v311 = vpack.c.b16 %v308, %v308
      %vm314 = vcmask 293888
      %v316 = vsel %vm314, %v283, 0
      %v319 = vsel %vm314, %v284, 0
      %v322 = vsel %vm314, %v285, 0
      %v325 = vsel %vm314, %v286, 0
      %v328 = vsel %vm314, %v287, 0
      %v331 = vsel %vm314, %v288, 0
      %v334 = vsel %vm314, %v289, 0
      %v337 = vsel %vm314, %v290, 0
      %v340 = vsel %vm314, %v291, 0
      %v343 = vsel %vm314, %v292, 0
      %v346 = vsel %vm314, %v293, 0
      %v349 = vsel %vm314, %v294, 0
      %v352 = vsel %vm314, %v295, 0
      %v355 = vsel %vm314, %v296, 0
      %v358 = vsel %vm314, %v297, 0
      %v361 = vsel %vm314, %v298, 0
      %vm363 = vcmask 1041408
      %v365 = vsel %vm363, %v311, 0
      %367 = vmatprep.subr.bf16.mxu0 0
      %368 = vmatpush1.bf16.msra.mxu0 0
      %369 = vmatprep.subr.bf16.mxu0 0
      %370 = vmatpush1.bf16.msra.mxu0 0
      %371 = vmatprep.subr.bf16.mxu0 0
      %372 = vmatpush1.bf16.msra.mxu0 0
      %373 = vmatprep.subr.bf16.mxu0 0
      %374 = vmatpush1.bf16.msra.mxu0 0
      %375 = vmatprep.subr.bf16.mxu0 0
      %376 = vmatpush1.bf16.msra.mxu0 0
      %377 = vmatprep.subr.bf16.mxu0 0
      %378 = vmatpush1.bf16.msra.mxu0 %v365
      %379 = vmatprep.subr.bf16.mxu0 0
      %380 = vmatpush1.bf16.msra.mxu0 %v310
      %381 = vmatprep.subr.bf16.mxu0 0
      %382 = vmatpush1.bf16.msra.mxu0 %v309
      %383 = vmatprep.subr.bf16.mxu0 0
      %384 = vmatpush2.bf16.msra.mxu0 0
      %385 = vmatprep.subr.bf16.mxu0 0
      %386 = vmatpush2.bf16.msra.mxu0 0
      %387 = vmatprep.subr.bf16.mxu0 0
      %388 = vmatpush2.bf16.msra.mxu0 0
      %389 = vmatprep.subr.bf16.mxu0 0
      %390 = vmatpush2.bf16.msra.mxu0 0
      %391 = vmatprep.subr.bf16.mxu0 0
      %392 = vmatpush2.bf16.msra.mxu0 0
      %393 = vmatprep.subr.bf16.mxu0 0
      %394 = vmatpush2.bf16.msra.mxu0 0
      %395 = vmatprep.subr.bf16.mxu0 0
      %396 = vmatpush2.bf16.msra.mxu0 0
      %397 = vmatprep.subr.bf16.mxu0 0
      %398 = vmatpush2.bf16.msra.mxu0 0
      %399 = vmatprep.mubr.bf16.mxu0 0
      %400 = vmatmul.mubr.bf16.gmra.mxu0 %v316
      %v401 = vpop.f32.mrf.mxu0
      %v402 = vadd.f32 %v217, %v401
      %v403 = vpop.f32.mrf.mxu0
      %v404 = vpop.f32.mrf.mxu0
      %v405 = vadd.f32 %v217, %v404
      %v406 = vpop.f32.mrf.mxu0
      %407 = vmatprep.mubr.bf16.mxu0 0
      %408 = vmatmul.mubr.bf16.gmra.mxu0 %v319
      %v409 = vpop.f32.mrf.mxu0
      %v410 = vadd.f32 %v217, %v409
      %v411 = vpop.f32.mrf.mxu0
      %v412 = vpop.f32.mrf.mxu0
      %v413 = vadd.f32 %v217, %v412
      %v414 = vpop.f32.mrf.mxu0
      %415 = vmatprep.mubr.bf16.mxu0 0
      %416 = vmatmul.mubr.bf16.gmra.mxu0 %v322
      %v417 = vpop.f32.mrf.mxu0
      %v418 = vadd.f32 %v217, %v417
      %v419 = vpop.f32.mrf.mxu0
      %v420 = vpop.f32.mrf.mxu0
      %v421 = vadd.f32 %v217, %v420
      %v422 = vpop.f32.mrf.mxu0
      %423 = vmatprep.mubr.bf16.mxu0 0
      %424 = vmatmul.mubr.bf16.gmra.mxu0 %v325
      %v425 = vpop.f32.mrf.mxu0
      %v426 = vadd.f32 %v217, %v425
      %v427 = vpop.f32.mrf.mxu0
      %v428 = vpop.f32.mrf.mxu0
      %v429 = vadd.f32 %v217, %v428
      %v430 = vpop.f32.mrf.mxu0
      %431 = vmatprep.mubr.bf16.mxu0 0
      %432 = vmatmul.mubr.bf16.gmra.mxu0 %v328
      %v433 = vpop.f32.mrf.mxu0
      %v434 = vadd.f32 %v217, %v433
      %v435 = vpop.f32.mrf.mxu0
      %v436 = vpop.f32.mrf.mxu0
      %v437 = vadd.f32 %v217, %v436
      %v438 = vpop.f32.mrf.mxu0
      %439 = vmatprep.mubr.bf16.mxu0 0
      %440 = vmatmul.mubr.bf16.gmra.mxu0 %v331
      %v441 = vpop.f32.mrf.mxu0
      %v442 = vadd.f32 %v217, %v441
      %v443 = vpop.f32.mrf.mxu0
      %v444 = vpop.f32.mrf.mxu0
      %v445 = vadd.f32 %v217, %v444
      %v446 = vpop.f32.mrf.mxu0
      %447 = vmatprep.mubr.bf16.mxu0 0
      %448 = vmatmul.mubr.bf16.gmra.mxu0 %v334
      %v449 = vpop.f32.mrf.mxu0
      %v450 = vadd.f32 %v217, %v449
      %v451 = vpop.f32.mrf.mxu0
      %v452 = vpop.f32.mrf.mxu0
      %v453 = vadd.f32 %v217, %v452
      %v454 = vpop.f32.mrf.mxu0
      %455 = vmatprep.mubr.bf16.mxu0 0
      %456 = vmatmul.mubr.bf16.gmra.mxu0 %v337
      %v457 = vpop.f32.mrf.mxu0
      %v458 = vadd.f32 %v217, %v457
      %v459 = vpop.f32.mrf.mxu0
      %v460 = vpop.f32.mrf.mxu0
      %v461 = vadd.f32 %v217, %v460
      %v462 = vpop.f32.mrf.mxu0
      %463 = vmatprep.mubr.bf16.mxu0 0
      %464 = vmatmul.mubr.bf16.gmra.mxu0 %v340
      %v465 = vpop.f32.mrf.mxu0
      %v466 = vadd.f32 %v217, %v465
      %v467 = vpop.f32.mrf.mxu0
      %v468 = vpop.f32.mrf.mxu0
      %v469 = vadd.f32 %v217, %v468
      %v470 = vpop.f32.mrf.mxu0
      %471 = vmatprep.mubr.bf16.mxu0 0
      %472 = vmatmul.mubr.bf16.gmra.mxu0 %v343
      %v473 = vpop.f32.mrf.mxu0
      %v474 = vadd.f32 %v217, %v473
      %v475 = vpop.f32.mrf.mxu0
      %v476 = vpop.f32.mrf.mxu0
      %v477 = vadd.f32 %v217, %v476
      %v478 = vpop.f32.mrf.mxu0
      %479 = vmatprep.mubr.bf16.mxu0 0
      %480 = vmatmul.mubr.bf16.gmra.mxu0 %v346
      %v481 = vpop.f32.mrf.mxu0
      %v482 = vadd.f32 %v217, %v481
      %v483 = vpop.f32.mrf.mxu0
      %v484 = vpop.f32.mrf.mxu0
      %v485 = vadd.f32 %v217, %v484
      %v486 = vpop.f32.mrf.mxu0
      %487 = vmatprep.mubr.bf16.mxu0 0
      %488 = vmatmul.mubr.bf16.gmra.mxu0 %v349
      %v489 = vpop.f32.mrf.mxu0
      %v490 = vadd.f32 %v217, %v489
      %v491 = vpop.f32.mrf.mxu0
      %v492 = vpop.f32.mrf.mxu0
      %v493 = vadd.f32 %v217, %v492
      %v494 = vpop.f32.mrf.mxu0
      %495 = vmatprep.mubr.bf16.mxu0 0
      %496 = vmatmul.mubr.bf16.gmra.mxu0 %v352
      %v497 = vpop.f32.mrf.mxu0
      %v498 = vadd.f32 %v217, %v497
      %v499 = vpop.f32.mrf.mxu0
      %v500 = vpop.f32.mrf.mxu0
      %v501 = vadd.f32 %v217, %v500
      %v502 = vpop.f32.mrf.mxu0
      %503 = vmatprep.mubr.bf16.mxu0 0
      %504 = vmatmul.mubr.bf16.gmra.mxu0 %v355
      %v505 = vpop.f32.mrf.mxu0
      %v506 = vadd.f32 %v217, %v505
      %v507 = vpop.f32.mrf.mxu0
      %v508 = vpop.f32.mrf.mxu0
      %v509 = vadd.f32 %v217, %v508
      %v510 = vpop.f32.mrf.mxu0
      %511 = vmatprep.mubr.bf16.mxu0 0
      %512 = vmatmul.mubr.bf16.gmra.mxu0 %v358
      %v513 = vpop.f32.mrf.mxu0
      %v514 = vadd.f32 %v217, %v513
      %v515 = vpop.f32.mrf.mxu0
      %v516 = vpop.f32.mrf.mxu0
      %v517 = vadd.f32 %v217, %v516
      %v518 = vpop.f32.mrf.mxu0
      %519 = vmatprep.mubr.bf16.mxu0 0
      %520 = vmatmul.mubr.bf16.gmra.mxu0 %v361
      %v521 = vpop.f32.mrf.mxu0
      %v522 = vadd.f32 %v217, %v521
      %v523 = vpop.f32.mrf.mxu0
      %v524 = vpop.f32.mrf.mxu0
      %v525 = vadd.f32 %v217, %v524
      %v526 = vpop.f32.mrf.mxu0
      %527 = vdwg.mxu0
      %528 = vst [vmem:[%s172] sm:$0xff] %v402
      %529 = vst [vmem:[%s172 + $0x8] sm:$0xff] %v405
      %530 = vst [vmem:[%s172 + $0x10] sm:$0xff] %v410
      %531 = vst [vmem:[%s172 + $0x18] sm:$0xff] %v413
      %532 = vst [vmem:[%s172 + $0x20] sm:$0xff] %v418
      %533 = vst [vmem:[%s172 + $0x28] sm:$0xff] %v421
      %534 = vst [vmem:[%s172 + $0x30] sm:$0xff] %v426
      %535 = vst [vmem:[%s172 + $0x38] sm:$0xff] %v429
      %536 = vst [vmem:[%s172 + $0x40] sm:$0xff] %v434
      %537 = vst [vmem:[%s172 + $0x48] sm:$0xff] %v437
      %538 = vst [vmem:[%s172 + $0x50] sm:$0xff] %v442
      %539 = vst [vmem:[%s172 + $0x58] sm:$0xff] %v445
      %540 = vst [vmem:[%s172 + $0x60] sm:$0xff] %v450
      %541 = vst [vmem:[%s172 + $0x68] sm:$0xff] %v453
      %542 = vst [vmem:[%s172 + $0x70] sm:$0xff] %v458
      %543 = vst [vmem:[%s172 + $0x78] sm:$0xff] %v461
      %544 = vst [vmem:[%s172 + $0x80] sm:$0xff] %v466
      %545 = vst [vmem:[%s172 + $0x88] sm:$0xff] %v469
      %546 = vst [vmem:[%s172 + $0x90] sm:$0xff] %v474
      %547 = vst [vmem:[%s172 + $0x98] sm:$0xff] %v477
      %548 = vst [vmem:[%s172 + $0xa0] sm:$0xff] %v482
      %549 = vst [vmem:[%s172 + $0xa8] sm:$0xff] %v485
      %550 = vst [vmem:[%s172 + $0xb0] sm:$0xff] %v490
      %551 = vst [vmem:[%s172 + $0xb8] sm:$0xff] %v493
      %552 = vst [vmem:[%s172 + $0xc0] sm:$0xff] %v498
      %553 = vst [vmem:[%s172 + $0xc8] sm:$0xff] %v501
      %554 = vst [vmem:[%s172 + $0xd0] sm:$0xff] %v506
      %555 = vst [vmem:[%s172 + $0xd8] sm:$0xff] %v509
      %556 = vst [vmem:[%s172 + $0xe0] sm:$0xff] %v514
      %557 = vst [vmem:[%s172 + $0xe8] sm:$0xff] %v517
      %558 = vst [vmem:[%s172 + $0xf0] sm:$0xff] %v522
      %559 = vst [vmem:[%s172 + $0xf8] sm:$0xff] %v525
      %s560 = smul.u32 32, %s14
      %p561 = scmp.lt.s32.totalorder %s560, 63
      %s562 = scalar_select %p561, %s560, 63
      %s563 = smul.addr %s562, 8
      %s564 = scalar_lea.vmem %s3, %s563
      // Predicated region
      $region33: #{_lambda_.2} parent=31 // pred_check
        %p565 = pneg %p100
      $region34: #{_lambda_.2} parent=31 // pred_check_branch
        %567 = sbr.rel (%p565) target = $region36
      $region35: #{_lambda_.2} parent=31 // pred_region
        %s568 = smul.u32 32, %s14
      $region36: #{_lambda_.2} parent=31 // pred_fallthru
        _
    $region32: #{_lambda_.2} parent=5 // pred_fallthru
      _
    %p569 = scmp.le.s32.totalorder 2, %s9
    // Predicated region
    $region37: #{_lambda_.2} parent=5 // pred_check
      %p570 = pneg %p569
    $region38: #{_lambda_.2} parent=5 // pred_check_branch
      %572 = sbr.rel (%p570) target = $region40
    $region39: #{_lambda_.2} parent=5 // pred_region
      %s573 = ssub.s32 %s9, 2
      // Predicated region
      $region41: #{_lambda_.2} parent=39 // pred_check
        %p574 = pneg %p106
      $region42: #{_lambda_.2} parent=39 // pred_check_branch
        %576 = sbr.rel (%p574) target = $region44
      $region43: #{_lambda_.2} parent=39 // pred_region
        %s577 = smul.u32 32, %s15
        %p578 = scmp.lt.s32.totalorder %s577, 63
        %s579 = scalar_select %p578, %s577, 63
        %s580 = smul.addr %s579, 8
        %s581 = scalar_lea.vmem %s3, %s580
      $region44: #{_lambda_.2} parent=39 // pred_fallthru
        _
    $region40: #{_lambda_.2} parent=5 // pred_fallthru
      _
  $region6: #{_lambda_.2} parent=0 // loop_footer
    %s13 = sadd.s32 1, %s9
  $region7: #{_lambda_.2} parent=0 // loop_footer_branch
    %8 = sbr.rel target = $region3
  $region8: #{_lambda_.2} parent=0 // loop_exit
    _

// kernel: _lambda_.3
$region0: #{_lambda_.3}
  #allocation0 [shape = 'u32[]', space=smem, size = 0x4, offset = 0x4, fixed_abs, tag = 'smem constant byte address 0x4 - core index']
  #allocation1 [shape = 'u32[144,128]{1,0:T(1,128)}', space=vmem, size = 0x12000, scoped, tag = 'internal scratch']
  #allocation2 [shape = 'f32[1]{0:T(128)S(6)}', space=smem, size = 0x200, scoped, tag = 'scoped memory for _lambda_.3']
  #allocation3 [shape = 'f32[1]{0:T(128)S(6)}', space=smem, size = 0x200, scoped, tag = 'scoped memory for _lambda_.3']
  %s0 = inlined_call_operand.vmem [shape: f32[512,128], index: 0, kind: input, shape index: {}]
  %s1 = inlined_call_operand.vmem [shape: f32[1,128], index: 1, kind: input, shape index: {}]
  %s2 = inlined_call_operand.vmem [shape: f32[1,128], index: 2, kind: input, shape index: {}]
  %s3 = inlined_call_operand.vmem [shape: f32[128,128], index: 3, kind: input, shape index: {}]
  %s4 = inlined_call_operand.vmem [shape: f32[128,128], index: 4, kind: input, shape index: {}]
  %s5 = inlined_call_operand.vmem [shape: f32[512,256], index: 5, kind: input, shape index: {}]
  %s6 = inlined_call_operand.<no memory space> [shape: f32[1], index: 6, kind: input, shape index: {}, may-alias: {6,7}]
  %s7 = inlined_call_operand.<no memory space> [shape: f32[1], index: 7, kind: input, shape index: {}, may-alias: {6,7}]
  %s8 = inlined_call_operand.hbm [shape: f32[512,128], index: 8, kind: output, shape index: {}]
  %s9 = sld [smem:[#allocation0]]
  $region42: #{_lambda_.3} parent=0
    _
  %s11 = ssub.s32 1, %s9
  %s12 = scalar_select 0, %s11, %s9
  %13 = sst [smem:[#allocation2]] %s6
  %14 = sst [smem:[#allocation3]] %s7
  $region1: #{_lambda_.3} parent=0
    #allocation4 [shape = 'u8[262144]{0}', space=vmem, size = 0x40000, scoped, tag = 'output window, operand 0, single buffered']
    #allocation5 [shape = 's32[1]{0}', space=sflag, size = 0x4, scoped, tag = 'scoped memory for _lambda_.3']
    %15 = vsyncpa [#allocation5], 0
    // Predicated region
    $region2: #{_lambda_.3} parent=1 // pred_check
      _
    $region3: #{_lambda_.3} parent=1 // pred_check_branch
      %17 = sbr.rel (0) target = $region5
    $region4: #{_lambda_.3} parent=1 // pred_region
      _
    $region5: #{_lambda_.3} parent=1 // pred_fallthru
      _
    // Predicated region
    $region6: #{_lambda_.3} parent=1 // pred_check
      _
    $region7: #{_lambda_.3} parent=1 // pred_check_branch
      %19 = sbr.rel (0) target = $region9
    $region8: #{_lambda_.3} parent=1 // pred_region
      _
    $region9: #{_lambda_.3} parent=1 // pred_fallthru
      _
    // Predicated region
    $region10: #{_lambda_.3} parent=1 // pred_check
      _
    $region11: #{_lambda_.3} parent=1 // pred_check_branch
      %21 = sbr.rel (0) target = $region13
    $region12: #{_lambda_.3} parent=1 // pred_region
      _
    $region13: #{_lambda_.3} parent=1 // pred_fallthru
      _
    // Predicated region
    $region14: #{_lambda_.3} parent=1 // pred_check
      _
    $region15: #{_lambda_.3} parent=1 // pred_check_branch
      %23 = sbr.rel (0) target = $region17
    $region16: #{_lambda_.3} parent=1 // pred_region
      _
    $region17: #{_lambda_.3} parent=1 // pred_fallthru
      _
    // Predicated region
    $region18: #{_lambda_.3} parent=1 // pred_check
      _
    $region19: #{_lambda_.3} parent=1 // pred_check_branch
      %25 = sbr.rel (0) target = $region21
    $region20: #{_lambda_.3} parent=1 // pred_region
      _
    $region21: #{_lambda_.3} parent=1 // pred_fallthru
      _
    // Predicated region
    $region22: #{_lambda_.3} parent=1 // pred_check
      _
    $region23: #{_lambda_.3} parent=1 // pred_check_branch
      %27 = sbr.rel (0) target = $region25
    $region24: #{_lambda_.3} parent=1 // pred_region
      _
    $region25: #{_lambda_.3} parent=1 // pred_fallthru
      _
    // Predicated region
    $region26: #{_lambda_.3} parent=1 // pred_check
      _
    $region27: #{_lambda_.3} parent=1 // pred_check_branch
      %29 = sbr.rel (0) target = $region29
    $region28: #{_lambda_.3} parent=1 // pred_region
      _
    $region29: #{_lambda_.3} parent=1 // pred_fallthru
      _
    // Predicated region
    $region30: #{_lambda_.3} parent=1 // pred_check
      _
    $region31: #{_lambda_.3} parent=1 // pred_check_branch
      %31 = sbr.rel (0) target = $region33
    $region32: #{_lambda_.3} parent=1 // pred_region
      _
    $region33: #{_lambda_.3} parent=1 // pred_fallthru
      _
    %v32 = vld [vmem:[%s0] sm:$0xff]
    %v33 = vld [vmem:[%s0 + $0x8] sm:$0xff]
    %v34 = vld [vmem:[%s0 + $0x10] sm:$0xff]
    %v35 = vld [vmem:[%s0 + $0x18] sm:$0xff]
    %v36 = vld [vmem:[%s0 + $0x20] sm:$0xff]
    %v37 = vld [vmem:[%s0 + $0x28] sm:$0xff]
    %v38 = vld [vmem:[%s0 + $0x30] sm:$0xff]
    %v39 = vld [vmem:[%s0 + $0x38] sm:$0xff]
    %v40 = vld [vmem:[%s0 + $0x40] sm:$0xff]
    %v41 = vld [vmem:[%s0 + $0x48] sm:$0xff]
    %v42 = vld [vmem:[%s0 + $0x50] sm:$0xff]
    %v43 = vld [vmem:[%s0 + $0x58] sm:$0xff]
    %v44 = vld [vmem:[%s0 + $0x60] sm:$0xff]
    %v45 = vld [vmem:[%s0 + $0x68] sm:$0xff]
    %v46 = vld [vmem:[%s0 + $0x70] sm:$0xff]
    %v47 = vld [vmem:[%s0 + $0x78] sm:$0xff]
    %v48 = vld [vmem:[%s0 + $0x80] sm:$0xff]
    %v49 = vld [vmem:[%s0 + $0x88] sm:$0xff]
    %v50 = vld [vmem:[%s0 + $0x90] sm:$0xff]
    %v51 = vld [vmem:[%s0 + $0x98] sm:$0xff]
    %v52 = vld [vmem:[%s0 + $0xa0] sm:$0xff]
    %v53 = vld [vmem:[%s0 + $0xa8] sm:$0xff]
    %v54 = vld [vmem:[%s0 + $0xb0] sm:$0xff]
    %v55 = vld [vmem:[%s0 + $0xb8] sm:$0xff]
    %v56 = vld [vmem:[%s0 + $0xc0] sm:$0xff]
    %v57 = vld [vmem:[%s0 + $0xc8] sm:$0xff]
    %v58 = vld [vmem:[%s0 + $0xd0] sm:$0xff]
    %v59 = vld [vmem:[%s0 + $0xd8] sm:$0xff]
    %v60 = vld [vmem:[%s0 + $0xe0] sm:$0xff]
    %v61 = vld [vmem:[%s0 + $0xe8] sm:$0xff]
    %v62 = vld [vmem:[%s0 + $0xf0] sm:$0xff]
    %v63 = vld [vmem:[%s0 + $0xf8] sm:$0xff]
    %v64 = vld [vmem:[%s0 + $0x100] sm:$0xff]
    %v65 = vld [vmem:[%s0 + $0x108] sm:$0xff]
    %v66 = vld [vmem:[%s0 + $0x110] sm:$0xff]
    %v67 = vld [vmem:[%s0 + $0x118] sm:$0xff]
    %v68 = vld [vmem:[%s0 + $0x120] sm:$0xff]
    %v69 = vld [vmem:[%s0 + $0x128] sm:$0xff]
    %v70 = vld [vmem:[%s0 + $0x130] sm:$0xff]
    %v71 = vld [vmem:[%s0 + $0x138] sm:$0xff]
    %v72 = vld [vmem:[%s0 + $0x140] sm:$0xff]
    %v73 = vld [vmem:[%s0 + $0x148] sm:$0xff]
    %v74 = vld [vmem:[%s0 + $0x150] sm:$0xff]
    %v75 = vld [vmem:[%s0 + $0x158] sm:$0xff]
    %v76 = vld [vmem:[%s0 + $0x160] sm:$0xff]
    %v77 = vld [vmem:[%s0 + $0x168] sm:$0xff]
    %v78 = vld [vmem:[%s0 + $0x170] sm:$0xff]
    %v79 = vld [vmem:[%s0 + $0x178] sm:$0xff]
    %v80 = vld [vmem:[%s0 + $0x180] sm:$0xff]
    %v81 = vld [vmem:[%s0 + $0x188] sm:$0xff]
    %v82 = vld [vmem:[%s0 + $0x190] sm:$0xff]
    %v83 = vld [vmem:[%s0 + $0x198] sm:$0xff]
    %v84 = vld [vmem:[%s0 + $0x1a0] sm:$0xff]
    %v85 = vld [vmem:[%s0 + $0x1a8] sm:$0xff]
    %v86 = vld [vmem:[%s0 + $0x1b0] sm:$0xff]
    %v87 = vld [vmem:[%s0 + $0x1b8] sm:$0xff]
    %v88 = vld [vmem:[%s0 + $0x1c0] sm:$0xff]
    %v89 = vld [vmem:[%s0 + $0x1c8] sm:$0xff]
    %v90 = vld [vmem:[%s0 + $0x1d0] sm:$0xff]
    %v91 = vld [vmem:[%s0 + $0x1d8] sm:$0xff]
    %v92 = vld [vmem:[%s0 + $0x1e0] sm:$0xff]
    %v93 = vld [vmem:[%s0 + $0x1e8] sm:$0xff]
    %v94 = vld [vmem:[%s0 + $0x1f0] sm:$0xff]
    %v95 = vld [vmem:[%s0 + $0x1f8] sm:$0xff]
    %v96 = vadd.f32 %v32, %v33
    %v97 = vadd.f32 %v96, %v34
    %v98 = vadd.f32 %v97, %v35
    %v99 = vadd.f32 %v98, %v36
    %v100 = vadd.f32 %v99, %v37
    %v101 = vadd.f32 %v100, %v38
    %v102 = vadd.f32 %v101, %v39
    %v103 = vadd.f32 %v102, %v40
    %v104 = vadd.f32 %v103, %v41
    %v105 = vadd.f32 %v104, %v42
    %v106 = vadd.f32 %v105, %v43
    %v107 = vadd.f32 %v106, %v44
    %v108 = vadd.f32 %v107, %v45
    %v109 = vadd.f32 %v108, %v46
    %v110 = vadd.f32 %v109, %v47
    %v111 = vadd.f32 %v110, %v48
    %v112 = vadd.f32 %v111, %v49
    %v113 = vadd.f32 %v112, %v50
    %v114 = vadd.f32 %v113, %v51
    %v115 = vadd.f32 %v114, %v52
    %v116 = vadd.f32 %v115, %v53
    %v117 = vadd.f32 %v116, %v54
    %v118 = vadd.f32 %v117, %v55
    %v119 = vadd.f32 %v118, %v56
    %v120 = vadd.f32 %v119, %v57
    %v121 = vadd.f32 %v120, %v58
    %v122 = vadd.f32 %v121, %v59
    %v123 = vadd.f32 %v122, %v60
    %v124 = vadd.f32 %v123, %v61
    %v125 = vadd.f32 %v124, %v62
    %v126 = vadd.f32 %v125, %v63
    %v127 = vadd.f32 %v126, %v64
    %v128 = vadd.f32 %v127, %v65
    %v129 = vadd.f32 %v128, %v66
    %v130 = vadd.f32 %v129, %v67
    %v131 = vadd.f32 %v130, %v68
    %v132 = vadd.f32 %v131, %v69
    %v133 = vadd.f32 %v132, %v70
    %v134 = vadd.f32 %v133, %v71
    %v135 = vadd.f32 %v134, %v72
    %v136 = vadd.f32 %v135, %v73
    %v137 = vadd.f32 %v136, %v74
    %v138 = vadd.f32 %v137, %v75
    %v139 = vadd.f32 %v138, %v76
    %v140 = vadd.f32 %v139, %v77
    %v141 = vadd.f32 %v140, %v78
    %v142 = vadd.f32 %v141, %v79
    %v143 = vadd.f32 %v142, %v80
    %v144 = vadd.f32 %v143, %v81
    %v145 = vadd.f32 %v144, %v82
    %v146 = vadd.f32 %v145, %v83
    %v147 = vadd.f32 %v146, %v84
    %v148 = vadd.f32 %v147, %v85
    %v149 = vadd.f32 %v148, %v86
    %v150 = vadd.f32 %v149, %v87
    %v151 = vadd.f32 %v150, %v88
    %v152 = vadd.f32 %v151, %v89
    %v153 = vadd.f32 %v152, %v90
    %v154 = vadd.f32 %v153, %v91
    %v155 = vadd.f32 %v154, %v92
    %v156 = vadd.f32 %v155, %v93
    %v157 = vadd.f32 %v156, %v94
    %v158 = vadd.f32 %v157, %v95
    %v159 = vrot.slane %v158, 4
    %v160 = vadd.f32 %v158, %v159
    %v161 = vrot.slane %v160, 2
    %v162 = vadd.f32 %v160, %v161
    %v163 = vrot.slane %v162, 1
    %v164 = vadd.f32 %v162, %v163
    %v165 = vmul.f32 %v32, %v32
    %v166 = vmul.f32 %v33, %v33
    %v167 = vmul.f32 %v34, %v34
    %v168 = vmul.f32 %v35, %v35
    %v169 = vmul.f32 %v36, %v36
    %v170 = vmul.f32 %v37, %v37
    %v171 = vmul.f32 %v38, %v38
    %v172 = vmul.f32 %v39, %v39
    %v173 = vmul.f32 %v40, %v40
    %v174 = vmul.f32 %v41, %v41
    %v175 = vmul.f32 %v42, %v42
    %v176 = vmul.f32 %v43, %v43
    %v177 = vmul.f32 %v44, %v44
    %v178 = vmul.f32 %v45, %v45
    %v179 = vmul.f32 %v46, %v46
    %v180 = vmul.f32 %v47, %v47
    %v181 = vmul.f32 %v48, %v48
    %v182 = vmul.f32 %v49, %v49
    %v183 = vmul.f32 %v50, %v50
    %v184 = vmul.f32 %v51, %v51
    %v185 = vmul.f32 %v52, %v52
    %v186 = vmul.f32 %v53, %v53
    %v187 = vmul.f32 %v54, %v54
    %v188 = vmul.f32 %v55, %v55
    %v189 = vmul.f32 %v56, %v56
    %v190 = vmul.f32 %v57, %v57
    %v191 = vmul.f32 %v58, %v58
    %v192 = vmul.f32 %v59, %v59
    %v193 = vmul.f32 %v60, %v60
    %v194 = vmul.f32 %v61, %v61
    %v195 = vmul.f32 %v62, %v62
    %v196 = vmul.f32 %v63, %v63
    %v197 = vmul.f32 %v64, %v64
    %v198 = vmul.f32 %v65, %v65
    %v199 = vmul.f32 %v66, %v66
    %v200 = vmul.f32 %v67, %v67
    %v201 = vmul.f32 %v68, %v68
    %v202 = vmul.f32 %v69, %v69
    %v203 = vmul.f32 %v70, %v70
    %v204 = vmul.f32 %v71, %v71
    %v205 = vmul.f32 %v72, %v72
    %v206 = vmul.f32 %v73, %v73
    %v207 = vmul.f32 %v74, %v74
    %v208 = vmul.f32 %v75, %v75
    %v209 = vmul.f32 %v76, %v76
    %v210 = vmul.f32 %v77, %v77
    %v211 = vmul.f32 %v78, %v78
    %v212 = vmul.f32 %v79, %v79
    %v213 = vmul.f32 %v80, %v80
    %v214 = vmul.f32 %v81, %v81
    %v215 = vmul.f32 %v82, %v82
    %v216 = vmul.f32 %v83, %v83
    %v217 = vmul.f32 %v84, %v84
    %v218 = vmul.f32 %v85, %v85
    %v219 = vmul.f32 %v86, %v86
    %v220 = vmul.f32 %v87, %v87
    %v221 = vmul.f32 %v88, %v88
    %v222 = vmul.f32 %v89, %v89
    %v223 = vmul.f32 %v90, %v90
    %v224 = vmul.f32 %v91, %v91
    %v225 = vmul.f32 %v92, %v92
    %v226 = vmul.f32 %v93, %v93
    %v227 = vmul.f32 %v94, %v94
    %v228 = vmul.f32 %v95, %v95
    %v229 = vadd.f32 %v165, %v166
    %v230 = vadd.f32 %v229, %v167
    %v231 = vadd.f32 %v230, %v168
    %v232 = vadd.f32 %v231, %v169
    %v233 = vadd.f32 %v232, %v170
    %v234 = vadd.f32 %v233, %v171
    %v235 = vadd.f32 %v234, %v172
    %v236 = vadd.f32 %v235, %v173
    %v237 = vadd.f32 %v236, %v174
    %v238 = vadd.f32 %v237, %v175
    %v239 = vadd.f32 %v238, %v176
    %v240 = vadd.f32 %v239, %v177
    %v241 = vadd.f32 %v240, %v178
    %v242 = vadd.f32 %v241, %v179
    %v243 = vadd.f32 %v242, %v180
    %v244 = vadd.f32 %v243, %v181
    %v245 = vadd.f32 %v244, %v182
    %v246 = vadd.f32 %v245, %v183
    %v247 = vadd.f32 %v246, %v184
    %v248 = vadd.f32 %v247, %v185
    %v249 = vadd.f32 %v248, %v186
    %v250 = vadd.f32 %v249, %v187
    %v251 = vadd.f32 %v250, %v188
    %v252 = vadd.f32 %v251, %v189
    %v253 = vadd.f32 %v252, %v190
    %v254 = vadd.f32 %v253, %v191
    %v255 = vadd.f32 %v254, %v192
    %v256 = vadd.f32 %v255, %v193
    %v257 = vadd.f32 %v256, %v194
    %v258 = vadd.f32 %v257, %v195
    %v259 = vadd.f32 %v258, %v196
    %v260 = vadd.f32 %v259, %v197
    %v261 = vadd.f32 %v260, %v198
    %v262 = vadd.f32 %v261, %v199
    %v263 = vadd.f32 %v262, %v200
    %v264 = vadd.f32 %v263, %v201
    %v265 = vadd.f32 %v264, %v202
    %v266 = vadd.f32 %v265, %v203
    %v267 = vadd.f32 %v266, %v204
    %v268 = vadd.f32 %v267, %v205
    %v269 = vadd.f32 %v268, %v206
    %v270 = vadd.f32 %v269, %v207
    %v271 = vadd.f32 %v270, %v208
    %v272 = vadd.f32 %v271, %v209
    %v273 = vadd.f32 %v272, %v210
    %v274 = vadd.f32 %v273, %v211
    %v275 = vadd.f32 %v274, %v212
    %v276 = vadd.f32 %v275, %v213
    %v277 = vadd.f32 %v276, %v214
    %v278 = vadd.f32 %v277, %v215
    %v279 = vadd.f32 %v278, %v216
    %v280 = vadd.f32 %v279, %v217
    %v281 = vadd.f32 %v280, %v218
    %v282 = vadd.f32 %v281, %v219
    %v283 = vadd.f32 %v282, %v220
    %v284 = vadd.f32 %v283, %v221
    %v285 = vadd.f32 %v284, %v222
    %v286 = vadd.f32 %v285, %v223
    %v287 = vadd.f32 %v286, %v224
    %v288 = vadd.f32 %v287, %v225
    %v289 = vadd.f32 %v288, %v226
    %v290 = vadd.f32 %v289, %v227
    %v291 = vadd.f32 %v290, %v228
    %v292 = vrot.slane %v291, 4
    %v293 = vadd.f32 %v291, %v292
    %v294 = vrot.slane %v293, 2
    %v295 = vadd.f32 %v293, %v294
    %v296 = vrot.slane %v295, 1
    %v297 = vadd.f32 %v295, %v296
    %v298 = vmul.f32 %v164, 0.001953125
    %v299 = vmul.f32 %v297, 0.001953125
    %v300 = vmul.f32 %v298, %v298
    %v301 = vsub.f32 %v299, %v300
    %v302 = vld [vmem:[%s1] sm:$0x1]
    %v303 = vadd.f32 %v301, 1e-05
    %v304 = vrsqrt.pop %v303
    %v305 = vmul.f32 %v302, %v304
    %v306 = vld [vmem:[%s2] sm:$0x1]
    %v307 = vmul.f32 %v298, %v305
    %v308 = vsub.f32 %v306, %v307
    %v310 = vlaneseq
    %v311 = vshrl.u32 %v310, 7
    %v312 = vsub.s32 0, %v311
    %v313 = vrot.slane %v305, %v312
    %v315 = vmul.f32 %v32, %v313
    %v316 = vmul.f32 %v33, %v313
    %v317 = vmul.f32 %v34, %v313
    %v318 = vmul.f32 %v35, %v313
    %v319 = vmul.f32 %v36, %v313
    %v320 = vmul.f32 %v37, %v313
    %v321 = vmul.f32 %v38, %v313
    %v322 = vmul.f32 %v39, %v313
    %v323 = vmul.f32 %v40, %v313
    %v324 = vmul.f32 %v41, %v313
    %v325 = vmul.f32 %v42, %v313
    %v326 = vmul.f32 %v43, %v313
    %v327 = vmul.f32 %v44, %v313
    %v328 = vmul.f32 %v45, %v313
    %v329 = vmul.f32 %v46, %v313
    %v330 = vmul.f32 %v47, %v313
    %v331 = vmul.f32 %v48, %v313
    %v332 = vmul.f32 %v49, %v313
    %v333 = vmul.f32 %v50, %v313
    %v334 = vmul.f32 %v51, %v313
    %v335 = vmul.f32 %v52, %v313
    %v336 = vmul.f32 %v53, %v313
    %v337 = vmul.f32 %v54, %v313
    %v338 = vmul.f32 %v55, %v313
    %v339 = vmul.f32 %v56, %v313
    %v340 = vmul.f32 %v57, %v313
    %v341 = vmul.f32 %v58, %v313
    %v342 = vmul.f32 %v59, %v313
    %v343 = vmul.f32 %v60, %v313
    %v344 = vmul.f32 %v61, %v313
    %v345 = vmul.f32 %v62, %v313
    %v346 = vmul.f32 %v63, %v313
    %v347 = vmul.f32 %v64, %v313
    %v348 = vmul.f32 %v65, %v313
    %v349 = vmul.f32 %v66, %v313
    %v350 = vmul.f32 %v67, %v313
    %v351 = vmul.f32 %v68, %v313
    %v352 = vmul.f32 %v69, %v313
    %v353 = vmul.f32 %v70, %v313
    %v354 = vmul.f32 %v71, %v313
    %v355 = vmul.f32 %v72, %v313
    %v356 = vmul.f32 %v73, %v313
    %v357 = vmul.f32 %v74, %v313
    %v358 = vmul.f32 %v75, %v313
    %v359 = vmul.f32 %v76, %v313
    %v360 = vmul.f32 %v77, %v313
    %v361 = vmul.f32 %v78, %v313
    %v362 = vmul.f32 %v79, %v313
    %v363 = vmul.f32 %v80, %v313
    %v364 = vmul.f32 %v81, %v313
    %v365 = vmul.f32 %v82, %v313
    %v366 = vmul.f32 %v83, %v313
    %v367 = vmul.f32 %v84, %v313
    %v368 = vmul.f32 %v85, %v313
    %v369 = vmul.f32 %v86, %v313
    %v370 = vmul.f32 %v87, %v313
    %v371 = vmul.f32 %v88, %v313
    %v372 = vmul.f32 %v89, %v313
    %v373 = vmul.f32 %v90, %v313
    %v374 = vmul.f32 %v91, %v313
    %v375 = vmul.f32 %v92, %v313
    %v376 = vmul.f32 %v93, %v313
    %v377 = vmul.f32 %v94, %v313
    %v378 = vmul.f32 %v95, %v313
    %v380 = vlaneseq
    %v381 = vshrl.u32 %v380, 7
    %v382 = vsub.s32 0, %v381
    %v383 = vrot.slane %v308, %v382
    %v385 = vadd.f32 %v315, %v383
    %v386 = vadd.f32 %v316, %v383
    %v387 = vadd.f32 %v317, %v383
    %v388 = vadd.f32 %v318, %v383
    %v389 = vadd.f32 %v319, %v383
    %v390 = vadd.f32 %v320, %v383
    %v391 = vadd.f32 %v321, %v383
    %v392 = vadd.f32 %v322, %v383
    %v393 = vadd.f32 %v323, %v383
    %v394 = vadd.f32 %v324, %v383
    %v395 = vadd.f32 %v325, %v383
    %v396 = vadd.f32 %v326, %v383
    %v397 = vadd.f32 %v327, %v383
    %v398 = vadd.f32 %v328, %v383
    %v399 = vadd.f32 %v329, %v383
    %v400 = vadd.f32 %v330, %v383
    %v401 = vadd.f32 %v331, %v383
    %v402 = vadd.f32 %v332, %v383
    %v403 = vadd.f32 %v333, %v383
    %v404 = vadd.f32 %v334, %v383
    %v405 = vadd.f32 %v335, %v383
    %v406 = vadd.f32 %v336, %v383
    %v407 = vadd.f32 %v337, %v383
    %v408 = vadd.f32 %v338, %v383
    %v409 = vadd.f32 %v339, %v383
    %v410 = vadd.f32 %v340, %v383
    %v411 = vadd.f32 %v341, %v383
    %v412 = vadd.f32 %v342, %v383
    %v413 = vadd.f32 %v343, %v383
    %v414 = vadd.f32 %v344, %v383
    %v415 = vadd.f32 %v345, %v383
    %v416 = vadd.f32 %v346, %v383
    %v417 = vadd.f32 %v347, %v383
    %v418 = vadd.f32 %v348, %v383
    %v419 = vadd.f32 %v349, %v383
    %v420 = vadd.f32 %v350, %v383
    %v421 = vadd.f32 %v351, %v383
    %v422 = vadd.f32 %v352, %v383
    %v423 = vadd.f32 %v353, %v383
    %v424 = vadd.f32 %v354, %v383
    %v425 = vadd.f32 %v355, %v383
    %v426 = vadd.f32 %v356, %v383
    %v427 = vadd.f32 %v357, %v383
    %v428 = vadd.f32 %v358, %v383
    %v429 = vadd.f32 %v359, %v383
    %v430 = vadd.f32 %v360, %v383
    %v431 = vadd.f32 %v361, %v383
    %v432 = vadd.f32 %v362, %v383
    %v433 = vadd.f32 %v363, %v383
    %v434 = vadd.f32 %v364, %v383
    %v435 = vadd.f32 %v365, %v383
    %v436 = vadd.f32 %v366, %v383
    %v437 = vadd.f32 %v367, %v383
    %v438 = vadd.f32 %v368, %v383
    %v439 = vadd.f32 %v369, %v383
    %v440 = vadd.f32 %v370, %v383
    %v441 = vadd.f32 %v371, %v383
    %v442 = vadd.f32 %v372, %v383
    %v443 = vadd.f32 %v373, %v383
    %v444 = vadd.f32 %v374, %v383
    %v445 = vadd.f32 %v375, %v383
    %v446 = vadd.f32 %v376, %v383
    %v447 = vadd.f32 %v377, %v383
    %v448 = vadd.f32 %v378, %v383
    %v449 = vadd.f32 %v385, %v386
    %v450 = vadd.f32 %v449, %v387
    %v451 = vadd.f32 %v450, %v388
    %v452 = vadd.f32 %v451, %v389
    %v453 = vadd.f32 %v452, %v390
    %v454 = vadd.f32 %v453, %v391
    %v455 = vadd.f32 %v454, %v392
    %v456 = vadd.f32 %v455, %v393
    %v457 = vadd.f32 %v456, %v394
    %v458 = vadd.f32 %v457, %v395
    %v459 = vadd.f32 %v458, %v396
    %v460 = vadd.f32 %v459, %v397
    %v461 = vadd.f32 %v460, %v398
    %v462 = vadd.f32 %v461, %v399
    %v463 = vadd.f32 %v462, %v400
    %v464 = vadd.f32 %v463, %v401
    %v465 = vadd.f32 %v464, %v402
    %v466 = vadd.f32 %v465, %v403
    %v467 = vadd.f32 %v466, %v404
    %v468 = vadd.f32 %v467, %v405
    %v469 = vadd.f32 %v468, %v406
    %v470 = vadd.f32 %v469, %v407
    %v471 = vadd.f32 %v470, %v408
    %v472 = vadd.f32 %v471, %v409
    %v473 = vadd.f32 %v472, %v410
    %v474 = vadd.f32 %v473, %v411
    %v475 = vadd.f32 %v474, %v412
    %v476 = vadd.f32 %v475, %v413
    %v477 = vadd.f32 %v476, %v414
    %v478 = vadd.f32 %v477, %v415
    %v479 = vadd.f32 %v478, %v416
    %v480 = vrot.slane %v479, 4
    %v481 = vadd.f32 %v479, %v480
    %v482 = vrot.slane %v481, 2
    %v483 = vadd.f32 %v481, %v482
    %v484 = vrot.slane %v483, 1
    %v485 = vadd.f32 %v483, %v484
    %v486 = vadd.f32 %v417, %v418
    %v487 = vadd.f32 %v486, %v419
    %v488 = vadd.f32 %v487, %v420
    %v489 = vadd.f32 %v488, %v421
    %v490 = vadd.f32 %v489, %v422
    %v491 = vadd.f32 %v490, %v423
    %v492 = vadd.f32 %v491, %v424
    %v493 = vadd.f32 %v492, %v425
    %v494 = vadd.f32 %v493, %v426
    %v495 = vadd.f32 %v494, %v427
    %v496 = vadd.f32 %v495, %v428
    %v497 = vadd.f32 %v496, %v429
    %v498 = vadd.f32 %v497, %v430
    %v499 = vadd.f32 %v498, %v431
    %v500 = vadd.f32 %v499, %v432
    %v501 = vadd.f32 %v500, %v433
    %v502 = vadd.f32 %v501, %v434
    %v503 = vadd.f32 %v502, %v435
    %v504 = vadd.f32 %v503, %v436
    %v505 = vadd.f32 %v504, %v437
    %v506 = vadd.f32 %v505, %v438
    %v507 = vadd.f32 %v506, %v439
    %v508 = vadd.f32 %v507, %v440
    %v509 = vadd.f32 %v508, %v441
    %v510 = vadd.f32 %v509, %v442
    %v511 = vadd.f32 %v510, %v443
    %v512 = vadd.f32 %v511, %v444
    %v513 = vadd.f32 %v512, %v445
    %v514 = vadd.f32 %v513, %v446
    %v515 = vadd.f32 %v514, %v447
    %v516 = vadd.f32 %v515, %v448
    %v517 = vrot.slane %v516, 4
    %v518 = vadd.f32 %v516, %v517
    %v519 = vrot.slane %v518, 2
    %v520 = vadd.f32 %v518, %v519
    %v521 = vrot.slane %v520, 1
    %v522 = vadd.f32 %v520, %v521
    %v523 = vmul.f32 %v485, 0.00390625
    %v524 = vmul.f32 %v522, 0.00390625
    %v525 = vmax.f32 %v385, %v387
    %v526 = vmax.f32 %v386, %v388
    %v527 = vmax.f32 %v525, %v389
    %v528 = vmax.f32 %v526, %v390
    %v529 = vmax.f32 %v527, %v391
    %v530 = vmax.f32 %v528, %v392
    %v531 = vmax.f32 %v529, %v393
    %v532 = vmax.f32 %v530, %v394
    %v533 = vmax.f32 %v531, %v395
    %v534 = vmax.f32 %v532, %v396
    %v535 = vmax.f32 %v533, %v397
    %v536 = vmax.f32 %v534, %v398
    %v537 = vmax.f32 %v535, %v399
    %v538 = vmax.f32 %v536, %v400
    %v539 = vmax.f32 %v537, %v401
    %v540 = vmax.f32 %v538, %v402
    %v541 = vmax.f32 %v539, %v403
    %v542 = vmax.f32 %v540, %v404
    %v543 = vmax.f32 %v541, %v405
    %v544 = vmax.f32 %v542, %v406
    %v545 = vmax.f32 %v543, %v407
    %v546 = vmax.f32 %v544, %v408
    %v547 = vmax.f32 %v545, %v409
    %v548 = vmax.f32 %v546, %v410
    %v549 = vmax.f32 %v547, %v411
    %v550 = vmax.f32 %v548, %v412
    %v551 = vmax.f32 %v549, %v413
    %v552 = vmax.f32 %v550, %v414
    %v553 = vmax.f32 %v551, %v415
    %v554 = vmax.f32 %v552, %v416
    %v555 = vmax.f32 %v553, %v554
    %v556 = vrot.slane %v555, 4
    %v557 = vmax.f32 %v555, %v556
    %v558 = vrot.slane %v557, 2
    %v559 = vmax.f32 %v557, %v558
    %v560 = vrot.slane %v559, 1
    %v561 = vmax.f32 %v559, %v560
    %v562 = vmax.f32 %v417, %v419
    %v563 = vmax.f32 %v418, %v420
    %v564 = vmax.f32 %v562, %v421
    %v565 = vmax.f32 %v563, %v422
    %v566 = vmax.f32 %v564, %v423
    %v567 = vmax.f32 %v565, %v424
    %v568 = vmax.f32 %v566, %v425
    %v569 = vmax.f32 %v567, %v426
    %v570 = vmax.f32 %v568, %v427
    %v571 = vmax.f32 %v569, %v428
    %v572 = vmax.f32 %v570, %v429
    %v573 = vmax.f32 %v571, %v430
    %v574 = vmax.f32 %v572, %v431
    %v575 = vmax.f32 %v573, %v432
    %v576 = vmax.f32 %v574, %v433
    %v577 = vmax.f32 %v575, %v434
    %v578 = vmax.f32 %v576, %v435
    %v579 = vmax.f32 %v577, %v436
    %v580 = vmax.f32 %v578, %v437
    %v581 = vmax.f32 %v579, %v438
    %v582 = vmax.f32 %v580, %v439
    %v583 = vmax.f32 %v581, %v440
    %v584 = vmax.f32 %v582, %v441
    %v585 = vmax.f32 %v583, %v442
    %v586 = vmax.f32 %v584, %v443
    %v587 = vmax.f32 %v585, %v444
    %v588 = vmax.f32 %v586, %v445
    %v589 = vmax.f32 %v587, %v446
    %v590 = vmax.f32 %v588, %v447
    %v591 = vmax.f32 %v589, %v448
    %v592 = vmax.f32 %v590, %v591
    %v593 = vrot.slane %v592, 4
    %v594 = vmax.f32 %v592, %v593
    %v595 = vrot.slane %v594, 2
    %v596 = vmax.f32 %v594, %v595
    %v597 = vrot.slane %v596, 1
    %v598 = vmax.f32 %v596, %v597
    %vm601 = vcmask 1041409
    %v602 = vsel %vm601, %v524, %v523
    %vm606 = vcmask 1043459
    %v607 = vsel %vm606, %v598, %v561
    %vm609 = vcmask 1041408
    %v610 = vsel %vm609, %v602, %v607
    %v611 = vld [vmem:[%s3] sm:$0xff]
    %v612 = vld [vmem:[%s3 + $0x8] sm:$0xff]
    %v613 = vld [vmem:[%s3 + $0x10] sm:$0xff]
    %v614 = vld [vmem:[%s3 + $0x18] sm:$0xff]
    %v615 = vld [vmem:[%s3 + $0x20] sm:$0xff]
    %v616 = vld [vmem:[%s3 + $0x28] sm:$0xff]
    %v617 = vld [vmem:[%s3 + $0x30] sm:$0xff]
    %v618 = vld [vmem:[%s3 + $0x38] sm:$0xff]
    %v619 = vld [vmem:[%s3 + $0x40] sm:$0xff]
    %v620 = vld [vmem:[%s3 + $0x48] sm:$0xff]
    %v621 = vld [vmem:[%s3 + $0x50] sm:$0xff]
    %v622 = vld [vmem:[%s3 + $0x58] sm:$0xff]
    %v623 = vld [vmem:[%s3 + $0x60] sm:$0xff]
    %v624 = vld [vmem:[%s3 + $0x68] sm:$0xff]
    %v625 = vld [vmem:[%s3 + $0x70] sm:$0xff]
    %v626 = vld [vmem:[%s3 + $0x78] sm:$0xff]
    %627 = vmatprep.subr.mxu0 0.0
    %628 = vmatpush1.msra.mxu0 %v626
    %629 = vmatprep.subr.mxu0 0.0
    %630 = vmatpush1.msra.mxu0 %v625
    %631 = vmatprep.subr.mxu0 0.0
    %632 = vmatpush1.msra.mxu0 %v624
    %633 = vmatprep.subr.mxu0 0.0
    %634 = vmatpush1.msra.mxu0 %v623
    %635 = vmatprep.subr.mxu0 0.0
    %636 = vmatpush1.msra.mxu0 %v622
    %637 = vmatprep.subr.mxu0 0.0
    %638 = vmatpush1.msra.mxu0 %v621
    %639 = vmatprep.subr.mxu0 0.0
    %640 = vmatpush1.msra.mxu0 %v620
    %641 = vmatprep.subr.mxu0 0.0
    %642 = vmatpush1.msra.mxu0 %v619
    %643 = vmatprep.subr.mxu0 0.0
    %644 = vmatpush1.msra.mxu0 %v618
    %645 = vmatprep.subr.mxu0 0.0
    %646 = vmatpush1.msra.mxu0 %v617
    %647 = vmatprep.subr.mxu0 0.0
    %648 = vmatpush1.msra.mxu0 %v616
    %649 = vmatprep.subr.mxu0 0.0
    %650 = vmatpush1.msra.mxu0 %v615
    %651 = vmatprep.subr.mxu0 0.0
    %652 = vmatpush1.msra.mxu0 %v614
    %653 = vmatprep.subr.mxu0 0.0
    %654 = vmatpush1.msra.mxu0 %v613
    %655 = vmatprep.subr.mxu0 0.0
    %656 = vmatpush1.msra.mxu0 %v612
    %657 = vmatprep.subr.mxu0 0.0
    %658 = vmatpush1.msra.mxu0 %v611
    %659 = vmatprep.subr.mxu0 0.0
    %660 = vmatpush2.msra.mxu0 0.0
    %661 = vmatprep.subr.mxu0 0.0
    %662 = vmatpush2.msra.mxu0 0.0
    %663 = vmatprep.subr.mxu0 0.0
    %664 = vmatpush2.msra.mxu0 0.0
    %665 = vmatprep.subr.mxu0 0.0
    %666 = vmatpush2.msra.mxu0 0.0
    %667 = vmatprep.subr.mxu0 0.0
    %668 = vmatpush2.msra.mxu0 0.0
    %669 = vmatprep.subr.mxu0 0.0
    %670 = vmatpush2.msra.mxu0 0.0
    %671 = vmatprep.subr.mxu0 0.0
    %672 = vmatpush2.msra.mxu0 0.0
    %673 = vmatprep.subr.mxu0 0.0
    %674 = vmatpush2.msra.mxu0 0.0
    %675 = vmatprep.subr.mxu0 0.0
    %676 = vmatpush2.msra.mxu0 0.0
    %677 = vmatprep.subr.mxu0 0.0
    %678 = vmatpush2.msra.mxu0 0.0
    %679 = vmatprep.subr.mxu0 0.0
    %680 = vmatpush2.msra.mxu0 0.0
    %681 = vmatprep.subr.mxu0 0.0
    %682 = vmatpush2.msra.mxu0 0.0
    %683 = vmatprep.subr.mxu0 0.0
    %684 = vmatpush2.msra.mxu0 0.0
    %685 = vmatprep.subr.mxu0 0.0
    %686 = vmatpush2.msra.mxu0 0.0
    %687 = vmatprep.subr.mxu0 0.0
    %688 = vmatpush2.msra.mxu0 0.0
    %689 = vmatprep.subr.mxu0 0.0
    %690 = vmatpush2.msra.mxu0 0.0
    %691 = vmatprep.mubr.f32.mxu0 0.0
    %692 = vmatmul.mubr.f32.gmra.mxu0 %v610
    %v693 = vpop.f32.mrf.mxu0
    %v694 = vadd.f32 0.0, %v693
    %v695 = vpop.f32.mrf.mxu0
    %696 = vdwg.mxu0
    %s697 = sld [smem:[#allocation2]]
    %vm698 = vcmp.ge.f32.partialorder %v694, 0.0
    %v699 = vstv %s697
    %v700 = vmul.f32 %v699, %v694
    %v701 = vsel %vm698, %v694, %v700
    %v702 = vld [vmem:[%s4] sm:$0xff]
    %v703 = vld [vmem:[%s4 + $0x8] sm:$0xff]
    %v704 = vld [vmem:[%s4 + $0x10] sm:$0xff]
    %v705 = vld [vmem:[%s4 + $0x18] sm:$0xff]
    %v706 = vld [vmem:[%s4 + $0x20] sm:$0xff]
    %v707 = vld [vmem:[%s4 + $0x28] sm:$0xff]
    %v708 = vld [vmem:[%s4 + $0x30] sm:$0xff]
    %v709 = vld [vmem:[%s4 + $0x38] sm:$0xff]
    %v710 = vld [vmem:[%s4 + $0x40] sm:$0xff]
    %v711 = vld [vmem:[%s4 + $0x48] sm:$0xff]
    %v712 = vld [vmem:[%s4 + $0x50] sm:$0xff]
    %v713 = vld [vmem:[%s4 + $0x58] sm:$0xff]
    %v714 = vld [vmem:[%s4 + $0x60] sm:$0xff]
    %v715 = vld [vmem:[%s4 + $0x68] sm:$0xff]
    %v716 = vld [vmem:[%s4 + $0x70] sm:$0xff]
    %v717 = vld [vmem:[%s4 + $0x78] sm:$0xff]
    %718 = vmatprep.subr.mxu0 0.0
    %719 = vmatpush1.msra.mxu0 %v717
    %720 = vmatprep.subr.mxu0 0.0
    %721 = vmatpush1.msra.mxu0 %v716
    %722 = vmatprep.subr.mxu0 0.0
    %723 = vmatpush1.msra.mxu0 %v715
    %724 = vmatprep.subr.mxu0 0.0
    %725 = vmatpush1.msra.mxu0 %v714
    %726 = vmatprep.subr.mxu0 0.0
    %727 = vmatpush1.msra.mxu0 %v713
    %728 = vmatprep.subr.mxu0 0.0
    %729 = vmatpush1.msra.mxu0 %v712
    %730 = vmatprep.subr.mxu0 0.0
    %731 = vmatpush1.msra.mxu0 %v711
    %732 = vmatprep.subr.mxu0 0.0
    %733 = vmatpush1.msra.mxu0 %v710
    %734 = vmatprep.subr.mxu0 0.0
    %735 = vmatpush1.msra.mxu0 %v709
    %736 = vmatprep.subr.mxu0 0.0
    %737 = vmatpush1.msra.mxu0 %v708
    %738 = vmatprep.subr.mxu0 0.0
    %739 = vmatpush1.msra.mxu0 %v707
    %740 = vmatprep.subr.mxu0 0.0
    %741 = vmatpush1.msra.mxu0 %v706
    %742 = vmatprep.subr.mxu0 0.0
    %743 = vmatpush1.msra.mxu0 %v705
    %744 = vmatprep.subr.mxu0 0.0
    %745 = vmatpush1.msra.mxu0 %v704
    %746 = vmatprep.subr.mxu0 0.0
    %747 = vmatpush1.msra.mxu0 %v703
    %748 = vmatprep.subr.mxu0 0.0
    %749 = vmatpush1.msra.mxu0 %v702
    %750 = vmatprep.subr.mxu0 0.0
    %751 = vmatpush2.msra.mxu0 0.0
    %752 = vmatprep.subr.mxu0 0.0
    %753 = vmatpush2.msra.mxu0 0.0
    %754 = vmatprep.subr.mxu0 0.0
    %755 = vmatpush2.msra.mxu0 0.0
    %756 = vmatprep.subr.mxu0 0.0
    %757 = vmatpush2.msra.mxu0 0.0
    %758 = vmatprep.subr.mxu0 0.0
    %759 = vmatpush2.msra.mxu0 0.0
    %760 = vmatprep.subr.mxu0 0.0
    %761 = vmatpush2.msra.mxu0 0.0
    %762 = vmatprep.subr.mxu0 0.0
    %763 = vmatpush2.msra.mxu0 0.0
    %764 = vmatprep.subr.mxu0 0.0
    %765 = vmatpush2.msra.mxu0 0.0
    %766 = vmatprep.subr.mxu0 0.0
    %767 = vmatpush2.msra.mxu0 0.0
    %768 = vmatprep.subr.mxu0 0.0
    %769 = vmatpush2.msra.mxu0 0.0
    %770 = vmatprep.subr.mxu0 0.0
    %771 = vmatpush2.msra.mxu0 0.0
    %772 = vmatprep.subr.mxu0 0.0
    %773 = vmatpush2.msra.mxu0 0.0
    %774 = vmatprep.subr.mxu0 0.0
    %775 = vmatpush2.msra.mxu0 0.0
    %776 = vmatprep.subr.mxu0 0.0
    %777 = vmatpush2.msra.mxu0 0.0
    %778 = vmatprep.subr.mxu0 0.0
    %779 = vmatpush2.msra.mxu0 0.0
    %780 = vmatprep.subr.mxu0 0.0
    %781 = vmatpush2.msra.mxu0 0.0
    %782 = vmatprep.mubr.f32.mxu0 0.0
    %783 = vmatmul.mubr.f32.gmra.mxu0 %v701
    %v784 = vpop.f32.mrf.mxu0
    %v785 = vadd.f32 0.0, %v784
    %v786 = vpop.f32.mrf.mxu0
    %787 = vdwg.mxu0
    %v789 = vrot.slane %v785, 2
    %v791 = vadd.f32 %v785, %v789
    %v792 = vxor.u32 %v791, 2147483648
    %v793 = vmul.f32 %v792, 1.442695
    %v794 = vpow.pop %v793
    %v795 = vadd.f32 %v794, 1.0
    %v796 = vrcp.pop %v795
    %v797 = vmul.f32 1.0, %v796
    %v800 = vunpack.c.l.s4 1966171168
    %v801 = vunpack.c.0.s8 %v800
    %v802 = vlaneseq
    %v803 = vshrl.u32 %v802, 7
    %v804 = vsub.s32 %v801, %v803
    %v805 = vrot.slane %v797, %v804
    %v806 = vcombine.high %v805, %v805
    %v808 = vunpack.c.l.s4 1966171168
    %v809 = vunpack.c.0.s8 %v808
    %v810 = vlaneseq
    %v811 = vshrl.u32 %v810, 7
    %v812 = vsub.s32 %v809, %v811
    %v813 = vrot.slane %v805, %v812
    %v815 = vunpack.c.l.s4 1966171168
    %v816 = vunpack.c.0.s8 %v815
    %v817 = vlaneseq
    %v818 = vshrl.u32 %v817, 7
    %v819 = vsub.s32 %v816, %v818
    %v820 = vrot.slane %v806, %v819
    %v821 = vlaneseq
    %v822 = vshrl.u32 %v821, 7
    %v823 = vsub.s32 0, %v822
    %v824 = vrot.slane %v813, %v823
    %v825 = vlaneseq
    %v826 = vshrl.u32 %v825, 7
    %v827 = vsub.s32 0, %v826
    %v828 = vrot.slane %v820, %v827
    %v831 = vmul.f32 %v385, %v824
    %v832 = vmul.f32 %v386, %v824
    %v833 = vmul.f32 %v387, %v824
    %v834 = vmul.f32 %v388, %v824
    %v835 = vmul.f32 %v389, %v824
    %v836 = vmul.f32 %v390, %v824
    %v837 = vmul.f32 %v391, %v824
    %v838 = vmul.f32 %v392, %v824
    %v839 = vmul.f32 %v393, %v824
    %v840 = vmul.f32 %v394, %v824
    %v841 = vmul.f32 %v395, %v824
    %v842 = vmul.f32 %v396, %v824
    %v843 = vmul.f32 %v397, %v824
    %v844 = vmul.f32 %v398, %v824
    %v845 = vmul.f32 %v399, %v824
    %v846 = vmul.f32 %v400, %v824
    %v847 = vmul.f32 %v401, %v824
    %v848 = vmul.f32 %v402, %v824
    %v849 = vmul.f32 %v403, %v824
    %v850 = vmul.f32 %v404, %v824
    %v851 = vmul.f32 %v405, %v824
    %v852 = vmul.f32 %v406, %v824
    %v853 = vmul.f32 %v407, %v824
    %v854 = vmul.f32 %v408, %v824
    %v855 = vmul.f32 %v409, %v824
    %v856 = vmul.f32 %v410, %v824
    %v857 = vmul.f32 %v411, %v824
    %v858 = vmul.f32 %v412, %v824
    %v859 = vmul.f32 %v413, %v824
    %v860 = vmul.f32 %v414, %v824
    %v861 = vmul.f32 %v415, %v824
    %v862 = vmul.f32 %v416, %v824
    %v863 = vmul.f32 %v417, %v828
    %v864 = vmul.f32 %v418, %v828
    %v865 = vmul.f32 %v419, %v828
    %v866 = vmul.f32 %v420, %v828
    %v867 = vmul.f32 %v421, %v828
    %v868 = vmul.f32 %v422, %v828
    %v869 = vmul.f32 %v423, %v828
    %v870 = vmul.f32 %v424, %v828
    %v871 = vmul.f32 %v425, %v828
    %v872 = vmul.f32 %v426, %v828
    %v873 = vmul.f32 %v427, %v828
    %v874 = vmul.f32 %v428, %v828
    %v875 = vmul.f32 %v429, %v828
    %v876 = vmul.f32 %v430, %v828
    %v877 = vmul.f32 %v431, %v828
    %v878 = vmul.f32 %v432, %v828
    %v879 = vmul.f32 %v433, %v828
    %v880 = vmul.f32 %v434, %v828
    %v881 = vmul.f32 %v435, %v828
    %v882 = vmul.f32 %v436, %v828
    %v883 = vmul.f32 %v437, %v828
    %v884 = vmul.f32 %v438, %v828
    %v885 = vmul.f32 %v439, %v828
    %v886 = vmul.f32 %v440, %v828
    %v887 = vmul.f32 %v441, %v828
    %v888 = vmul.f32 %v442, %v828
    %v889 = vmul.f32 %v443, %v828
    %v890 = vmul.f32 %v444, %v828
    %v891 = vmul.f32 %v445, %v828
    %v892 = vmul.f32 %v446, %v828
    %v893 = vmul.f32 %v447, %v828
    %v894 = vmul.f32 %v448, %v828
    %v895 = vlaneseq
    %v896 = vand.u32 %v895, 127
    %897 = vadd.xlane.f32.xlu0 %v831
    %v898 = vpop.xlane.xlu0 %897
    %899 = vadd.xlane.f32.xlu0 %v832
    %v900 = vpop.xlane.xlu0 %899
    %901 = vadd.xlane.f32.xlu0 %v833
    %v902 = vpop.xlane.xlu0 %901
    %903 = vadd.xlane.f32.xlu0 %v834
    %v904 = vpop.xlane.xlu0 %903
    %905 = vadd.xlane.f32.xlu0 %v835
    %v906 = vpop.xlane.xlu0 %905
    %907 = vadd.xlane.f32.xlu0 %v836
    %v908 = vpop.xlane.xlu0 %907
    %909 = vadd.xlane.f32.xlu0 %v837
    %v910 = vpop.xlane.xlu0 %909
    %911 = vadd.xlane.f32.xlu0 %v838
    %v912 = vpop.xlane.xlu0 %911
    %913 = vadd.xlane.f32.xlu0 %v839
    %v914 = vpop.xlane.xlu0 %913
    %915 = vadd.xlane.f32.xlu0 %v840
    %v916 = vpop.xlane.xlu0 %915
    %917 = vadd.xlane.f32.xlu0 %v841
    %v918 = vpop.xlane.xlu0 %917
    %919 = vadd.xlane.f32.xlu0 %v842
    %v920 = vpop.xlane.xlu0 %919
    %921 = vadd.xlane.f32.xlu0 %v843
    %v922 = vpop.xlane.xlu0 %921
    %923 = vadd.xlane.f32.xlu0 %v844
    %v924 = vpop.xlane.xlu0 %923
    %925 = vadd.xlane.f32.xlu0 %v845
    %v926 = vpop.xlane.xlu0 %925
    %927 = vadd.xlane.f32.xlu0 %v846
    %v928 = vpop.xlane.xlu0 %927
    %929 = vadd.xlane.f32.xlu0 %v847
    %v930 = vpop.xlane.xlu0 %929
    %931 = vadd.xlane.f32.xlu0 %v848
    %v932 = vpop.xlane.xlu0 %931
    %933 = vadd.xlane.f32.xlu0 %v849
    %v934 = vpop.xlane.xlu0 %933
    %935 = vadd.xlane.f32.xlu0 %v850
    %v936 = vpop.xlane.xlu0 %935
    %937 = vadd.xlane.f32.xlu0 %v851
    %v938 = vpop.xlane.xlu0 %937
    %939 = vadd.xlane.f32.xlu0 %v852
    %v940 = vpop.xlane.xlu0 %939
    %941 = vadd.xlane.f32.xlu0 %v853
    %v942 = vpop.xlane.xlu0 %941
    %943 = vadd.xlane.f32.xlu0 %v854
    %v944 = vpop.xlane.xlu0 %943
    %945 = vadd.xlane.f32.xlu0 %v855
    %v946 = vpop.xlane.xlu0 %945
    %947 = vadd.xlane.f32.xlu0 %v856
    %v948 = vpop.xlane.xlu0 %947
    %949 = vadd.xlane.f32.xlu0 %v857
    %v950 = vpop.xlane.xlu0 %949
    %951 = vadd.xlane.f32.xlu0 %v858
    %v952 = vpop.xlane.xlu0 %951
    %953 = vadd.xlane.f32.xlu0 %v859
    %v954 = vpop.xlane.xlu0 %953
    %955 = vadd.xlane.f32.xlu0 %v860
    %v956 = vpop.xlane.xlu0 %955
    %957 = vadd.xlane.f32.xlu0 %v861
    %v958 = vpop.xlane.xlu0 %957
    %959 = vadd.xlane.f32.xlu0 %v862
    %v960 = vpop.xlane.xlu0 %959
    %961 = vadd.xlane.f32.xlu0 %v863
    %v962 = vpop.xlane.xlu0 %961
    %963 = vadd.xlane.f32.xlu0 %v864
    %v964 = vpop.xlane.xlu0 %963
    %965 = vadd.xlane.f32.xlu0 %v865
    %v966 = vpop.xlane.xlu0 %965
    %967 = vadd.xlane.f32.xlu0 %v866
    %v968 = vpop.xlane.xlu0 %967
    %969 = vadd.xlane.f32.xlu0 %v867
    %v970 = vpop.xlane.xlu0 %969
    %971 = vadd.xlane.f32.xlu0 %v868
    %v972 = vpop.xlane.xlu0 %971
    %973 = vadd.xlane.f32.xlu0 %v869
    %v974 = vpop.xlane.xlu0 %973
    %975 = vadd.xlane.f32.xlu0 %v870
    %v976 = vpop.xlane.xlu0 %975
    %977 = vadd.xlane.f32.xlu0 %v871
    %v978 = vpop.xlane.xlu0 %977
    %979 = vadd.xlane.f32.xlu0 %v872
    %v980 = vpop.xlane.xlu0 %979
    %981 = vadd.xlane.f32.xlu0 %v873
    %v982 = vpop.xlane.xlu0 %981
    %983 = vadd.xlane.f32.xlu0 %v874
    %v984 = vpop.xlane.xlu0 %983
    %985 = vadd.xlane.f32.xlu0 %v875
    %v986 = vpop.xlane.xlu0 %985
    %987 = vadd.xlane.f32.xlu0 %v876
    %v988 = vpop.xlane.xlu0 %987
    %989 = vadd.xlane.f32.xlu0 %v877
    %v990 = vpop.xlane.xlu0 %989
    %991 = vadd.xlane.f32.xlu0 %v878
    %v992 = vpop.xlane.xlu0 %991
    %993 = vadd.xlane.f32.xlu0 %v879
    %v994 = vpop.xlane.xlu0 %993
    %995 = vadd.xlane.f32.xlu0 %v880
    %v996 = vpop.xlane.xlu0 %995
    %997 = vadd.xlane.f32.xlu0 %v881
    %v998 = vpop.xlane.xlu0 %997
    %999 = vadd.xlane.f32.xlu0 %v882
    %v1000 = vpop.xlane.xlu0 %999
    %1001 = vadd.xlane.f32.xlu0 %v883
    %v1002 = vpop.xlane.xlu0 %1001
    %1003 = vadd.xlane.f32.xlu0 %v884
    %v1004 = vpop.xlane.xlu0 %1003
    %1005 = vadd.xlane.f32.xlu0 %v885
    %v1006 = vpop.xlane.xlu0 %1005
    %1007 = vadd.xlane.f32.xlu0 %v886
    %v1008 = vpop.xlane.xlu0 %1007
    %1009 = vadd.xlane.f32.xlu0 %v887
    %v1010 = vpop.xlane.xlu0 %1009
    %1011 = vadd.xlane.f32.xlu0 %v888
    %v1012 = vpop.xlane.xlu0 %1011
    %1013 = vadd.xlane.f32.xlu0 %v889
    %v1014 = vpop.xlane.xlu0 %1013
    %1015 = vadd.xlane.f32.xlu0 %v890
    %v1016 = vpop.xlane.xlu0 %1015
    %1017 = vadd.xlane.f32.xlu0 %v891
    %v1018 = vpop.xlane.xlu0 %1017
    %1019 = vadd.xlane.f32.xlu0 %v892
    %v1020 = vpop.xlane.xlu0 %1019
    %1021 = vadd.xlane.f32.xlu0 %v893
    %v1022 = vpop.xlane.xlu0 %1021
    %1023 = vadd.xlane.f32.xlu0 %v894
    %v1024 = vpop.xlane.xlu0 %1023
    %v1025 = vmul.f32 %v898, 0.03125
    %v1026 = vmul.f32 %v900, 0.03125
    %v1027 = vmul.f32 %v902, 0.03125
    %v1028 = vmul.f32 %v904, 0.03125
    %v1029 = vmul.f32 %v906, 0.03125
    %v1030 = vmul.f32 %v908, 0.03125
    %v1031 = vmul.f32 %v910, 0.03125
    %v1032 = vmul.f32 %v912, 0.03125
    %v1033 = vmul.f32 %v914, 0.03125
    %v1034 = vmul.f32 %v916, 0.03125
    %v1035 = vmul.f32 %v918, 0.03125
    %v1036 = vmul.f32 %v920, 0.03125
    %v1037 = vmul.f32 %v922, 0.03125
    %v1038 = vmul.f32 %v924, 0.03125
    %v1039 = vmul.f32 %v926, 0.03125
    %v1040 = vmul.f32 %v928, 0.03125
    %v1041 = vmul.f32 %v930, 0.03125
    %v1042 = vmul.f32 %v932, 0.03125
    %v1043 = vmul.f32 %v934, 0.03125
    %v1044 = vmul.f32 %v936, 0.03125
    %v1045 = vmul.f32 %v938, 0.03125
    %v1046 = vmul.f32 %v940, 0.03125
    %v1047 = vmul.f32 %v942, 0.03125
    %v1048 = vmul.f32 %v944, 0.03125
    %v1049 = vmul.f32 %v946, 0.03125
    %v1050 = vmul.f32 %v948, 0.03125
    %v1051 = vmul.f32 %v950, 0.03125
    %v1052 = vmul.f32 %v952, 0.03125
    %v1053 = vmul.f32 %v954, 0.03125
    %v1054 = vmul.f32 %v956, 0.03125
    %v1055 = vmul.f32 %v958, 0.03125
    %v1056 = vmul.f32 %v960, 0.03125
    %v1057 = vmul.f32 %v962, 0.03125
    %v1058 = vmul.f32 %v964, 0.03125
    %v1059 = vmul.f32 %v966, 0.03125
    %v1060 = vmul.f32 %v968, 0.03125
    %v1061 = vmul.f32 %v970, 0.03125
    %v1062 = vmul.f32 %v972, 0.03125
    %v1063 = vmul.f32 %v974, 0.03125
    %v1064 = vmul.f32 %v976, 0.03125
    %v1065 = vmul.f32 %v978, 0.03125
    %v1066 = vmul.f32 %v980, 0.03125
    %v1067 = vmul.f32 %v982, 0.03125
    %v1068 = vmul.f32 %v984, 0.03125
    %v1069 = vmul.f32 %v986, 0.03125
    %v1070 = vmul.f32 %v988, 0.03125
    %v1071 = vmul.f32 %v990, 0.03125
    %v1072 = vmul.f32 %v992, 0.03125
    %v1073 = vmul.f32 %v994, 0.03125
    %v1074 = vmul.f32 %v996, 0.03125
    %v1075 = vmul.f32 %v998, 0.03125
    %v1076 = vmul.f32 %v1000, 0.03125
    %v1077 = vmul.f32 %v1002, 0.03125
    %v1078 = vmul.f32 %v1004, 0.03125
    %v1079 = vmul.f32 %v1006, 0.03125
    %v1080 = vmul.f32 %v1008, 0.03125
    %v1081 = vmul.f32 %v1010, 0.03125
    %v1082 = vmul.f32 %v1012, 0.03125
    %v1083 = vmul.f32 %v1014, 0.03125
    %v1084 = vmul.f32 %v1016, 0.03125
    %v1085 = vmul.f32 %v1018, 0.03125
    %v1086 = vmul.f32 %v1020, 0.03125
    %v1087 = vmul.f32 %v1022, 0.03125
    %v1088 = vmul.f32 %v1024, 0.03125
    %vm1089 = vcmp.lt.s32.totalorder %v896, 32
    %v1090 = vsel %vm1089, 1, 0
    %vm1091 = vcmp.eq.s32.totalorder %v1090, 1
    %v1092 = vsel %vm1091, %v831, -1e+30
    %v1093 = vsel %vm1091, %v832, -1e+30
    %v1094 = vsel %vm1091, %v833, -1e+30
    %v1095 = vsel %vm1091, %v834, -1e+30
    %v1096 = vsel %vm1091, %v835, -1e+30
    %v1097 = vsel %vm1091, %v836, -1e+30
    %v1098 = vsel %vm1091, %v837, -1e+30
    %v1099 = vsel %vm1091, %v838, -1e+30
    %v1100 = vsel %vm1091, %v839, -1e+30
    %v1101 = vsel %vm1091, %v840, -1e+30
    %v1102 = vsel %vm1091, %v841, -1e+30
    %v1103 = vsel %vm1091, %v842, -1e+30
    %v1104 = vsel %vm1091, %v843, -1e+30
    %v1105 = vsel %vm1091, %v844, -1e+30
    %v1106 = vsel %vm1091, %v845, -1e+30
    %v1107 = vsel %vm1091, %v846, -1e+30
    %v1108 = vsel %vm1091, %v847, -1e+30
    %v1109 = vsel %vm1091, %v848, -1e+30
    %v1110 = vsel %vm1091, %v849, -1e+30
    %v1111 = vsel %vm1091, %v850, -1e+30
    %v1112 = vsel %vm1091, %v851, -1e+30
    %v1113 = vsel %vm1091, %v852, -1e+30
    %v1114 = vsel %vm1091, %v853, -1e+30
    %v1115 = vsel %vm1091, %v854, -1e+30
    %v1116 = vsel %vm1091, %v855, -1e+30
    %v1117 = vsel %vm1091, %v856, -1e+30
    %v1118 = vsel %vm1091, %v857, -1e+30
    %v1119 = vsel %vm1091, %v858, -1e+30
    %v1120 = vsel %vm1091, %v859, -1e+30
    %v1121 = vsel %vm1091, %v860, -1e+30
    %v1122 = vsel %vm1091, %v861, -1e+30
    %v1123 = vsel %vm1091, %v862, -1e+30
    %v1124 = vsel %vm1091, %v863, -1e+30
    %v1125 = vsel %vm1091, %v864, -1e+30
    %v1126 = vsel %vm1091, %v865, -1e+30
    %v1127 = vsel %vm1091, %v866, -1e+30
    %v1128 = vsel %vm1091, %v867, -1e+30
    %v1129 = vsel %vm1091, %v868, -1e+30
    %v1130 = vsel %vm1091, %v869, -1e+30
    %v1131 = vsel %vm1091, %v870, -1e+30
    %v1132 = vsel %vm1091, %v871, -1e+30
    %v1133 = vsel %vm1091, %v872, -1e+30
    %v1134 = vsel %vm1091, %v873, -1e+30
    %v1135 = vsel %vm1091, %v874, -1e+30
    %v1136 = vsel %vm1091, %v875, -1e+30
    %v1137 = vsel %vm1091, %v876, -1e+30
    %v1138 = vsel %vm1091, %v877, -1e+30
    %v1139 = vsel %vm1091, %v878, -1e+30
    %v1140 = vsel %vm1091, %v879, -1e+30
    %v1141 = vsel %vm1091, %v880, -1e+30
    %v1142 = vsel %vm1091, %v881, -1e+30
    %v1143 = vsel %vm1091, %v882, -1e+30
    %v1144 = vsel %vm1091, %v883, -1e+30
    %v1145 = vsel %vm1091, %v884, -1e+30
    %v1146 = vsel %vm1091, %v885, -1e+30
    %v1147 = vsel %vm1091, %v886, -1e+30
    %v1148 = vsel %vm1091, %v887, -1e+30
    %v1149 = vsel %vm1091, %v888, -1e+30
    %v1150 = vsel %vm1091, %v889, -1e+30
    %v1151 = vsel %vm1091, %v890, -1e+30
    %v1152 = vsel %vm1091, %v891, -1e+30
    %v1153 = vsel %vm1091, %v892, -1e+30
    %v1154 = vsel %vm1091, %v893, -1e+30
    %v1155 = vsel %vm1091, %v894, -1e+30
    %1156 = vmax.xlane.f32.xlu0 %v1092
    %v1157 = vpop.xlane.xlu0 %1156
    %1158 = vmax.xlane.f32.xlu0 %v1093
    %v1159 = vpop.xlane.xlu0 %1158
    %1160 = vmax.xlane.f32.xlu0 %v1094
    %v1161 = vpop.xlane.xlu0 %1160
    %1162 = vmax.xlane.f32.xlu0 %v1095
    %v1163 = vpop.xlane.xlu0 %1162
    %1164 = vmax.xlane.f32.xlu0 %v1096
    %v1165 = vpop.xlane.xlu0 %1164
    %1166 = vmax.xlane.f32.xlu0 %v1097
    %v1167 = vpop.xlane.xlu0 %1166
    %1168 = vmax.xlane.f32.xlu0 %v1098
    %v1169 = vpop.xlane.xlu0 %1168
    %1170 = vmax.xlane.f32.xlu0 %v1099
    %v1171 = vpop.xlane.xlu0 %1170
    %1172 = vmax.xlane.f32.xlu0 %v1100
    %v1173 = vpop.xlane.xlu0 %1172
    %1174 = vmax.xlane.f32.xlu0 %v1101
    %v1175 = vpop.xlane.xlu0 %1174
    %1176 = vmax.xlane.f32.xlu0 %v1102
    %v1177 = vpop.xlane.xlu0 %1176
    %1178 = vmax.xlane.f32.xlu0 %v1103
    %v1179 = vpop.xlane.xlu0 %1178
    %1180 = vmax.xlane.f32.xlu0 %v1104
    %v1181 = vpop.xlane.xlu0 %1180
    %1182 = vmax.xlane.f32.xlu0 %v1105
    %v1183 = vpop.xlane.xlu0 %1182
    %1184 = vmax.xlane.f32.xlu0 %v1106
    %v1185 = vpop.xlane.xlu0 %1184
    %1186 = vmax.xlane.f32.xlu0 %v1107
    %v1187 = vpop.xlane.xlu0 %1186
    %1188 = vmax.xlane.f32.xlu0 %v1108
    %v1189 = vpop.xlane.xlu0 %1188
    %1190 = vmax.xlane.f32.xlu0 %v1109
    %v1191 = vpop.xlane.xlu0 %1190
    %1192 = vmax.xlane.f32.xlu0 %v1110
    %v1193 = vpop.xlane.xlu0 %1192
    %1194 = vmax.xlane.f32.xlu0 %v1111
    %v1195 = vpop.xlane.xlu0 %1194
    %1196 = vmax.xlane.f32.xlu0 %v1112
    %v1197 = vpop.xlane.xlu0 %1196
    %1198 = vmax.xlane.f32.xlu0 %v1113
    %v1199 = vpop.xlane.xlu0 %1198
    %1200 = vmax.xlane.f32.xlu0 %v1114
    %v1201 = vpop.xlane.xlu0 %1200
    %1202 = vmax.xlane.f32.xlu0 %v1115
    %v1203 = vpop.xlane.xlu0 %1202
    %1204 = vmax.xlane.f32.xlu0 %v1116
    %v1205 = vpop.xlane.xlu0 %1204
    %1206 = vmax.xlane.f32.xlu0 %v1117
    %v1207 = vpop.xlane.xlu0 %1206
    %1208 = vmax.xlane.f32.xlu0 %v1118
    %v1209 = vpop.xlane.xlu0 %1208
    %1210 = vmax.xlane.f32.xlu0 %v1119
    %v1211 = vpop.xlane.xlu0 %1210
    %1212 = vmax.xlane.f32.xlu0 %v1120
    %v1213 = vpop.xlane.xlu0 %1212
    %1214 = vmax.xlane.f32.xlu0 %v1121
    %v1215 = vpop.xlane.xlu0 %1214
    %1216 = vmax.xlane.f32.xlu0 %v1122
    %v1217 = vpop.xlane.xlu0 %1216
    %1218 = vmax.xlane.f32.xlu0 %v1123
    %v1219 = vpop.xlane.xlu0 %1218
    %1220 = vmax.xlane.f32.xlu0 %v1124
    %v1221 = vpop.xlane.xlu0 %1220
    %1222 = vmax.xlane.f32.xlu0 %v1125
    %v1223 = vpop.xlane.xlu0 %1222
    %1224 = vmax.xlane.f32.xlu0 %v1126
    %v1225 = vpop.xlane.xlu0 %1224
    %1226 = vmax.xlane.f32.xlu0 %v1127
    %v1227 = vpop.xlane.xlu0 %1226
    %1228 = vmax.xlane.f32.xlu0 %v1128
    %v1229 = vpop.xlane.xlu0 %1228
    %1230 = vmax.xlane.f32.xlu0 %v1129
    %v1231 = vpop.xlane.xlu0 %1230
    %1232 = vmax.xlane.f32.xlu0 %v1130
    %v1233 = vpop.xlane.xlu0 %1232
    %1234 = vmax.xlane.f32.xlu0 %v1131
    %v1235 = vpop.xlane.xlu0 %1234
    %1236 = vmax.xlane.f32.xlu0 %v1132
    %v1237 = vpop.xlane.xlu0 %1236
    %1238 = vmax.xlane.f32.xlu0 %v1133
    %v1239 = vpop.xlane.xlu0 %1238
    %1240 = vmax.xlane.f32.xlu0 %v1134
    %v1241 = vpop.xlane.xlu0 %1240
    %1242 = vmax.xlane.f32.xlu0 %v1135
    %v1243 = vpop.xlane.xlu0 %1242
    %1244 = vmax.xlane.f32.xlu0 %v1136
    %v1245 = vpop.xlane.xlu0 %1244
    %1246 = vmax.xlane.f32.xlu0 %v1137
    %v1247 = vpop.xlane.xlu0 %1246
    %1248 = vmax.xlane.f32.xlu0 %v1138
    %v1249 = vpop.xlane.xlu0 %1248
    %1250 = vmax.xlane.f32.xlu0 %v1139
    %v1251 = vpop.xlane.xlu0 %1250
    %1252 = vmax.xlane.f32.xlu0 %v1140
    %v1253 = vpop.xlane.xlu0 %1252
    %1254 = vmax.xlane.f32.xlu0 %v1141
    %v1255 = vpop.xlane.xlu0 %1254
    %1256 = vmax.xlane.f32.xlu0 %v1142
    %v1257 = vpop.xlane.xlu0 %1256
    %1258 = vmax.xlane.f32.xlu0 %v1143
    %v1259 = vpop.xlane.xlu0 %1258
    %1260 = vmax.xlane.f32.xlu0 %v1144
    %v1261 = vpop.xlane.xlu0 %1260
    %1262 = vmax.xlane.f32.xlu0 %v1145
    %v1263 = vpop.xlane.xlu0 %1262
    %1264 = vmax.xlane.f32.xlu0 %v1146
    %v1265 = vpop.xlane.xlu0 %1264
    %1266 = vmax.xlane.f32.xlu0 %v1147
    %v1267 = vpop.xlane.xlu0 %1266
    %1268 = vmax.xlane.f32.xlu0 %v1148
    %v1269 = vpop.xlane.xlu0 %1268
    %1270 = vmax.xlane.f32.xlu0 %v1149
    %v1271 = vpop.xlane.xlu0 %1270
    %1272 = vmax.xlane.f32.xlu0 %v1150
    %v1273 = vpop.xlane.xlu0 %1272
    %1274 = vmax.xlane.f32.xlu0 %v1151
    %v1275 = vpop.xlane.xlu0 %1274
    %1276 = vmax.xlane.f32.xlu0 %v1152
    %v1277 = vpop.xlane.xlu0 %1276
    %1278 = vmax.xlane.f32.xlu0 %v1153
    %v1279 = vpop.xlane.xlu0 %1278
    %1280 = vmax.xlane.f32.xlu0 %v1154
    %v1281 = vpop.xlane.xlu0 %1280
    %1282 = vmax.xlane.f32.xlu0 %v1155
    %v1283 = vpop.xlane.xlu0 %1282
    %v1348 = vlaneseq
    %v1349 = vshrl.u32 %v1348, 7
    %v1350 = vsub.s32 %v896, %v1349
    %v1351 = vrot.slane %v1025, %v1350
    %v1352 = vadd.s32 %v896, 4294967288
    %v1353 = vlaneseq
    %v1354 = vshrl.u32 %v1353, 7
    %v1355 = vsub.s32 %v1352, %v1354
    %v1356 = vrot.slane %v1026, %v1355
    %vm1357 = vcmask 130112
    %v1358 = vsel %vm1357, %v1356, %v1351
    %v1359 = vadd.s32 %v896, 4294967280
    %v1360 = vlaneseq
    %v1361 = vshrl.u32 %v1360, 7
    %v1362 = vsub.s32 %v1359, %v1361
    %v1363 = vrot.slane %v1027, %v1362
    %vm1364 = vcmask 195712
    %v1365 = vsel %vm1364, %v1363, %v1358
    %v1366 = vadd.s32 %v896, 4294967272
    %v1367 = vlaneseq
    %v1368 = vshrl.u32 %v1367, 7
    %v1369 = vsub.s32 %v1366, %v1368
    %v1370 = vrot.slane %v1028, %v1369
    %vm1371 = vcmask 261312
    %v1372 = vsel %vm1371, %v1370, %v1365
    %v1373 = vadd.s32 %v896, 4294967264
    %v1374 = vlaneseq
    %v1375 = vshrl.u32 %v1374, 7
    %v1376 = vsub.s32 %v1373, %v1375
    %v1377 = vrot.slane %v1029, %v1376
    %vm1378 = vcmask 326912
    %v1379 = vsel %vm1378, %v1377, %v1372
    %v1380 = vadd.s32 %v896, 4294967256
    %v1381 = vlaneseq
    %v1382 = vshrl.u32 %v1381, 7
    %v1383 = vsub.s32 %v1380, %v1382
    %v1384 = vrot.slane %v1030, %v1383
    %vm1385 = vcmask 392512
    %v1386 = vsel %vm1385, %v1384, %v1379
    %v1387 = vadd.s32 %v896, 4294967248
    %v1388 = vlaneseq
    %v1389 = vshrl.u32 %v1388, 7
    %v1390 = vsub.s32 %v1387, %v1389
    %v1391 = vrot.slane %v1031, %v1390
    %vm1392 = vcmask 458112
    %v1393 = vsel %vm1392, %v1391, %v1386
    %v1394 = vadd.s32 %v896, 4294967240
    %v1395 = vlaneseq
    %v1396 = vshrl.u32 %v1395, 7
    %v1397 = vsub.s32 %v1394, %v1396
    %v1398 = vrot.slane %v1032, %v1397
    %vm1399 = vcmask 523712
    %v1400 = vsel %vm1399, %v1398, %v1393
    %v1401 = vadd.s32 %v896, 4294967232
    %v1402 = vlaneseq
    %v1403 = vshrl.u32 %v1402, 7
    %v1404 = vsub.s32 %v1401, %v1403
    %v1405 = vrot.slane %v1033, %v1404
    %vm1406 = vcmask 589312
    %v1407 = vsel %vm1406, %v1405, %v1400
    %v1408 = vadd.s32 %v896, 4294967224
    %v1409 = vlaneseq
    %v1410 = vshrl.u32 %v1409, 7
    %v1411 = vsub.s32 %v1408, %v1410
    %v1412 = vrot.slane %v1034, %v1411
    %vm1413 = vcmask 654912
    %v1414 = vsel %vm1413, %v1412, %v1407
    %v1415 = vadd.s32 %v896, 4294967216
    %v1416 = vlaneseq
    %v1417 = vshrl.u32 %v1416, 7
    %v1418 = vsub.s32 %v1415, %v1417
    %v1419 = vrot.slane %v1035, %v1418
    %vm1420 = vcmask 720512
    %v1421 = vsel %vm1420, %v1419, %v1414
    %v1422 = vadd.s32 %v896, 4294967208
    %v1423 = vlaneseq
    %v1424 = vshrl.u32 %v1423, 7
    %v1425 = vsub.s32 %v1422, %v1424
    %v1426 = vrot.slane %v1036, %v1425
    %vm1427 = vcmask 786112
    %v1428 = vsel %vm1427, %v1426, %v1421
    %v1429 = vadd.s32 %v896, 4294967200
    %v1430 = vlaneseq
    %v1431 = vshrl.u32 %v1430, 7
    %v1432 = vsub.s32 %v1429, %v1431
    %v1433 = vrot.slane %v1037, %v1432
    %vm1434 = vcmask 851712
    %v1435 = vsel %vm1434, %v1433, %v1428
    %v1436 = vadd.s32 %v896, 4294967192
    %v1437 = vlaneseq
    %v1438 = vshrl.u32 %v1437, 7
    %v1439 = vsub.s32 %v1436, %v1438
    %v1440 = vrot.slane %v1038, %v1439
    %vm1441 = vcmask 917312
    %v1442 = vsel %vm1441, %v1440, %v1435
    %v1443 = vadd.s32 %v896, 4294967184
    %v1444 = vlaneseq
    %v1445 = vshrl.u32 %v1444, 7
    %v1446 = vsub.s32 %v1443, %v1445
    %v1447 = vrot.slane %v1039, %v1446
    %vm1448 = vcmask 982912
    %v1449 = vsel %vm1448, %v1447, %v1442
    %v1450 = vadd.s32 %v896, 4294967176
    %v1451 = vlaneseq
    %v1452 = vshrl.u32 %v1451, 7
    %v1453 = vsub.s32 %v1450, %v1452
    %v1454 = vrot.slane %v1040, %v1453
    %vm1455 = vcmask 1048512
    %v1456 = vsel %vm1455, %v1454, %v1449
    %v1457 = vlaneseq
    %v1458 = vshrl.u32 %v1457, 7
    %v1459 = vsub.s32 %v896, %v1458
    %v1460 = vrot.slane %v1041, %v1459
    %v1461 = vlaneseq
    %v1462 = vshrl.u32 %v1461, 7
    %v1463 = vsub.s32 %v1352, %v1462
    %v1464 = vrot.slane %v1042, %v1463
    %v1465 = vsel %vm1357, %v1464, %v1460
    %v1466 = vlaneseq
    %v1467 = vshrl.u32 %v1466, 7
    %v1468 = vsub.s32 %v1359, %v1467
    %v1469 = vrot.slane %v1043, %v1468
    %v1470 = vsel %vm1364, %v1469, %v1465
    %v1471 = vlaneseq
    %v1472 = vshrl.u32 %v1471, 7
    %v1473 = vsub.s32 %v1366, %v1472
    %v1474 = vrot.slane %v1044, %v1473
    %v1475 = vsel %vm1371, %v1474, %v1470
    %v1476 = vlaneseq
    %v1477 = vshrl.u32 %v1476, 7
    %v1478 = vsub.s32 %v1373, %v1477
    %v1479 = vrot.slane %v1045, %v1478
    %v1480 = vsel %vm1378, %v1479, %v1475
    %v1481 = vlaneseq
    %v1482 = vshrl.u32 %v1481, 7
    %v1483 = vsub.s32 %v1380, %v1482
    %v1484 = vrot.slane %v1046, %v1483
    %v1485 = vsel %vm1385, %v1484, %v1480
    %v1486 = vlaneseq
    %v1487 = vshrl.u32 %v1486, 7
    %v1488 = vsub.s32 %v1387, %v1487
    %v1489 = vrot.slane %v1047, %v1488
    %v1490 = vsel %vm1392, %v1489, %v1485
    %v1491 = vlaneseq
    %v1492 = vshrl.u32 %v1491, 7
    %v1493 = vsub.s32 %v1394, %v1492
    %v1494 = vrot.slane %v1048, %v1493
    %v1495 = vsel %vm1399, %v1494, %v1490
    %v1496 = vlaneseq
    %v1497 = vshrl.u32 %v1496, 7
    %v1498 = vsub.s32 %v1401, %v1497
    %v1499 = vrot.slane %v1049, %v1498
    %v1500 = vsel %vm1406, %v1499, %v1495
    %v1501 = vlaneseq
    %v1502 = vshrl.u32 %v1501, 7
    %v1503 = vsub.s32 %v1408, %v1502
    %v1504 = vrot.slane %v1050, %v1503
    %v1505 = vsel %vm1413, %v1504, %v1500
    %v1506 = vlaneseq
    %v1507 = vshrl.u32 %v1506, 7
    %v1508 = vsub.s32 %v1415, %v1507
    %v1509 = vrot.slane %v1051, %v1508
    %v1510 = vsel %vm1420, %v1509, %v1505
    %v1511 = vlaneseq
    %v1512 = vshrl.u32 %v1511, 7
    %v1513 = vsub.s32 %v1422, %v1512
    %v1514 = vrot.slane %v1052, %v1513
    %v1515 = vsel %vm1427, %v1514, %v1510
    %v1516 = vlaneseq
    %v1517 = vshrl.u32 %v1516, 7
    %v1518 = vsub.s32 %v1429, %v1517
    %v1519 = vrot.slane %v1053, %v1518
    %v1520 = vsel %vm1434, %v1519, %v1515
    %v1521 = vlaneseq
    %v1522 = vshrl.u32 %v1521, 7
    %v1523 = vsub.s32 %v1436, %v1522
    %v1524 = vrot.slane %v1054, %v1523
    %v1525 = vsel %vm1441, %v1524, %v1520
    %v1526 = vlaneseq
    %v1527 = vshrl.u32 %v1526, 7
    %v1528 = vsub.s32 %v1443, %v1527
    %v1529 = vrot.slane %v1055, %v1528
    %v1530 = vsel %vm1448, %v1529, %v1525
    %v1531 = vlaneseq
    %v1532 = vshrl.u32 %v1531, 7
    %v1533 = vsub.s32 %v1450, %v1532
    %v1534 = vrot.slane %v1056, %v1533
    %v1535 = vsel %vm1455, %v1534, %v1530
    %v1536 = vlaneseq
    %v1537 = vshrl.u32 %v1536, 7
    %v1538 = vsub.s32 %v896, %v1537
    %v1539 = vrot.slane %v1057, %v1538
    %v1540 = vlaneseq
    %v1541 = vshrl.u32 %v1540, 7
    %v1542 = vsub.s32 %v1352, %v1541
    %v1543 = vrot.slane %v1058, %v1542
    %v1544 = vsel %vm1357, %v1543, %v1539
    %v1545 = vlaneseq
    %v1546 = vshrl.u32 %v1545, 7
    %v1547 = vsub.s32 %v1359, %v1546
    %v1548 = vrot.slane %v1059, %v1547
    %v1549 = vsel %vm1364, %v1548, %v1544
    %v1550 = vlaneseq
    %v1551 = vshrl.u32 %v1550, 7
    %v1552 = vsub.s32 %v1366, %v1551
    %v1553 = vrot.slane %v1060, %v1552
    %v1554 = vsel %vm1371, %v1553, %v1549
    %v1555 = vlaneseq
    %v1556 = vshrl.u32 %v1555, 7
    %v1557 = vsub.s32 %v1373, %v1556
    %v1558 = vrot.slane %v1061, %v1557
    %v1559 = vsel %vm1378, %v1558, %v1554
    %v1560 = vlaneseq
    %v1561 = vshrl.u32 %v1560, 7
    %v1562 = vsub.s32 %v1380, %v1561
    %v1563 = vrot.slane %v1062, %v1562
    %v1564 = vsel %vm1385, %v1563, %v1559
    %v1565 = vlaneseq
    %v1566 = vshrl.u32 %v1565, 7
    %v1567 = vsub.s32 %v1387, %v1566
    %v1568 = vrot.slane %v1063, %v1567
    %v1569 = vsel %vm1392, %v1568, %v1564
    %v1570 = vlaneseq
    %v1571 = vshrl.u32 %v1570, 7
    %v1572 = vsub.s32 %v1394, %v1571
    %v1573 = vrot.slane %v1064, %v1572
    %v1574 = vsel %vm1399, %v1573, %v1569
    %v1575 = vlaneseq
    %v1576 = vshrl.u32 %v1575, 7
    %v1577 = vsub.s32 %v1401, %v1576
    %v1578 = vrot.slane %v1065, %v1577
    %v1579 = vsel %vm1406, %v1578, %v1574
    %v1580 = vlaneseq
    %v1581 = vshrl.u32 %v1580, 7
    %v1582 = vsub.s32 %v1408, %v1581
    %v1583 = vrot.slane %v1066, %v1582
    %v1584 = vsel %vm1413, %v1583, %v1579
    %v1585 = vlaneseq
    %v1586 = vshrl.u32 %v1585, 7
    %v1587 = vsub.s32 %v1415, %v1586
    %v1588 = vrot.slane %v1067, %v1587
    %v1589 = vsel %vm1420, %v1588, %v1584
    %v1590 = vlaneseq
    %v1591 = vshrl.u32 %v1590, 7
    %v1592 = vsub.s32 %v1422, %v1591
    %v1593 = vrot.slane %v1068, %v1592
    %v1594 = vsel %vm1427, %v1593, %v1589
    %v1595 = vlaneseq
    %v1596 = vshrl.u32 %v1595, 7
    %v1597 = vsub.s32 %v1429, %v1596
    %v1598 = vrot.slane %v1069, %v1597
    %v1599 = vsel %vm1434, %v1598, %v1594
    %v1600 = vlaneseq
    %v1601 = vshrl.u32 %v1600, 7
    %v1602 = vsub.s32 %v1436, %v1601
    %v1603 = vrot.slane %v1070, %v1602
    %v1604 = vsel %vm1441, %v1603, %v1599
    %v1605 = vlaneseq
    %v1606 = vshrl.u32 %v1605, 7
    %v1607 = vsub.s32 %v1443, %v1606
    %v1608 = vrot.slane %v1071, %v1607
    %v1609 = vsel %vm1448, %v1608, %v1604
    %v1610 = vlaneseq
    %v1611 = vshrl.u32 %v1610, 7
    %v1612 = vsub.s32 %v1450, %v1611
    %v1613 = vrot.slane %v1072, %v1612
    %v1614 = vsel %vm1455, %v1613, %v1609
    %v1615 = vlaneseq
    %v1616 = vshrl.u32 %v1615, 7
    %v1617 = vsub.s32 %v896, %v1616
    %v1618 = vrot.slane %v1073, %v1617
    %v1619 = vlaneseq
    %v1620 = vshrl.u32 %v1619, 7
    %v1621 = vsub.s32 %v1352, %v1620
    %v1622 = vrot.slane %v1074, %v1621
    %v1623 = vsel %vm1357, %v1622, %v1618
    %v1624 = vlaneseq
    %v1625 = vshrl.u32 %v1624, 7
    %v1626 = vsub.s32 %v1359, %v1625
    %v1627 = vrot.slane %v1075, %v1626
    %v1628 = vsel %vm1364, %v1627, %v1623
    %v1629 = vlaneseq
    %v1630 = vshrl.u32 %v1629, 7
    %v1631 = vsub.s32 %v1366, %v1630
    %v1632 = vrot.slane %v1076, %v1631
    %v1633 = vsel %vm1371, %v1632, %v1628
    %v1634 = vlaneseq
    %v1635 = vshrl.u32 %v1634, 7
    %v1636 = vsub.s32 %v1373, %v1635
    %v1637 = vrot.slane %v1077, %v1636
    %v1638 = vsel %vm1378, %v1637, %v1633
    %v1639 = vlaneseq
    %v1640 = vshrl.u32 %v1639, 7
    %v1641 = vsub.s32 %v1380, %v1640
    %v1642 = vrot.slane %v1078, %v1641
    %v1643 = vsel %vm1385, %v1642, %v1638
    %v1644 = vlaneseq
    %v1645 = vshrl.u32 %v1644, 7
    %v1646 = vsub.s32 %v1387, %v1645
    %v1647 = vrot.slane %v1079, %v1646
    %v1648 = vsel %vm1392, %v1647, %v1643
    %v1649 = vlaneseq
    %v1650 = vshrl.u32 %v1649, 7
    %v1651 = vsub.s32 %v1394, %v1650
    %v1652 = vrot.slane %v1080, %v1651
    %v1653 = vsel %vm1399, %v1652, %v1648
    %v1654 = vlaneseq
    %v1655 = vshrl.u32 %v1654, 7
    %v1656 = vsub.s32 %v1401, %v1655
    %v1657 = vrot.slane %v1081, %v1656
    %v1658 = vsel %vm1406, %v1657, %v1653
    %v1659 = vlaneseq
    %v1660 = vshrl.u32 %v1659, 7
    %v1661 = vsub.s32 %v1408, %v1660
    %v1662 = vrot.slane %v1082, %v1661
    %v1663 = vsel %vm1413, %v1662, %v1658
    %v1664 = vlaneseq
    %v1665 = vshrl.u32 %v1664, 7
    %v1666 = vsub.s32 %v1415, %v1665
    %v1667 = vrot.slane %v1083, %v1666
    %v1668 = vsel %vm1420, %v1667, %v1663
    %v1669 = vlaneseq
    %v1670 = vshrl.u32 %v1669, 7
    %v1671 = vsub.s32 %v1422, %v1670
    %v1672 = vrot.slane %v1084, %v1671
    %v1673 = vsel %vm1427, %v1672, %v1668
    %v1674 = vlaneseq
    %v1675 = vshrl.u32 %v1674, 7
    %v1676 = vsub.s32 %v1429, %v1675
    %v1677 = vrot.slane %v1085, %v1676
    %v1678 = vsel %vm1434, %v1677, %v1673
    %v1679 = vlaneseq
    %v1680 = vshrl.u32 %v1679, 7
    %v1681 = vsub.s32 %v1436, %v1680
    %v1682 = vrot.slane %v1086, %v1681
    %v1683 = vsel %vm1441, %v1682, %v1678
    %v1684 = vlaneseq
    %v1685 = vshrl.u32 %v1684, 7
    %v1686 = vsub.s32 %v1443, %v1685
    %v1687 = vrot.slane %v1087, %v1686
    %v1688 = vsel %vm1448, %v1687, %v1683
    %v1689 = vlaneseq
    %v1690 = vshrl.u32 %v1689, 7
    %v1691 = vsub.s32 %v1450, %v1690
    %v1692 = vrot.slane %v1088, %v1691
    %v1693 = vsel %vm1455, %v1692, %v1688
    %v1694 = vsel %vm601, %v1614, %v1456
    %v1695 = vsel %vm601, %v1693, %v1535
    %v1762 = vlaneseq
    %v1763 = vshrl.u32 %v1762, 7
    %v1764 = vsub.s32 %v896, %v1763
    %v1765 = vrot.slane %v1157, %v1764
    %v1766 = vlaneseq
    %v1767 = vshrl.u32 %v1766, 7
    %v1768 = vsub.s32 %v1352, %v1767
    %v1769 = vrot.slane %v1159, %v1768
    %v1770 = vsel %vm1357, %v1769, %v1765
    %v1771 = vlaneseq
    %v1772 = vshrl.u32 %v1771, 7
    %v1773 = vsub.s32 %v1359, %v1772
    %v1774 = vrot.slane %v1161, %v1773
    %v1775 = vsel %vm1364, %v1774, %v1770
    %v1776 = vlaneseq
    %v1777 = vshrl.u32 %v1776, 7
    %v1778 = vsub.s32 %v1366, %v1777
    %v1779 = vrot.slane %v1163, %v1778
    %v1780 = vsel %vm1371, %v1779, %v1775
    %v1781 = vlaneseq
    %v1782 = vshrl.u32 %v1781, 7
    %v1783 = vsub.s32 %v1373, %v1782
    %v1784 = vrot.slane %v1165, %v1783
    %v1785 = vsel %vm1378, %v1784, %v1780
    %v1786 = vlaneseq
    %v1787 = vshrl.u32 %v1786, 7
    %v1788 = vsub.s32 %v1380, %v1787
    %v1789 = vrot.slane %v1167, %v1788
    %v1790 = vsel %vm1385, %v1789, %v1785
    %v1791 = vlaneseq
    %v1792 = vshrl.u32 %v1791, 7
    %v1793 = vsub.s32 %v1387, %v1792
    %v1794 = vrot.slane %v1169, %v1793
    %v1795 = vsel %vm1392, %v1794, %v1790
    %v1796 = vlaneseq
    %v1797 = vshrl.u32 %v1796, 7
    %v1798 = vsub.s32 %v1394, %v1797
    %v1799 = vrot.slane %v1171, %v1798
    %v1800 = vsel %vm1399, %v1799, %v1795
    %v1801 = vlaneseq
    %v1802 = vshrl.u32 %v1801, 7
    %v1803 = vsub.s32 %v1401, %v1802
    %v1804 = vrot.slane %v1173, %v1803
    %v1805 = vsel %vm1406, %v1804, %v1800
    %v1806 = vlaneseq
    %v1807 = vshrl.u32 %v1806, 7
    %v1808 = vsub.s32 %v1408, %v1807
    %v1809 = vrot.slane %v1175, %v1808
    %v1810 = vsel %vm1413, %v1809, %v1805
    %v1811 = vlaneseq
    %v1812 = vshrl.u32 %v1811, 7
    %v1813 = vsub.s32 %v1415, %v1812
    %v1814 = vrot.slane %v1177, %v1813
    %v1815 = vsel %vm1420, %v1814, %v1810
    %v1816 = vlaneseq
    %v1817 = vshrl.u32 %v1816, 7
    %v1818 = vsub.s32 %v1422, %v1817
    %v1819 = vrot.slane %v1179, %v1818
    %v1820 = vsel %vm1427, %v1819, %v1815
    %v1821 = vlaneseq
    %v1822 = vshrl.u32 %v1821, 7
    %v1823 = vsub.s32 %v1429, %v1822
    %v1824 = vrot.slane %v1181, %v1823
    %v1825 = vsel %vm1434, %v1824, %v1820
    %v1826 = vlaneseq
    %v1827 = vshrl.u32 %v1826, 7
    %v1828 = vsub.s32 %v1436, %v1827
    %v1829 = vrot.slane %v1183, %v1828
    %v1830 = vsel %vm1441, %v1829, %v1825
    %v1831 = vlaneseq
    %v1832 = vshrl.u32 %v1831, 7
    %v1833 = vsub.s32 %v1443, %v1832
    %v1834 = vrot.slane %v1185, %v1833
    %v1835 = vsel %vm1448, %v1834, %v1830
    %v1836 = vlaneseq
    %v1837 = vshrl.u32 %v1836, 7
    %v1838 = vsub.s32 %v1450, %v1837
    %v1839 = vrot.slane %v1187, %v1838
    %v1840 = vsel %vm1455, %v1839, %v1835
    %v1841 = vlaneseq
    %v1842 = vshrl.u32 %v1841, 7
    %v1843 = vsub.s32 %v896, %v1842
    %v1844 = vrot.slane %v1189, %v1843
    %v1845 = vlaneseq
    %v1846 = vshrl.u32 %v1845, 7
    %v1847 = vsub.s32 %v1352, %v1846
    %v1848 = vrot.slane %v1191, %v1847
    %v1849 = vsel %vm1357, %v1848, %v1844
    %v1850 = vlaneseq
    %v1851 = vshrl.u32 %v1850, 7
    %v1852 = vsub.s32 %v1359, %v1851
    %v1853 = vrot.slane %v1193, %v1852
    %v1854 = vsel %vm1364, %v1853, %v1849
    %v1855 = vlaneseq
    %v1856 = vshrl.u32 %v1855, 7
    %v1857 = vsub.s32 %v1366, %v1856
    %v1858 = vrot.slane %v1195, %v1857
    %v1859 = vsel %vm1371, %v1858, %v1854
    %v1860 = vlaneseq
    %v1861 = vshrl.u32 %v1860, 7
    %v1862 = vsub.s32 %v1373, %v1861
    %v1863 = vrot.slane %v1197, %v1862
    %v1864 = vsel %vm1378, %v1863, %v1859
    %v1865 = vlaneseq
    %v1866 = vshrl.u32 %v1865, 7
    %v1867 = vsub.s32 %v1380, %v1866
    %v1868 = vrot.slane %v1199, %v1867
    %v1869 = vsel %vm1385, %v1868, %v1864
    %v1870 = vlaneseq
    %v1871 = vshrl.u32 %v1870, 7
    %v1872 = vsub.s32 %v1387, %v1871
    %v1873 = vrot.slane %v1201, %v1872
    %v1874 = vsel %vm1392, %v1873, %v1869
    %v1875 = vlaneseq
    %v1876 = vshrl.u32 %v1875, 7
    %v1877 = vsub.s32 %v1394, %v1876
    %v1878 = vrot.slane %v1203, %v1877
    %v1879 = vsel %vm1399, %v1878, %v1874
    %v1880 = vlaneseq
    %v1881 = vshrl.u32 %v1880, 7
    %v1882 = vsub.s32 %v1401, %v1881
    %v1883 = vrot.slane %v1205, %v1882
    %v1884 = vsel %vm1406, %v1883, %v1879
    %v1885 = vlaneseq
    %v1886 = vshrl.u32 %v1885, 7
    %v1887 = vsub.s32 %v1408, %v1886
    %v1888 = vrot.slane %v1207, %v1887
    %v1889 = vsel %vm1413, %v1888, %v1884
    %v1890 = vlaneseq
    %v1891 = vshrl.u32 %v1890, 7
    %v1892 = vsub.s32 %v1415, %v1891
    %v1893 = vrot.slane %v1209, %v1892
    %v1894 = vsel %vm1420, %v1893, %v1889
    %v1895 = vlaneseq
    %v1896 = vshrl.u32 %v1895, 7
    %v1897 = vsub.s32 %v1422, %v1896
    %v1898 = vrot.slane %v1211, %v1897
    %v1899 = vsel %vm1427, %v1898, %v1894
    %v1900 = vlaneseq
    %v1901 = vshrl.u32 %v1900, 7
    %v1902 = vsub.s32 %v1429, %v1901
    %v1903 = vrot.slane %v1213, %v1902
    %v1904 = vsel %vm1434, %v1903, %v1899
    %v1905 = vlaneseq
    %v1906 = vshrl.u32 %v1905, 7
    %v1907 = vsub.s32 %v1436, %v1906
    %v1908 = vrot.slane %v1215, %v1907
    %v1909 = vsel %vm1441, %v1908, %v1904
    %v1910 = vlaneseq
    %v1911 = vshrl.u32 %v1910, 7
    %v1912 = vsub.s32 %v1443, %v1911
    %v1913 = vrot.slane %v1217, %v1912
    %v1914 = vsel %vm1448, %v1913, %v1909
    %v1915 = vlaneseq
    %v1916 = vshrl.u32 %v1915, 7
    %v1917 = vsub.s32 %v1450, %v1916
    %v1918 = vrot.slane %v1219, %v1917
    %v1919 = vsel %vm1455, %v1918, %v1914
    %v1920 = vlaneseq
    %v1921 = vshrl.u32 %v1920, 7
    %v1922 = vsub.s32 %v896, %v1921
    %v1923 = vrot.slane %v1221, %v1922
    %v1924 = vlaneseq
    %v1925 = vshrl.u32 %v1924, 7
    %v1926 = vsub.s32 %v1352, %v1925
    %v1927 = vrot.slane %v1223, %v1926
    %v1928 = vsel %vm1357, %v1927, %v1923
    %v1929 = vlaneseq
    %v1930 = vshrl.u32 %v1929, 7
    %v1931 = vsub.s32 %v1359, %v1930
    %v1932 = vrot.slane %v1225, %v1931
    %v1933 = vsel %vm1364, %v1932, %v1928
    %v1934 = vlaneseq
    %v1935 = vshrl.u32 %v1934, 7
    %v1936 = vsub.s32 %v1366, %v1935
    %v1937 = vrot.slane %v1227, %v1936
    %v1938 = vsel %vm1371, %v1937, %v1933
    %v1939 = vlaneseq
    %v1940 = vshrl.u32 %v1939, 7
    %v1941 = vsub.s32 %v1373, %v1940
    %v1942 = vrot.slane %v1229, %v1941
    %v1943 = vsel %vm1378, %v1942, %v1938
    %v1944 = vlaneseq
    %v1945 = vshrl.u32 %v1944, 7
    %v1946 = vsub.s32 %v1380, %v1945
    %v1947 = vrot.slane %v1231, %v1946
    %v1948 = vsel %vm1385, %v1947, %v1943
    %v1949 = vlaneseq
    %v1950 = vshrl.u32 %v1949, 7
    %v1951 = vsub.s32 %v1387, %v1950
    %v1952 = vrot.slane %v1233, %v1951
    %v1953 = vsel %vm1392, %v1952, %v1948
    %v1954 = vlaneseq
    %v1955 = vshrl.u32 %v1954, 7
    %v1956 = vsub.s32 %v1394, %v1955
    %v1957 = vrot.slane %v1235, %v1956
    %v1958 = vsel %vm1399, %v1957, %v1953
    %v1959 = vlaneseq
    %v1960 = vshrl.u32 %v1959, 7
    %v1961 = vsub.s32 %v1401, %v1960
    %v1962 = vrot.slane %v1237, %v1961
    %v1963 = vsel %vm1406, %v1962, %v1958
    %v1964 = vlaneseq
    %v1965 = vshrl.u32 %v1964, 7
    %v1966 = vsub.s32 %v1408, %v1965
    %v1967 = vrot.slane %v1239, %v1966
    %v1968 = vsel %vm1413, %v1967, %v1963
    %v1969 = vlaneseq
    %v1970 = vshrl.u32 %v1969, 7
    %v1971 = vsub.s32 %v1415, %v1970
    %v1972 = vrot.slane %v1241, %v1971
    %v1973 = vsel %vm1420, %v1972, %v1968
    %v1974 = vlaneseq
    %v1975 = vshrl.u32 %v1974, 7
    %v1976 = vsub.s32 %v1422, %v1975
    %v1977 = vrot.slane %v1243, %v1976
    %v1978 = vsel %vm1427, %v1977, %v1973
    %v1979 = vlaneseq
    %v1980 = vshrl.u32 %v1979, 7
    %v1981 = vsub.s32 %v1429, %v1980
    %v1982 = vrot.slane %v1245, %v1981
    %v1983 = vsel %vm1434, %v1982, %v1978
    %v1984 = vlaneseq
    %v1985 = vshrl.u32 %v1984, 7
    %v1986 = vsub.s32 %v1436, %v1985
    %v1987 = vrot.slane %v1247, %v1986
    %v1988 = vsel %vm1441, %v1987, %v1983
    %v1989 = vlaneseq
    %v1990 = vshrl.u32 %v1989, 7
    %v1991 = vsub.s32 %v1443, %v1990
    %v1992 = vrot.slane %v1249, %v1991
    %v1993 = vsel %vm1448, %v1992, %v1988
    %v1994 = vlaneseq
    %v1995 = vshrl.u32 %v1994, 7
    %v1996 = vsub.s32 %v1450, %v1995
    %v1997 = vrot.slane %v1251, %v1996
    %v1998 = vsel %vm1455, %v1997, %v1993
    %v1999 = vlaneseq
    %v2000 = vshrl.u32 %v1999, 7
    %v2001 = vsub.s32 %v896, %v2000
    %v2002 = vrot.slane %v1253, %v2001
    %v2003 = vlaneseq
    %v2004 = vshrl.u32 %v2003, 7
    %v2005 = vsub.s32 %v1352, %v2004
    %v2006 = vrot.slane %v1255, %v2005
    %v2007 = vsel %vm1357, %v2006, %v2002
    %v2008 = vlaneseq
    %v2009 = vshrl.u32 %v2008, 7
    %v2010 = vsub.s32 %v1359, %v2009
    %v2011 = vrot.slane %v1257, %v2010
    %v2012 = vsel %vm1364, %v2011, %v2007
    %v2013 = vlaneseq
    %v2014 = vshrl.u32 %v2013, 7
    %v2015 = vsub.s32 %v1366, %v2014
    %v2016 = vrot.slane %v1259, %v2015
    %v2017 = vsel %vm1371, %v2016, %v2012
    %v2018 = vlaneseq
    %v2019 = vshrl.u32 %v2018, 7
    %v2020 = vsub.s32 %v1373, %v2019
    %v2021 = vrot.slane %v1261, %v2020
    %v2022 = vsel %vm1378, %v2021, %v2017
    %v2023 = vlaneseq
    %v2024 = vshrl.u32 %v2023, 7
    %v2025 = vsub.s32 %v1380, %v2024
    %v2026 = vrot.slane %v1263, %v2025
    %v2027 = vsel %vm1385, %v2026, %v2022
    %v2028 = vlaneseq
    %v2029 = vshrl.u32 %v2028, 7
    %v2030 = vsub.s32 %v1387, %v2029
    %v2031 = vrot.slane %v1265, %v2030
    %v2032 = vsel %vm1392, %v2031, %v2027
    %v2033 = vlaneseq
    %v2034 = vshrl.u32 %v2033, 7
    %v2035 = vsub.s32 %v1394, %v2034
    %v2036 = vrot.slane %v1267, %v2035
    %v2037 = vsel %vm1399, %v2036, %v2032
    %v2038 = vlaneseq
    %v2039 = vshrl.u32 %v2038, 7
    %v2040 = vsub.s32 %v1401, %v2039
    %v2041 = vrot.slane %v1269, %v2040
    %v2042 = vsel %vm1406, %v2041, %v2037
    %v2043 = vlaneseq
    %v2044 = vshrl.u32 %v2043, 7
    %v2045 = vsub.s32 %v1408, %v2044
    %v2046 = vrot.slane %v1271, %v2045
    %v2047 = vsel %vm1413, %v2046, %v2042
    %v2048 = vlaneseq
    %v2049 = vshrl.u32 %v2048, 7
    %v2050 = vsub.s32 %v1415, %v2049
    %v2051 = vrot.slane %v1273, %v2050
    %v2052 = vsel %vm1420, %v2051, %v2047
    %v2053 = vlaneseq
    %v2054 = vshrl.u32 %v2053, 7
    %v2055 = vsub.s32 %v1422, %v2054
    %v2056 = vrot.slane %v1275, %v2055
    %v2057 = vsel %vm1427, %v2056, %v2052
    %v2058 = vlaneseq
    %v2059 = vshrl.u32 %v2058, 7
    %v2060 = vsub.s32 %v1429, %v2059
    %v2061 = vrot.slane %v1277, %v2060
    %v2062 = vsel %vm1434, %v2061, %v2057
    %v2063 = vlaneseq
    %v2064 = vshrl.u32 %v2063, 7
    %v2065 = vsub.s32 %v1436, %v2064
    %v2066 = vrot.slane %v1279, %v2065
    %v2067 = vsel %vm1441, %v2066, %v2062
    %v2068 = vlaneseq
    %v2069 = vshrl.u32 %v2068, 7
    %v2070 = vsub.s32 %v1443, %v2069
    %v2071 = vrot.slane %v1281, %v2070
    %v2072 = vsel %vm1448, %v2071, %v2067
    %v2073 = vlaneseq
    %v2074 = vshrl.u32 %v2073, 7
    %v2075 = vsub.s32 %v1450, %v2074
    %v2076 = vrot.slane %v1283, %v2075
    %v2077 = vsel %vm1455, %v2076, %v2072
    %v2078 = vsel %vm601, %v1998, %v1840
    %v2079 = vsel %vm601, %v2077, %v1919
    %v2082 = vld [vmem:[%s5] sm:$0xff]
    %v2083 = vld [vmem:[%s5 + $0x8] sm:$0xff]
    %v2084 = vld [vmem:[%s5 + $0x10] sm:$0xff]
    %v2085 = vld [vmem:[%s5 + $0x18] sm:$0xff]
    %v2086 = vld [vmem:[%s5 + $0x20] sm:$0xff]
    %v2087 = vld [vmem:[%s5 + $0x28] sm:$0xff]
    %v2088 = vld [vmem:[%s5 + $0x30] sm:$0xff]
    %v2089 = vld [vmem:[%s5 + $0x38] sm:$0xff]
    %v2090 = vld [vmem:[%s5 + $0x40] sm:$0xff]
    %v2091 = vld [vmem:[%s5 + $0x48] sm:$0xff]
    %v2092 = vld [vmem:[%s5 + $0x50] sm:$0xff]
    %v2093 = vld [vmem:[%s5 + $0x58] sm:$0xff]
    %v2094 = vld [vmem:[%s5 + $0x60] sm:$0xff]
    %v2095 = vld [vmem:[%s5 + $0x68] sm:$0xff]
    %v2096 = vld [vmem:[%s5 + $0x70] sm:$0xff]
    %v2097 = vld [vmem:[%s5 + $0x78] sm:$0xff]
    %v2098 = vld [vmem:[%s5 + $0x80] sm:$0xff]
    %v2099 = vld [vmem:[%s5 + $0x88] sm:$0xff]
    %v2100 = vld [vmem:[%s5 + $0x90] sm:$0xff]
    %v2101 = vld [vmem:[%s5 + $0x98] sm:$0xff]
    %v2102 = vld [vmem:[%s5 + $0xa0] sm:$0xff]
    %v2103 = vld [vmem:[%s5 + $0xa8] sm:$0xff]
    %v2104 = vld [vmem:[%s5 + $0xb0] sm:$0xff]
    %v2105 = vld [vmem:[%s5 + $0xb8] sm:$0xff]
    %v2106 = vld [vmem:[%s5 + $0xc0] sm:$0xff]
    %v2107 = vld [vmem:[%s5 + $0xc8] sm:$0xff]
    %v2108 = vld [vmem:[%s5 + $0xd0] sm:$0xff]
    %v2109 = vld [vmem:[%s5 + $0xd8] sm:$0xff]
    %v2110 = vld [vmem:[%s5 + $0xe0] sm:$0xff]
    %v2111 = vld [vmem:[%s5 + $0xe8] sm:$0xff]
    %v2112 = vld [vmem:[%s5 + $0xf0] sm:$0xff]
    %v2113 = vld [vmem:[%s5 + $0xf8] sm:$0xff]
    %v2114 = vld [vmem:[%s5 + $0x100] sm:$0xff]
    %v2115 = vld [vmem:[%s5 + $0x108] sm:$0xff]
    %v2116 = vld [vmem:[%s5 + $0x110] sm:$0xff]
    %v2117 = vld [vmem:[%s5 + $0x118] sm:$0xff]
    %v2118 = vld [vmem:[%s5 + $0x120] sm:$0xff]
    %v2119 = vld [vmem:[%s5 + $0x128] sm:$0xff]
    %v2120 = vld [vmem:[%s5 + $0x130] sm:$0xff]
    %v2121 = vld [vmem:[%s5 + $0x138] sm:$0xff]
    %v2122 = vld [vmem:[%s5 + $0x140] sm:$0xff]
    %v2123 = vld [vmem:[%s5 + $0x148] sm:$0xff]
    %v2124 = vld [vmem:[%s5 + $0x150] sm:$0xff]
    %v2125 = vld [vmem:[%s5 + $0x158] sm:$0xff]
    %v2126 = vld [vmem:[%s5 + $0x160] sm:$0xff]
    %v2127 = vld [vmem:[%s5 + $0x168] sm:$0xff]
    %v2128 = vld [vmem:[%s5 + $0x170] sm:$0xff]
    %v2129 = vld [vmem:[%s5 + $0x178] sm:$0xff]
    %v2130 = vld [vmem:[%s5 + $0x180] sm:$0xff]
    %v2131 = vld [vmem:[%s5 + $0x188] sm:$0xff]
    %v2132 = vld [vmem:[%s5 + $0x190] sm:$0xff]
    %v2133 = vld [vmem:[%s5 + $0x198] sm:$0xff]
    %v2134 = vld [vmem:[%s5 + $0x1a0] sm:$0xff]
    %v2135 = vld [vmem:[%s5 + $0x1a8] sm:$0xff]
    %v2136 = vld [vmem:[%s5 + $0x1b0] sm:$0xff]
    %v2137 = vld [vmem:[%s5 + $0x1b8] sm:$0xff]
    %v2138 = vld [vmem:[%s5 + $0x1c0] sm:$0xff]
    %v2139 = vld [vmem:[%s5 + $0x1c8] sm:$0xff]
    %v2140 = vld [vmem:[%s5 + $0x1d0] sm:$0xff]
    %v2141 = vld [vmem:[%s5 + $0x1d8] sm:$0xff]
    %v2142 = vld [vmem:[%s5 + $0x1e0] sm:$0xff]
    %v2143 = vld [vmem:[%s5 + $0x1e8] sm:$0xff]
    %v2144 = vld [vmem:[%s5 + $0x1f0] sm:$0xff]
    %v2145 = vld [vmem:[%s5 + $0x1f8] sm:$0xff]
    %v2146 = vld [vmem:[%s5 + $0x200] sm:$0xff]
    %v2147 = vld [vmem:[%s5 + $0x208] sm:$0xff]
    %v2148 = vld [vmem:[%s5 + $0x210] sm:$0xff]
    %v2149 = vld [vmem:[%s5 + $0x218] sm:$0xff]
    %v2150 = vld [vmem:[%s5 + $0x220] sm:$0xff]
    %v2151 = vld [vmem:[%s5 + $0x228] sm:$0xff]
    %v2152 = vld [vmem:[%s5 + $0x230] sm:$0xff]
    %v2153 = vld [vmem:[%s5 + $0x238] sm:$0xff]
    %v2154 = vld [vmem:[%s5 + $0x240] sm:$0xff]
    %v2155 = vld [vmem:[%s5 + $0x248] sm:$0xff]
    %v2156 = vld [vmem:[%s5 + $0x250] sm:$0xff]
    %v2157 = vld [vmem:[%s5 + $0x258] sm:$0xff]
    %v2158 = vld [vmem:[%s5 + $0x260] sm:$0xff]
    %v2159 = vld [vmem:[%s5 + $0x268] sm:$0xff]
    %v2160 = vld [vmem:[%s5 + $0x270] sm:$0xff]
    %v2161 = vld [vmem:[%s5 + $0x278] sm:$0xff]
    %v2162 = vld [vmem:[%s5 + $0x280] sm:$0xff]
    %v2163 = vld [vmem:[%s5 + $0x288] sm:$0xff]
    %v2164 = vld [vmem:[%s5 + $0x290] sm:$0xff]
    %v2165 = vld [vmem:[%s5 + $0x298] sm:$0xff]
    %v2166 = vld [vmem:[%s5 + $0x2a0] sm:$0xff]
    %v2167 = vld [vmem:[%s5 + $0x2a8] sm:$0xff]
    %v2168 = vld [vmem:[%s5 + $0x2b0] sm:$0xff]
    %v2169 = vld [vmem:[%s5 + $0x2b8] sm:$0xff]
    %v2170 = vld [vmem:[%s5 + $0x2c0] sm:$0xff]
    %v2171 = vld [vmem:[%s5 + $0x2c8] sm:$0xff]
    %v2172 = vld [vmem:[%s5 + $0x2d0] sm:$0xff]
    %v2173 = vld [vmem:[%s5 + $0x2d8] sm:$0xff]
    %v2174 = vld [vmem:[%s5 + $0x2e0] sm:$0xff]
    %v2175 = vld [vmem:[%s5 + $0x2e8] sm:$0xff]
    %v2176 = vld [vmem:[%s5 + $0x2f0] sm:$0xff]
    %v2177 = vld [vmem:[%s5 + $0x2f8] sm:$0xff]
    %v2178 = vld [vmem:[%s5 + $0x300] sm:$0xff]
    %v2179 = vld [vmem:[%s5 + $0x308] sm:$0xff]
    %v2180 = vld [vmem:[%s5 + $0x310] sm:$0xff]
    %v2181 = vld [vmem:[%s5 + $0x318] sm:$0xff]
    %v2182 = vld [vmem:[%s5 + $0x320] sm:$0xff]
    %v2183 = vld [vmem:[%s5 + $0x328] sm:$0xff]
    %v2184 = vld [vmem:[%s5 + $0x330] sm:$0xff]
    %v2185 = vld [vmem:[%s5 + $0x338] sm:$0xff]
    %v2186 = vld [vmem:[%s5 + $0x340] sm:$0xff]
    %v2187 = vld [vmem:[%s5 + $0x348] sm:$0xff]
    %v2188 = vld [vmem:[%s5 + $0x350] sm:$0xff]
    %v2189 = vld [vmem:[%s5 + $0x358] sm:$0xff]
    %v2190 = vld [vmem:[%s5 + $0x360] sm:$0xff]
    %v2191 = vld [vmem:[%s5 + $0x368] sm:$0xff]
    %v2192 = vld [vmem:[%s5 + $0x370] sm:$0xff]
    %v2193 = vld [vmem:[%s5 + $0x378] sm:$0xff]
    %v2194 = vld [vmem:[%s5 + $0x380] sm:$0xff]
    %v2195 = vld [vmem:[%s5 + $0x388] sm:$0xff]
    %v2196 = vld [vmem:[%s5 + $0x390] sm:$0xff]
    %v2197 = vld [vmem:[%s5 + $0x398] sm:$0xff]
    %v2198 = vld [vmem:[%s5 + $0x3a0] sm:$0xff]
    %v2199 = vld [vmem:[%s5 + $0x3a8] sm:$0xff]
    %v2200 = vld [vmem:[%s5 + $0x3b0] sm:$0xff]
    %v2201 = vld [vmem:[%s5 + $0x3b8] sm:$0xff]
    %v2202 = vld [vmem:[%s5 + $0x3c0] sm:$0xff]
    %v2203 = vld [vmem:[%s5 + $0x3c8] sm:$0xff]
    %v2204 = vld [vmem:[%s5 + $0x3d0] sm:$0xff]
    %v2205 = vld [vmem:[%s5 + $0x3d8] sm:$0xff]
    %v2206 = vld [vmem:[%s5 + $0x3e0] sm:$0xff]
    %v2207 = vld [vmem:[%s5 + $0x3e8] sm:$0xff]
    %v2208 = vld [vmem:[%s5 + $0x3f0] sm:$0xff]
    %v2209 = vld [vmem:[%s5 + $0x3f8] sm:$0xff]
    %2210 = vmatprep.subr.mxu0 %v2113
    %2211 = vmatpush1.msra.mxu0 %v2112
    %2212 = vmatprep.subr.mxu0 %v2111
    %2213 = vmatpush1.msra.mxu0 %v2110
    %2214 = vmatprep.subr.mxu0 %v2109
    %2215 = vmatpush1.msra.mxu0 %v2108
    %2216 = vmatprep.subr.mxu0 %v2107
    %2217 = vmatpush1.msra.mxu0 %v2106
    %2218 = vmatprep.subr.mxu0 %v2105
    %2219 = vmatpush1.msra.mxu0 %v2104
    %2220 = vmatprep.subr.mxu0 %v2103
    %2221 = vmatpush1.msra.mxu0 %v2102
    %2222 = vmatprep.subr.mxu0 %v2101
    %2223 = vmatpush1.msra.mxu0 %v2100
    %2224 = vmatprep.subr.mxu0 %v2099
    %2225 = vmatpush1.msra.mxu0 %v2098
    %2226 = vmatprep.subr.mxu0 %v2097
    %2227 = vmatpush1.msra.mxu0 %v2096
    %2228 = vmatprep.subr.mxu0 %v2095
    %2229 = vmatpush1.msra.mxu0 %v2094
    %2230 = vmatprep.subr.mxu0 %v2093
    %2231 = vmatpush1.msra.mxu0 %v2092
    %2232 = vmatprep.subr.mxu0 %v2091
    %2233 = vmatpush1.msra.mxu0 %v2090
    %2234 = vmatprep.subr.mxu0 %v2089
    %2235 = vmatpush1.msra.mxu0 %v2088
    %2236 = vmatprep.subr.mxu0 %v2087
    %2237 = vmatpush1.msra.mxu0 %v2086
    %2238 = vmatprep.subr.mxu0 %v2085
    %2239 = vmatpush1.msra.mxu0 %v2084
    %2240 = vmatprep.subr.mxu0 %v2083
    %2241 = vmatpush1.msra.mxu0 %v2082
    %2242 = vmatprep.subr.mxu0 %v2145
    %2243 = vmatpush2.msra.mxu0 %v2144
    %2244 = vmatprep.subr.mxu0 %v2143
    %2245 = vmatpush2.msra.mxu0 %v2142
    %2246 = vmatprep.subr.mxu0 %v2141
    %2247 = vmatpush2.msra.mxu0 %v2140
    %2248 = vmatprep.subr.mxu0 %v2139
    %2249 = vmatpush2.msra.mxu0 %v2138
    %2250 = vmatprep.subr.mxu0 %v2137
    %2251 = vmatpush2.msra.mxu0 %v2136
    %2252 = vmatprep.subr.mxu0 %v2135
    %2253 = vmatpush2.msra.mxu0 %v2134
    %2254 = vmatprep.subr.mxu0 %v2133
    %2255 = vmatpush2.msra.mxu0 %v2132
    %2256 = vmatprep.subr.mxu0 %v2131
    %2257 = vmatpush2.msra.mxu0 %v2130
    %2258 = vmatprep.subr.mxu0 %v2129
    %2259 = vmatpush2.msra.mxu0 %v2128
    %2260 = vmatprep.subr.mxu0 %v2127
    %2261 = vmatpush2.msra.mxu0 %v2126
    %2262 = vmatprep.subr.mxu0 %v2125
    %2263 = vmatpush2.msra.mxu0 %v2124
    %2264 = vmatprep.subr.mxu0 %v2123
    %2265 = vmatpush2.msra.mxu0 %v2122
    %2266 = vmatprep.subr.mxu0 %v2121
    %2267 = vmatpush2.msra.mxu0 %v2120
    %2268 = vmatprep.subr.mxu0 %v2119
    %2269 = vmatpush2.msra.mxu0 %v2118
    %2270 = vmatprep.subr.mxu0 %v2117
    %2271 = vmatpush2.msra.mxu0 %v2116
    %2272 = vmatprep.subr.mxu0 %v2115
    %2273 = vmatpush2.msra.mxu0 %v2114
    %2274 = vmatprep.mubr.f32.mxu0 %v1695
    %2275 = vmatmul.mubr.f32.gmra.mxu0 %v1694
    %v2276 = vpop.f32.mrf.mxu0
    %v2277 = vadd.f32 0.0, %v2276
    %v2278 = vpop.f32.mrf.mxu0
    %v2279 = vadd.f32 0.0, %v2278
    %2280 = vdwg.mxu0
    %2281 = vmatprep.subr.mxu0 %v2177
    %2282 = vmatpush1.msra.mxu0 %v2176
    %2283 = vmatprep.subr.mxu0 %v2175
    %2284 = vmatpush1.msra.mxu0 %v2174
    %2285 = vmatprep.subr.mxu0 %v2173
    %2286 = vmatpush1.msra.mxu0 %v2172
    %2287 = vmatprep.subr.mxu0 %v2171
    %2288 = vmatpush1.msra.mxu0 %v2170
    %2289 = vmatprep.subr.mxu0 %v2169
    %2290 = vmatpush1.msra.mxu0 %v2168
    %2291 = vmatprep.subr.mxu0 %v2167
    %2292 = vmatpush1.msra.mxu0 %v2166
    %2293 = vmatprep.subr.mxu0 %v2165
    %2294 = vmatpush1.msra.mxu0 %v2164
    %2295 = vmatprep.subr.mxu0 %v2163
    %2296 = vmatpush1.msra.mxu0 %v2162
    %2297 = vmatprep.subr.mxu0 %v2161
    %2298 = vmatpush1.msra.mxu0 %v2160
    %2299 = vmatprep.subr.mxu0 %v2159
    %2300 = vmatpush1.msra.mxu0 %v2158
    %2301 = vmatprep.subr.mxu0 %v2157
    %2302 = vmatpush1.msra.mxu0 %v2156
    %2303 = vmatprep.subr.mxu0 %v2155
    %2304 = vmatpush1.msra.mxu0 %v2154
    %2305 = vmatprep.subr.mxu0 %v2153
    %2306 = vmatpush1.msra.mxu0 %v2152
    %2307 = vmatprep.subr.mxu0 %v2151
    %2308 = vmatpush1.msra.mxu0 %v2150
    %2309 = vmatprep.subr.mxu0 %v2149
    %2310 = vmatpush1.msra.mxu0 %v2148
    %2311 = vmatprep.subr.mxu0 %v2147
    %2312 = vmatpush1.msra.mxu0 %v2146
    %2313 = vmatprep.subr.mxu0 %v2209
    %2314 = vmatpush2.msra.mxu0 %v2208
    %2315 = vmatprep.subr.mxu0 %v2207
    %2316 = vmatpush2.msra.mxu0 %v2206
    %2317 = vmatprep.subr.mxu0 %v2205
    %2318 = vmatpush2.msra.mxu0 %v2204
    %2319 = vmatprep.subr.mxu0 %v2203
    %2320 = vmatpush2.msra.mxu0 %v2202
    %2321 = vmatprep.subr.mxu0 %v2201
    %2322 = vmatpush2.msra.mxu0 %v2200
    %2323 = vmatprep.subr.mxu0 %v2199
    %2324 = vmatpush2.msra.mxu0 %v2198
    %2325 = vmatprep.subr.mxu0 %v2197
    %2326 = vmatpush2.msra.mxu0 %v2196
    %2327 = vmatprep.subr.mxu0 %v2195
    %2328 = vmatpush2.msra.mxu0 %v2194
    %2329 = vmatprep.subr.mxu0 %v2193
    %2330 = vmatpush2.msra.mxu0 %v2192
    %2331 = vmatprep.subr.mxu0 %v2191
    %2332 = vmatpush2.msra.mxu0 %v2190
    %2333 = vmatprep.subr.mxu0 %v2189
    %2334 = vmatpush2.msra.mxu0 %v2188
    %2335 = vmatprep.subr.mxu0 %v2187
    %2336 = vmatpush2.msra.mxu0 %v2186
    %2337 = vmatprep.subr.mxu0 %v2185
    %2338 = vmatpush2.msra.mxu0 %v2184
    %2339 = vmatprep.subr.mxu0 %v2183
    %2340 = vmatpush2.msra.mxu0 %v2182
    %2341 = vmatprep.subr.mxu0 %v2181
    %2342 = vmatpush2.msra.mxu0 %v2180
    %2343 = vmatprep.subr.mxu0 %v2179
    %2344 = vmatpush2.msra.mxu0 %v2178
    %2345 = vmatprep.mubr.f32.mxu0 %v2079
    %2346 = vmatmul.mubr.f32.gmra.mxu0 %v2078
    %v2347 = vpop.f32.mrf.mxu0
    %v2348 = vadd.f32 %v2277, %v2347
    %v2349 = vpop.f32.mrf.mxu0
    %v2350 = vadd.f32 %v2279, %v2349
    %2351 = vdwg.mxu0
    %v2352 = vxor.u32 %v2348, 2147483648
    %v2353 = vxor.u32 %v2350, 2147483648
    %v2354 = vmul.f32 %v2352, 1.442695
    %v2355 = vpow.pop %v2354
    %v2356 = vmul.f32 %v2353, 1.442695
    %v2357 = vpow.pop %v2356
    %v2358 = vadd.f32 %v2355, 1.0
    %v2359 = vadd.f32 %v2357, 1.0
    %v2360 = vrcp.pop %v2358
    %v2361 = vmul.f32 1.0, %v2360
    %v2362 = vrcp.pop %v2359
    %v2363 = vmul.f32 1.0, %v2362
    %v2364 = vlaneseq
    %v2365 = vshrl.u32 %v2364, 7
    %v2366 = vsub.s32 0, %v2365
    %v2367 = vrot.slane %v2361, %v2366
    %2369 = vbcast.lane.b32.xlu0 %v2367, 256
    %v2370 = vpop.permute.xlu0 %2369
    %s2372 = sor.u32 256, 8
    %2373 = vbcast.lane.b32.xlu0 %v2367, %s2372
    %v2374 = vpop.permute.xlu0 %2373
    %s2376 = sor.u32 256, 16
    %2377 = vbcast.lane.b32.xlu0 %v2367, %s2376
    %v2378 = vpop.permute.xlu0 %2377
    %s2380 = sor.u32 256, 24
    %2381 = vbcast.lane.b32.xlu0 %v2367, %s2380
    %v2382 = vpop.permute.xlu0 %2381
    %s2384 = sor.u32 256, 32
    %2385 = vbcast.lane.b32.xlu0 %v2367, %s2384
    %v2386 = vpop.permute.xlu0 %2385
    %s2388 = sor.u32 256, 40
    %2389 = vbcast.lane.b32.xlu0 %v2367, %s2388
    %v2390 = vpop.permute.xlu0 %2389
    %s2392 = sor.u32 256, 48
    %2393 = vbcast.lane.b32.xlu0 %v2367, %s2392
    %v2394 = vpop.permute.xlu0 %2393
    %s2396 = sor.u32 256, 56
    %2397 = vbcast.lane.b32.xlu0 %v2367, %s2396
    %v2398 = vpop.permute.xlu0 %2397
    %s2400 = sor.u32 256, 64
    %2401 = vbcast.lane.b32.xlu0 %v2367, %s2400
    %v2402 = vpop.permute.xlu0 %2401
    %s2404 = sor.u32 256, 72
    %2405 = vbcast.lane.b32.xlu0 %v2367, %s2404
    %v2406 = vpop.permute.xlu0 %2405
    %s2408 = sor.u32 256, 80
    %2409 = vbcast.lane.b32.xlu0 %v2367, %s2408
    %v2410 = vpop.permute.xlu0 %2409
    %s2412 = sor.u32 256, 88
    %2413 = vbcast.lane.b32.xlu0 %v2367, %s2412
    %v2414 = vpop.permute.xlu0 %2413
    %s2416 = sor.u32 256, 96
    %2417 = vbcast.lane.b32.xlu0 %v2367, %s2416
    %v2418 = vpop.permute.xlu0 %2417
    %s2420 = sor.u32 256, 104
    %2421 = vbcast.lane.b32.xlu0 %v2367, %s2420
    %v2422 = vpop.permute.xlu0 %2421
    %s2424 = sor.u32 256, 112
    %2425 = vbcast.lane.b32.xlu0 %v2367, %s2424
    %v2426 = vpop.permute.xlu0 %2425
    %s2428 = sor.u32 256, 120
    %2429 = vbcast.lane.b32.xlu0 %v2367, %s2428
    %v2430 = vpop.permute.xlu0 %2429
    %v2431 = vlaneseq
    %v2432 = vshrl.u32 %v2431, 7
    %v2433 = vsub.s32 0, %v2432
    %v2434 = vrot.slane %v2363, %v2433
    %2436 = vbcast.lane.b32.xlu0 %v2434, 256
    %v2437 = vpop.permute.xlu0 %2436
    %s2439 = sor.u32 256, 8
    %2440 = vbcast.lane.b32.xlu0 %v2434, %s2439
    %v2441 = vpop.permute.xlu0 %2440
    %s2443 = sor.u32 256, 16
    %2444 = vbcast.lane.b32.xlu0 %v2434, %s2443
    %v2445 = vpop.permute.xlu0 %2444
    %s2447 = sor.u32 256, 24
    %2448 = vbcast.lane.b32.xlu0 %v2434, %s2447
    %v2449 = vpop.permute.xlu0 %2448
    %s2451 = sor.u32 256, 32
    %2452 = vbcast.lane.b32.xlu0 %v2434, %s2451
    %v2453 = vpop.permute.xlu0 %2452
    %s2455 = sor.u32 256, 40
    %2456 = vbcast.lane.b32.xlu0 %v2434, %s2455
    %v2457 = vpop.permute.xlu0 %2456
    %s2459 = sor.u32 256, 48
    %2460 = vbcast.lane.b32.xlu0 %v2434, %s2459
    %v2461 = vpop.permute.xlu0 %2460
    %s2463 = sor.u32 256, 56
    %2464 = vbcast.lane.b32.xlu0 %v2434, %s2463
    %v2465 = vpop.permute.xlu0 %2464
    %s2467 = sor.u32 256, 64
    %2468 = vbcast.lane.b32.xlu0 %v2434, %s2467
    %v2469 = vpop.permute.xlu0 %2468
    %s2471 = sor.u32 256, 72
    %2472 = vbcast.lane.b32.xlu0 %v2434, %s2471
    %v2473 = vpop.permute.xlu0 %2472
    %s2475 = sor.u32 256, 80
    %2476 = vbcast.lane.b32.xlu0 %v2434, %s2475
    %v2477 = vpop.permute.xlu0 %2476
    %s2479 = sor.u32 256, 88
    %2480 = vbcast.lane.b32.xlu0 %v2434, %s2479
    %v2481 = vpop.permute.xlu0 %2480
    %s2483 = sor.u32 256, 96
    %2484 = vbcast.lane.b32.xlu0 %v2434, %s2483
    %v2485 = vpop.permute.xlu0 %2484
    %s2487 = sor.u32 256, 104
    %2488 = vbcast.lane.b32.xlu0 %v2434, %s2487
    %v2489 = vpop.permute.xlu0 %2488
    %s2491 = sor.u32 256, 112
    %2492 = vbcast.lane.b32.xlu0 %v2434, %s2491
    %v2493 = vpop.permute.xlu0 %2492
    %s2495 = sor.u32 256, 120
    %2496 = vbcast.lane.b32.xlu0 %v2434, %s2495
    %v2497 = vpop.permute.xlu0 %2496
    %v2498 = vlaneseq
    %v2499 = vshrl.u32 %v2498, 7
    %v2500 = vsub.s32 1, %v2499
    %v2501 = vrot.slane %v2361, %v2500
    %2503 = vbcast.lane.b32.xlu0 %v2501, 256
    %v2504 = vpop.permute.xlu0 %2503
    %s2506 = sor.u32 256, 8
    %2507 = vbcast.lane.b32.xlu0 %v2501, %s2506
    %v2508 = vpop.permute.xlu0 %2507
    %s2510 = sor.u32 256, 16
    %2511 = vbcast.lane.b32.xlu0 %v2501, %s2510
    %v2512 = vpop.permute.xlu0 %2511
    %s2514 = sor.u32 256, 24
    %2515 = vbcast.lane.b32.xlu0 %v2501, %s2514
    %v2516 = vpop.permute.xlu0 %2515
    %s2518 = sor.u32 256, 32
    %2519 = vbcast.lane.b32.xlu0 %v2501, %s2518
    %v2520 = vpop.permute.xlu0 %2519
    %s2522 = sor.u32 256, 40
    %2523 = vbcast.lane.b32.xlu0 %v2501, %s2522
    %v2524 = vpop.permute.xlu0 %2523
    %s2526 = sor.u32 256, 48
    %2527 = vbcast.lane.b32.xlu0 %v2501, %s2526
    %v2528 = vpop.permute.xlu0 %2527
    %s2530 = sor.u32 256, 56
    %2531 = vbcast.lane.b32.xlu0 %v2501, %s2530
    %v2532 = vpop.permute.xlu0 %2531
    %s2534 = sor.u32 256, 64
    %2535 = vbcast.lane.b32.xlu0 %v2501, %s2534
    %v2536 = vpop.permute.xlu0 %2535
    %s2538 = sor.u32 256, 72
    %2539 = vbcast.lane.b32.xlu0 %v2501, %s2538
    %v2540 = vpop.permute.xlu0 %2539
    %s2542 = sor.u32 256, 80
    %2543 = vbcast.lane.b32.xlu0 %v2501, %s2542
    %v2544 = vpop.permute.xlu0 %2543
    %s2546 = sor.u32 256, 88
    %2547 = vbcast.lane.b32.xlu0 %v2501, %s2546
    %v2548 = vpop.permute.xlu0 %2547
    %s2550 = sor.u32 256, 96
    %2551 = vbcast.lane.b32.xlu0 %v2501, %s2550
    %v2552 = vpop.permute.xlu0 %2551
    %s2554 = sor.u32 256, 104
    %2555 = vbcast.lane.b32.xlu0 %v2501, %s2554
    %v2556 = vpop.permute.xlu0 %2555
    %s2558 = sor.u32 256, 112
    %2559 = vbcast.lane.b32.xlu0 %v2501, %s2558
    %v2560 = vpop.permute.xlu0 %2559
    %s2562 = sor.u32 256, 120
    %2563 = vbcast.lane.b32.xlu0 %v2501, %s2562
    %v2564 = vpop.permute.xlu0 %2563
    %v2565 = vlaneseq
    %v2566 = vshrl.u32 %v2565, 7
    %v2567 = vsub.s32 1, %v2566
    %v2568 = vrot.slane %v2363, %v2567
    %2570 = vbcast.lane.b32.xlu0 %v2568, 256
    %v2571 = vpop.permute.xlu0 %2570
    %s2573 = sor.u32 256, 8
    %2574 = vbcast.lane.b32.xlu0 %v2568, %s2573
    %v2575 = vpop.permute.xlu0 %2574
    %s2577 = sor.u32 256, 16
    %2578 = vbcast.lane.b32.xlu0 %v2568, %s2577
    %v2579 = vpop.permute.xlu0 %2578
    %s2581 = sor.u32 256, 24
    %2582 = vbcast.lane.b32.xlu0 %v2568, %s2581
    %v2583 = vpop.permute.xlu0 %2582
    %s2585 = sor.u32 256, 32
    %2586 = vbcast.lane.b32.xlu0 %v2568, %s2585
    %v2587 = vpop.permute.xlu0 %2586
    %s2589 = sor.u32 256, 40
    %2590 = vbcast.lane.b32.xlu0 %v2568, %s2589
    %v2591 = vpop.permute.xlu0 %2590
    %s2593 = sor.u32 256, 48
    %2594 = vbcast.lane.b32.xlu0 %v2568, %s2593
    %v2595 = vpop.permute.xlu0 %2594
    %s2597 = sor.u32 256, 56
    %2598 = vbcast.lane.b32.xlu0 %v2568, %s2597
    %v2599 = vpop.permute.xlu0 %2598
    %s2601 = sor.u32 256, 64
    %2602 = vbcast.lane.b32.xlu0 %v2568, %s2601
    %v2603 = vpop.permute.xlu0 %2602
    %s2605 = sor.u32 256, 72
    %2606 = vbcast.lane.b32.xlu0 %v2568, %s2605
    %v2607 = vpop.permute.xlu0 %2606
    %s2609 = sor.u32 256, 80
    %2610 = vbcast.lane.b32.xlu0 %v2568, %s2609
    %v2611 = vpop.permute.xlu0 %2610
    %s2613 = sor.u32 256, 88
    %2614 = vbcast.lane.b32.xlu0 %v2568, %s2613
    %v2615 = vpop.permute.xlu0 %2614
    %s2617 = sor.u32 256, 96
    %2618 = vbcast.lane.b32.xlu0 %v2568, %s2617
    %v2619 = vpop.permute.xlu0 %2618
    %s2621 = sor.u32 256, 104
    %2622 = vbcast.lane.b32.xlu0 %v2568, %s2621
    %v2623 = vpop.permute.xlu0 %2622
    %s2625 = sor.u32 256, 112
    %2626 = vbcast.lane.b32.xlu0 %v2568, %s2625
    %v2627 = vpop.permute.xlu0 %2626
    %s2629 = sor.u32 256, 120
    %2630 = vbcast.lane.b32.xlu0 %v2568, %s2629
    %v2631 = vpop.permute.xlu0 %2630
    %v2632 = vmul.f32 %v831, %v2370
    %v2633 = vmul.f32 %v832, %v2374
    %v2634 = vmul.f32 %v833, %v2378
    %v2635 = vmul.f32 %v834, %v2382
    %v2636 = vmul.f32 %v835, %v2386
    %v2637 = vmul.f32 %v836, %v2390
    %v2638 = vmul.f32 %v837, %v2394
    %v2639 = vmul.f32 %v838, %v2398
    %v2640 = vmul.f32 %v839, %v2402
    %v2641 = vmul.f32 %v840, %v2406
    %v2642 = vmul.f32 %v841, %v2410
    %v2643 = vmul.f32 %v842, %v2414
    %v2644 = vmul.f32 %v843, %v2418
    %v2645 = vmul.f32 %v844, %v2422
    %v2646 = vmul.f32 %v845, %v2426
    %v2647 = vmul.f32 %v846, %v2430
    %v2648 = vmul.f32 %v847, %v2437
    %v2649 = vmul.f32 %v848, %v2441
    %v2650 = vmul.f32 %v849, %v2445
    %v2651 = vmul.f32 %v850, %v2449
    %v2652 = vmul.f32 %v851, %v2453
    %v2653 = vmul.f32 %v852, %v2457
    %v2654 = vmul.f32 %v853, %v2461
    %v2655 = vmul.f32 %v854, %v2465
    %v2656 = vmul.f32 %v855, %v2469
    %v2657 = vmul.f32 %v856, %v2473
    %v2658 = vmul.f32 %v857, %v2477
    %v2659 = vmul.f32 %v858, %v2481
    %v2660 = vmul.f32 %v859, %v2485
    %v2661 = vmul.f32 %v860, %v2489
    %v2662 = vmul.f32 %v861, %v2493
    %v2663 = vmul.f32 %v862, %v2497
    %v2664 = vmul.f32 %v863, %v2504
    %v2665 = vmul.f32 %v864, %v2508
    %v2666 = vmul.f32 %v865, %v2512
    %v2667 = vmul.f32 %v866, %v2516
    %v2668 = vmul.f32 %v867, %v2520
    %v2669 = vmul.f32 %v868, %v2524
    %v2670 = vmul.f32 %v869, %v2528
    %v2671 = vmul.f32 %v870, %v2532
    %v2672 = vmul.f32 %v871, %v2536
    %v2673 = vmul.f32 %v872, %v2540
    %v2674 = vmul.f32 %v873, %v2544
    %v2675 = vmul.f32 %v874, %v2548
    %v2676 = vmul.f32 %v875, %v2552
    %v2677 = vmul.f32 %v876, %v2556
    %v2678 = vmul.f32 %v877, %v2560
    %v2679 = vmul.f32 %v878, %v2564
    %v2680 = vmul.f32 %v879, %v2571
    %v2681 = vmul.f32 %v880, %v2575
    %v2682 = vmul.f32 %v881, %v2579
    %v2683 = vmul.f32 %v882, %v2583
    %v2684 = vmul.f32 %v883, %v2587
    %v2685 = vmul.f32 %v884, %v2591
    %v2686 = vmul.f32 %v885, %v2595
    %v2687 = vmul.f32 %v886, %v2599
    %v2688 = vmul.f32 %v887, %v2603
    %v2689 = vmul.f32 %v888, %v2607
    %v2690 = vmul.f32 %v889, %v2611
    %v2691 = vmul.f32 %v890, %v2615
    %v2692 = vmul.f32 %v891, %v2619
    %v2693 = vmul.f32 %v892, %v2623
    %v2694 = vmul.f32 %v893, %v2627
    %v2695 = vmul.f32 %v894, %v2631
    %s2696 = sld [smem:[#allocation3]]
    %vm2697 = vcmp.ge.f32.partialorder %v2632, 0.0
    %vm2698 = vcmp.ge.f32.partialorder %v2633, 0.0
    %vm2699 = vcmp.ge.f32.partialorder %v2634, 0.0
    %vm2700 = vcmp.ge.f32.partialorder %v2635, 0.0
    %vm2701 = vcmp.ge.f32.partialorder %v2636, 0.0
    %vm2702 = vcmp.ge.f32.partialorder %v2637, 0.0
    %vm2703 = vcmp.ge.f32.partialorder %v2638, 0.0
    %vm2704 = vcmp.ge.f32.partialorder %v2639, 0.0
    %vm2705 = vcmp.ge.f32.partialorder %v2640, 0.0
    %vm2706 = vcmp.ge.f32.partialorder %v2641, 0.0
    %vm2707 = vcmp.ge.f32.partialorder %v2642, 0.0
    %vm2708 = vcmp.ge.f32.partialorder %v2643, 0.0
    %vm2709 = vcmp.ge.f32.partialorder %v2644, 0.0
    %vm2710 = vcmp.ge.f32.partialorder %v2645, 0.0
    %vm2711 = vcmp.ge.f32.partialorder %v2646, 0.0
    %vm2712 = vcmp.ge.f32.partialorder %v2647, 0.0
    %vm2713 = vcmp.ge.f32.partialorder %v2648, 0.0
    %vm2714 = vcmp.ge.f32.partialorder %v2649, 0.0
    %vm2715 = vcmp.ge.f32.partialorder %v2650, 0.0
    %vm2716 = vcmp.ge.f32.partialorder %v2651, 0.0
    %vm2717 = vcmp.ge.f32.partialorder %v2652, 0.0
    %vm2718 = vcmp.ge.f32.partialorder %v2653, 0.0
    %vm2719 = vcmp.ge.f32.partialorder %v2654, 0.0
    %vm2720 = vcmp.ge.f32.partialorder %v2655, 0.0
    %vm2721 = vcmp.ge.f32.partialorder %v2656, 0.0
    %vm2722 = vcmp.ge.f32.partialorder %v2657, 0.0
    %vm2723 = vcmp.ge.f32.partialorder %v2658, 0.0
    %vm2724 = vcmp.ge.f32.partialorder %v2659, 0.0
    %vm2725 = vcmp.ge.f32.partialorder %v2660, 0.0
    %vm2726 = vcmp.ge.f32.partialorder %v2661, 0.0
    %vm2727 = vcmp.ge.f32.partialorder %v2662, 0.0
    %vm2728 = vcmp.ge.f32.partialorder %v2663, 0.0
    %vm2729 = vcmp.ge.f32.partialorder %v2664, 0.0
    %vm2730 = vcmp.ge.f32.partialorder %v2665, 0.0
    %vm2731 = vcmp.ge.f32.partialorder %v2666, 0.0
    %vm2732 = vcmp.ge.f32.partialorder %v2667, 0.0
    %vm2733 = vcmp.ge.f32.partialorder %v2668, 0.0
    %vm2734 = vcmp.ge.f32.partialorder %v2669, 0.0
    %vm2735 = vcmp.ge.f32.partialorder %v2670, 0.0
    %vm2736 = vcmp.ge.f32.partialorder %v2671, 0.0
    %vm2737 = vcmp.ge.f32.partialorder %v2672, 0.0
    %vm2738 = vcmp.ge.f32.partialorder %v2673, 0.0
    %vm2739 = vcmp.ge.f32.partialorder %v2674, 0.0
    %vm2740 = vcmp.ge.f32.partialorder %v2675, 0.0
    %vm2741 = vcmp.ge.f32.partialorder %v2676, 0.0
    %vm2742 = vcmp.ge.f32.partialorder %v2677, 0.0
    %vm2743 = vcmp.ge.f32.partialorder %v2678, 0.0
    %vm2744 = vcmp.ge.f32.partialorder %v2679, 0.0
    %vm2745 = vcmp.ge.f32.partialorder %v2680, 0.0
    %vm2746 = vcmp.ge.f32.partialorder %v2681, 0.0
    %vm2747 = vcmp.ge.f32.partialorder %v2682, 0.0
    %vm2748 = vcmp.ge.f32.partialorder %v2683, 0.0
    %vm2749 = vcmp.ge.f32.partialorder %v2684, 0.0
    %vm2750 = vcmp.ge.f32.partialorder %v2685, 0.0
    %vm2751 = vcmp.ge.f32.partialorder %v2686, 0.0
    %vm2752 = vcmp.ge.f32.partialorder %v2687, 0.0
    %vm2753 = vcmp.ge.f32.partialorder %v2688, 0.0
    %vm2754 = vcmp.ge.f32.partialorder %v2689, 0.0
    %vm2755 = vcmp.ge.f32.partialorder %v2690, 0.0
    %vm2756 = vcmp.ge.f32.partialorder %v2691, 0.0
    %vm2757 = vcmp.ge.f32.partialorder %v2692, 0.0
    %vm2758 = vcmp.ge.f32.partialorder %v2693, 0.0
    %vm2759 = vcmp.ge.f32.partialorder %v2694, 0.0
    %vm2760 = vcmp.ge.f32.partialorder %v2695, 0.0
    %v2761 = vstv %s2696
    %v2762 = vmul.f32 %v2761, %v2632
    %v2763 = vmul.f32 %v2761, %v2633
    %v2764 = vmul.f32 %v2761, %v2634
    %v2765 = vmul.f32 %v2761, %v2635
    %v2766 = vmul.f32 %v2761, %v2636
    %v2767 = vmul.f32 %v2761, %v2637
    %v2768 = vmul.f32 %v2761, %v2638
    %v2769 = vmul.f32 %v2761, %v2639
    %v2770 = vmul.f32 %v2761, %v2640
    %v2771 = vmul.f32 %v2761, %v2641
    %v2772 = vmul.f32 %v2761, %v2642
    %v2773 = vmul.f32 %v2761, %v2643
    %v2774 = vmul.f32 %v2761, %v2644
    %v2775 = vmul.f32 %v2761, %v2645
    %v2776 = vmul.f32 %v2761, %v2646
    %v2777 = vmul.f32 %v2761, %v2647
    %v2778 = vmul.f32 %v2761, %v2648
    %v2779 = vmul.f32 %v2761, %v2649
    %v2780 = vmul.f32 %v2761, %v2650
    %v2781 = vmul.f32 %v2761, %v2651
    %v2782 = vmul.f32 %v2761, %v2652
    %v2783 = vmul.f32 %v2761, %v2653
    %v2784 = vmul.f32 %v2761, %v2654
    %v2785 = vmul.f32 %v2761, %v2655
    %v2786 = vmul.f32 %v2761, %v2656
    %v2787 = vmul.f32 %v2761, %v2657
    %v2788 = vmul.f32 %v2761, %v2658
    %v2789 = vmul.f32 %v2761, %v2659
    %v2790 = vmul.f32 %v2761, %v2660
    %v2791 = vmul.f32 %v2761, %v2661
    %v2792 = vmul.f32 %v2761, %v2662
    %v2793 = vmul.f32 %v2761, %v2663
    %v2794 = vmul.f32 %v2761, %v2664
    %v2795 = vmul.f32 %v2761, %v2665
    %v2796 = vmul.f32 %v2761, %v2666
    %v2797 = vmul.f32 %v2761, %v2667
    %v2798 = vmul.f32 %v2761, %v2668
    %v2799 = vmul.f32 %v2761, %v2669
    %v2800 = vmul.f32 %v2761, %v2670
    %v2801 = vmul.f32 %v2761, %v2671
    %v2802 = vmul.f32 %v2761, %v2672
    %v2803 = vmul.f32 %v2761, %v2673
    %v2804 = vmul.f32 %v2761, %v2674
    %v2805 = vmul.f32 %v2761, %v2675
    %v2806 = vmul.f32 %v2761, %v2676
    %v2807 = vmul.f32 %v2761, %v2677
    %v2808 = vmul.f32 %v2761, %v2678
    %v2809 = vmul.f32 %v2761, %v2679
    %v2810 = vmul.f32 %v2761, %v2680
    %v2811 = vmul.f32 %v2761, %v2681
    %v2812 = vmul.f32 %v2761, %v2682
    %v2813 = vmul.f32 %v2761, %v2683
    %v2814 = vmul.f32 %v2761, %v2684
    %v2815 = vmul.f32 %v2761, %v2685
    %v2816 = vmul.f32 %v2761, %v2686
    %v2817 = vmul.f32 %v2761, %v2687
    %v2818 = vmul.f32 %v2761, %v2688
    %v2819 = vmul.f32 %v2761, %v2689
    %v2820 = vmul.f32 %v2761, %v2690
    %v2821 = vmul.f32 %v2761, %v2691
    %v2822 = vmul.f32 %v2761, %v2692
    %v2823 = vmul.f32 %v2761, %v2693
    %v2824 = vmul.f32 %v2761, %v2694
    %v2825 = vmul.f32 %v2761, %v2695
    %v2826 = vsel %vm2697, %v2632, %v2762
    %v2827 = vsel %vm2698, %v2633, %v2763
    %v2828 = vsel %vm2699, %v2634, %v2764
    %v2829 = vsel %vm2700, %v2635, %v2765
    %v2830 = vsel %vm2701, %v2636, %v2766
    %v2831 = vsel %vm2702, %v2637, %v2767
    %v2832 = vsel %vm2703, %v2638, %v2768
    %v2833 = vsel %vm2704, %v2639, %v2769
    %v2834 = vsel %vm2705, %v2640, %v2770
    %v2835 = vsel %vm2706, %v2641, %v2771
    %v2836 = vsel %vm2707, %v2642, %v2772
    %v2837 = vsel %vm2708, %v2643, %v2773
    %v2838 = vsel %vm2709, %v2644, %v2774
    %v2839 = vsel %vm2710, %v2645, %v2775
    %v2840 = vsel %vm2711, %v2646, %v2776
    %v2841 = vsel %vm2712, %v2647, %v2777
    %v2842 = vsel %vm2713, %v2648, %v2778
    %v2843 = vsel %vm2714, %v2649, %v2779
    %v2844 = vsel %vm2715, %v2650, %v2780
    %v2845 = vsel %vm2716, %v2651, %v2781
    %v2846 = vsel %vm2717, %v2652, %v2782
    %v2847 = vsel %vm2718, %v2653, %v2783
    %v2848 = vsel %vm2719, %v2654, %v2784
    %v2849 = vsel %vm2720, %v2655, %v2785
    %v2850 = vsel %vm2721, %v2656, %v2786
    %v2851 = vsel %vm2722, %v2657, %v2787
    %v2852 = vsel %vm2723, %v2658, %v2788
    %v2853 = vsel %vm2724, %v2659, %v2789
    %v2854 = vsel %vm2725, %v2660, %v2790
    %v2855 = vsel %vm2726, %v2661, %v2791
    %v2856 = vsel %vm2727, %v2662, %v2792
    %v2857 = vsel %vm2728, %v2663, %v2793
    %v2858 = vsel %vm2729, %v2664, %v2794
    %v2859 = vsel %vm2730, %v2665, %v2795
    %v2860 = vsel %vm2731, %v2666, %v2796
    %v2861 = vsel %vm2732, %v2667, %v2797
    %v2862 = vsel %vm2733, %v2668, %v2798
    %v2863 = vsel %vm2734, %v2669, %v2799
    %v2864 = vsel %vm2735, %v2670, %v2800
    %v2865 = vsel %vm2736, %v2671, %v2801
    %v2866 = vsel %vm2737, %v2672, %v2802
    %v2867 = vsel %vm2738, %v2673, %v2803
    %v2868 = vsel %vm2739, %v2674, %v2804
    %v2869 = vsel %vm2740, %v2675, %v2805
    %v2870 = vsel %vm2741, %v2676, %v2806
    %v2871 = vsel %vm2742, %v2677, %v2807
    %v2872 = vsel %vm2743, %v2678, %v2808
    %v2873 = vsel %vm2744, %v2679, %v2809
    %v2874 = vsel %vm2745, %v2680, %v2810
    %v2875 = vsel %vm2746, %v2681, %v2811
    %v2876 = vsel %vm2747, %v2682, %v2812
    %v2877 = vsel %vm2748, %v2683, %v2813
    %v2878 = vsel %vm2749, %v2684, %v2814
    %v2879 = vsel %vm2750, %v2685, %v2815
    %v2880 = vsel %vm2751, %v2686, %v2816
    %v2881 = vsel %vm2752, %v2687, %v2817
    %v2882 = vsel %vm2753, %v2688, %v2818
    %v2883 = vsel %vm2754, %v2689, %v2819
    %v2884 = vsel %vm2755, %v2690, %v2820
    %v2885 = vsel %vm2756, %v2691, %v2821
    %v2886 = vsel %vm2757, %v2692, %v2822
    %v2887 = vsel %vm2758, %v2693, %v2823
    %v2888 = vsel %vm2759, %v2694, %v2824
    %v2889 = vsel %vm2760, %v2695, %v2825
    %2890 = vst [vmem:[#allocation4] sm:$0xff] %v2826
    %2891 = vst [vmem:[#allocation4 + $0x8] sm:$0xff] %v2827
    %2892 = vst [vmem:[#allocation4 + $0x10] sm:$0xff] %v2828
    %2893 = vst [vmem:[#allocation4 + $0x18] sm:$0xff] %v2829
    %2894 = vst [vmem:[#allocation4 + $0x20] sm:$0xff] %v2830
    %2895 = vst [vmem:[#allocation4 + $0x28] sm:$0xff] %v2831
    %2896 = vst [vmem:[#allocation4 + $0x30] sm:$0xff] %v2832
    %2897 = vst [vmem:[#allocation4 + $0x38] sm:$0xff] %v2833
    %2898 = vst [vmem:[#allocation4 + $0x40] sm:$0xff] %v2834
    %2899 = vst [vmem:[#allocation4 + $0x48] sm:$0xff] %v2835
    %2900 = vst [vmem:[#allocation4 + $0x50] sm:$0xff] %v2836
    %2901 = vst [vmem:[#allocation4 + $0x58] sm:$0xff] %v2837
    %2902 = vst [vmem:[#allocation4 + $0x60] sm:$0xff] %v2838
    %2903 = vst [vmem:[#allocation4 + $0x68] sm:$0xff] %v2839
    %2904 = vst [vmem:[#allocation4 + $0x70] sm:$0xff] %v2840
    %2905 = vst [vmem:[#allocation4 + $0x78] sm:$0xff] %v2841
    %2906 = vst [vmem:[#allocation4 + $0x80] sm:$0xff] %v2842
    %2907 = vst [vmem:[#allocation4 + $0x88] sm:$0xff] %v2843
    %2908 = vst [vmem:[#allocation4 + $0x90] sm:$0xff] %v2844
    %2909 = vst [vmem:[#allocation4 + $0x98] sm:$0xff] %v2845
    %2910 = vst [vmem:[#allocation4 + $0xa0] sm:$0xff] %v2846
    %2911 = vst [vmem:[#allocation4 + $0xa8] sm:$0xff] %v2847
    %2912 = vst [vmem:[#allocation4 + $0xb0] sm:$0xff] %v2848
    %2913 = vst [vmem:[#allocation4 + $0xb8] sm:$0xff] %v2849
    %2914 = vst [vmem:[#allocation4 + $0xc0] sm:$0xff] %v2850
    %2915 = vst [vmem:[#allocation4 + $0xc8] sm:$0xff] %v2851
    %2916 = vst [vmem:[#allocation4 + $0xd0] sm:$0xff] %v2852
    %2917 = vst [vmem:[#allocation4 + $0xd8] sm:$0xff] %v2853
    %2918 = vst [vmem:[#allocation4 + $0xe0] sm:$0xff] %v2854
    %2919 = vst [vmem:[#allocation4 + $0xe8] sm:$0xff] %v2855
    %2920 = vst [vmem:[#allocation4 + $0xf0] sm:$0xff] %v2856
    %2921 = vst [vmem:[#allocation4 + $0xf8] sm:$0xff] %v2857
    %2922 = vst [vmem:[#allocation4 + $0x100] sm:$0xff] %v2858
    %2923 = vst [vmem:[#allocation4 + $0x108] sm:$0xff] %v2859
    %2924 = vst [vmem:[#allocation4 + $0x110] sm:$0xff] %v2860
    %2925 = vst [vmem:[#allocation4 + $0x118] sm:$0xff] %v2861
    %2926 = vst [vmem:[#allocation4 + $0x120] sm:$0xff] %v2862
    %2927 = vst [vmem:[#allocation4 + $0x128] sm:$0xff] %v2863
    %2928 = vst [vmem:[#allocation4 + $0x130] sm:$0xff] %v2864
    %2929 = vst [vmem:[#allocation4 + $0x138] sm:$0xff] %v2865
    %2930 = vst [vmem:[#allocation4 + $0x140] sm:$0xff] %v2866
    %2931 = vst [vmem:[#allocation4 + $0x148] sm:$0xff] %v2867
    %2932 = vst [vmem:[#allocation4 + $0x150] sm:$0xff] %v2868
    %2933 = vst [vmem:[#allocation4 + $0x158] sm:$0xff] %v2869
    %2934 = vst [vmem:[#allocation4 + $0x160] sm:$0xff] %v2870
    %2935 = vst [vmem:[#allocation4 + $0x168] sm:$0xff] %v2871
    %2936 = vst [vmem:[#allocation4 + $0x170] sm:$0xff] %v2872
    %2937 = vst [vmem:[#allocation4 + $0x178] sm:$0xff] %v2873
    %2938 = vst [vmem:[#allocation4 + $0x180] sm:$0xff] %v2874
    %2939 = vst [vmem:[#allocation4 + $0x188] sm:$0xff] %v2875
    %2940 = vst [vmem:[#allocation4 + $0x190] sm:$0xff] %v2876
    %2941 = vst [vmem:[#allocation4 + $0x198] sm:$0xff] %v2877
    %2942 = vst [vmem:[#allocation4 + $0x1a0] sm:$0xff] %v2878
    %2943 = vst [vmem:[#allocation4 + $0x1a8] sm:$0xff] %v2879
    %2944 = vst [vmem:[#allocation4 + $0x1b0] sm:$0xff] %v2880
    %2945 = vst [vmem:[#allocation4 + $0x1b8] sm:$0xff] %v2881
    %2946 = vst [vmem:[#allocation4 + $0x1c0] sm:$0xff] %v2882
    %2947 = vst [vmem:[#allocation4 + $0x1c8] sm:$0xff] %v2883
    %2948 = vst [vmem:[#allocation4 + $0x1d0] sm:$0xff] %v2884
    %2949 = vst [vmem:[#allocation4 + $0x1d8] sm:$0xff] %v2885
    %2950 = vst [vmem:[#allocation4 + $0x1e0] sm:$0xff] %v2886
    %2951 = vst [vmem:[#allocation4 + $0x1e8] sm:$0xff] %v2887
    %2952 = vst [vmem:[#allocation4 + $0x1f0] sm:$0xff] %v2888
    %2953 = vst [vmem:[#allocation4 + $0x1f8] sm:$0xff] %v2889
    // Predicated region
    $region34: #{_lambda_.3} parent=1 // pred_check
      _
    $region35: #{_lambda_.3} parent=1 // pred_check_branch
      %2955 = sbr.rel (0) target = $region37
    $region36: #{_lambda_.3} parent=1 // pred_region
      %s2957 = ssub.s32 8192, 8192
      %2958 = vsyncadd [#allocation5], %s2957
      %s2959 = sshll.u32 [#allocation4], 4
      %s2960 = int_to_ptr.vmem [resolvable:$true] %s2959
      %2965 = dma.vmem_to_hbm [thread:$0]  %s2960, 8192, %s8, [#allocation5], 128, 128, 8
    $region37: #{_lambda_.3} parent=1 // pred_fallthru
      _
    // Predicated region
    $region38: #{_lambda_.3} parent=1 // pred_check
      _
    $region39: #{_lambda_.3} parent=1 // pred_check_branch
      %2967 = sbr.rel (0) target = $region41
    $region40: #{_lambda_.3} parent=1 // pred_region
      %2968 = dma.done [#allocation5], 8192
    $region41: #{_lambda_.3} parent=1 // pred_fallthru
      _
    %2969 = vsyncpa [#allocation5], 1

</llo_original>
